<compile_context>
chip_gen: v5e
topology: v5e:2x2
jax: 0.10.0
libtpu: 0.0.40
codegen_flags: <defaults>
</compile_context>

<pallas_src>
import functools

import jax
import jax.numpy as jnp
from jax.experimental import pallas as pl
from jax.experimental.pallas import tpu as pltpu


# ----------------------------- Pallas kernel ------------------------------ #
def _gru_generator_kernel(num_layers, seq_len, batch, hidden_dim, alpha,
                          emb_ref,                      # (T*B, H) t-major embedded tokens
                          wir_ref, wiz_ref, win_ref,    # (L, H, H) input->gate weights^T
                          whr_ref, whz_ref, whn_ref,    # (L, H, H) hidden->gate weights^T
                          br_ref, bz_ref,               # (L, 1, H) merged biases (b_i*+b_h*)
                          bin_ref, bhn_ref,             # (L, 1, H) new-gate biases (separate)
                          wout_ref,                     # (H, VP)   output Linear weight^T, padded
                          bout_ref,                     # (1, VP)
                          out_ref,                      # (T*B, VP) logits, lane-dense
                          hs_ref):                      # VMEM (T*B, H) per-step final hidden
    L, T, B, H = num_layers, seq_len, batch, hidden_dim
    f32 = jnp.float32

    emb_all = emb_ref[...]                                           # (T*B, H)

    # Hoisted layer-0 input-side gate projections for ALL timesteps at once
    # (inputs are known ahead of time under teacher forcing).
    ir0 = jnp.dot(emb_all, wir_ref[0], preferred_element_type=f32)   # (T*B, H)
    iz0 = jnp.dot(emb_all, wiz_ref[0], preferred_element_type=f32)
    in0 = jnp.dot(emb_all, win_ref[0], preferred_element_type=f32)

    # hidden_state=None in PyTorch -> zeros.  NOTE: the PyTorch module chains a
    # single hidden state through all layers within a step and carries the last
    # layer's hidden to the next timestep; that quirk is reproduced exactly.
    h = jnp.zeros((B, H), f32)

    for t in range(T):                 # fully unrolled, static slices everywhere
        rows = slice(t * B, (t + 1) * B)

        # ---- layer 0: input = embedding (hoisted), hidden = carried h ----
        r = jax.nn.sigmoid(ir0[rows]
                           + jnp.dot(h, whr_ref[0], preferred_element_type=f32)
                           + br_ref[0])
        z = jax.nn.sigmoid(iz0[rows]
                           + jnp.dot(h, whz_ref[0], preferred_element_type=f32)
                           + bz_ref[0])
        n = jnp.tanh(in0[rows] + bin_ref[0]
                     + r * (jnp.dot(h, whn_ref[0], preferred_element_type=f32)
                            + bhn_ref[0]))
        h = (1.0 - z) * n + z * h

        # ---- layers 1..L-1: input == hidden == h (module quirk) ----
        for l in range(1, L):
            r = jax.nn.sigmoid(jnp.dot(h, wir_ref[l], preferred_element_type=f32)
                               + jnp.dot(h, whr_ref[l], preferred_element_type=f32)
                               + br_ref[l])
            z = jax.nn.sigmoid(jnp.dot(h, wiz_ref[l], preferred_element_type=f32)
                               + jnp.dot(h, whz_ref[l], preferred_element_type=f32)
                               + bz_ref[l])
            n = jnp.tanh(jnp.dot(h, win_ref[l], preferred_element_type=f32)
                         + bin_ref[l]
                         + r * (jnp.dot(h, whn_ref[l], preferred_element_type=f32)
                                + bhn_ref[l]))
            h = (1.0 - z) * n + z * h

        hs_ref[pl.ds(t * B, B), :] = h

    # Single batched output projection + alpha over all timesteps (lane-dense).
    logits = (jnp.dot(hs_ref[...], wout_ref[...], preferred_element_type=f32)
              + bout_ref[...]) * alpha
    out_ref[...] = logits.astype(out_ref.dtype)


# ------------------------------ JAX wrapper -------------------------------- #
def old_generator_forward(x_tokens, params, *, num_layers, hidden_dim,
                          vocab_size, alpha):
    """x_tokens: (B, T) int32.  Returns (logits (B, T, V), words=[])."""
    B, T = x_tokens.shape
    V, H, L = vocab_size, hidden_dim, num_layers
    assert T != 1, "this wrapper implements the teacher-forcing path"
    VP = ((V + 127) // 128) * 128          # lane-dense padded vocab width

    # Embedding lookup as a wrapper-side gather; t-major flat rows (row = t*B+b).
    ids_flat = x_tokens.T.reshape(-1)                                    # (T*B,)
    emb_flat = jnp.take(params["emb"], ids_flat, axis=0).astype(jnp.float32)

    # Pre-split packed GRU weights / biases per gate (PyTorch order r, z, n).
    wih, whh = params["wih_t"], params["whh_t"]                          # (L, H, 3H)
    bih, bhh = params["bih"], params["bhh"]                              # (L, 1, 3H)
    w_ir, w_iz, w_in = wih[:, :, :H], wih[:, :, H:2 * H], wih[:, :, 2 * H:]
    w_hr, w_hz, w_hn = whh[:, :, :H], whh[:, :, H:2 * H], whh[:, :, 2 * H:]
    b_r = bih[:, :, :H] + bhh[:, :, :H]
    b_z = bih[:, :, H:2 * H] + bhh[:, :, H:2 * H]
    b_in, b_hn = bih[:, :, 2 * H:], bhh[:, :, 2 * H:]

    # Zero-pad the output projection to VP lanes (unmasked lane-dense stores).
    wout_p = jnp.zeros((H, VP), jnp.float32).at[:, :V].set(params["wout_t"])
    bout_p = jnp.zeros((1, VP), jnp.float32).at[:, :V].set(params["bout"])

    kernel = functools.partial(_gru_generator_kernel, L, T, B, H, alpha)
    vmem = lambda: pl.BlockSpec(memory_space=pltpu.MemorySpace.VMEM)

    logits_flat = pl.pallas_call(
        kernel,
        out_shape=jax.ShapeDtypeStruct((T * B, VP), jnp.float32),
        in_specs=[vmem() for _ in range(13)],
        out_specs=vmem(),
        scratch_shapes=[pltpu.VMEM((T * B, H), jnp.float32)],
    )(emb_flat, w_ir, w_iz, w_in, w_hr, w_hz, w_hn,
      b_r, b_z, b_in, b_hn, wout_p, bout_p)

    logits = logits_flat[:, :V].reshape(T, B, V).transpose(1, 0, 2)      # (B, T, V)
    words = []  # teacher forcing: no sampling
    # TODO(synk): the free-running (non-teacher-forcing) path would need
    # Categorical sampling (pltpu.prng_*) feeding back into the next step's
    # embedding lookup; not implemented here.
    return logits, words


# --------------------------- pure-JAX reference ---------------------------- #
def reference_forward(x_tokens, params, *, num_layers, hidden_dim,
                      vocab_size, alpha):
    B, T = x_tokens.shape
    H = hidden_dim
    h = jnp.zeros((B, H), jnp.float32)
    outs = []
    for t in range(T):
        out = params["emb"][x_tokens[:, t]]                       # (B, H)
        for l in range(num_layers):
            gi = out @ params["wih_t"][l] + params["bih"][l]
            gh = h @ params["whh_t"][l] + params["bhh"][l]
            r = jax.nn.sigmoid(gi[:, :H] + gh[:, :H])
            z = jax.nn.sigmoid(gi[:, H:2 * H] + gh[:, H:2 * H])
            n = jnp.tanh(gi[:, 2 * H:] + r * gh[:, 2 * H:])
            h = (1.0 - z) * n + z * h
            out = h
        logits = out @ params["wout_t"] + params["bout"]
        outs.append(logits * alpha)
    return jnp.stack(outs, axis=1)                                # (B, T, V)


# --------------------------------- main ------------------------------------ #
if __name__ == "__main__":
    # args (synthetic, deterministic)
    VOCAB = 16
    HIDDEN = 32       # hidden_dim_gen
    LAYERS = 2        # num_layers_gen
    BATCH = 2
    SEQ = 8           # teacher forcing: x has seq_len > 1
    ALPHA_TEST = 1.5  # applied since is_oracle=False, eval mode

    key = jax.random.PRNGKey(0)
    keys = jax.random.split(key, 8)
    scale = 0.1
    params = {
        "emb":    scale * jax.random.normal(keys[0], (VOCAB, HIDDEN), jnp.float32),
        "wih_t":  scale * jax.random.normal(keys[1], (LAYERS, HIDDEN, 3 * HIDDEN), jnp.float32),
        "whh_t":  scale * jax.random.normal(keys[2], (LAYERS, HIDDEN, 3 * HIDDEN), jnp.float32),
        "bih":    scale * jax.random.normal(keys[3], (LAYERS, 1, 3 * HIDDEN), jnp.float32),
        "bhh":    scale * jax.random.normal(keys[4], (LAYERS, 1, 3 * HIDDEN), jnp.float32),
        "wout_t": scale * jax.random.normal(keys[5], (HIDDEN, VOCAB), jnp.float32),
        "bout":   scale * jax.random.normal(keys[6], (1, VOCAB), jnp.float32),
    }
    x_tokens = jax.random.randint(keys[7], (BATCH, SEQ), 0, VOCAB, dtype=jnp.int32)
    x_tokens = x_tokens.at[:, 0].set(0)  # x[:, 0] is always the SOS token

    logits, words = old_generator_forward(
        x_tokens, params, num_layers=LAYERS, hidden_dim=HIDDEN,
        vocab_size=VOCAB, alpha=ALPHA_TEST)
    logits = jax.block_until_ready(logits)

    ref = reference_forward(
        x_tokens, params, num_layers=LAYERS, hidden_dim=HIDDEN,
        vocab_size=VOCAB, alpha=ALPHA_TEST)

    assert logits.shape == (BATCH, SEQ, VOCAB)
    assert jnp.allclose(logits, ref, atol=1e-3, rtol=1e-3), "mismatch vs reference"
    print("KERNEL_OK")
</pallas_src>

<mosaic_0001>
module attributes {stable_mosaic.version = 11 : i64} {
  func.func @_gru_generator_kernel(%arg0: memref<16x32xf32, #tpu.memory_space<vmem>>, %arg1: memref<2x32x32xf32, #tpu.memory_space<vmem>>, %arg2: memref<2x32x32xf32, #tpu.memory_space<vmem>>, %arg3: memref<2x32x32xf32, #tpu.memory_space<vmem>>, %arg4: memref<2x32x32xf32, #tpu.memory_space<vmem>>, %arg5: memref<2x32x32xf32, #tpu.memory_space<vmem>>, %arg6: memref<2x32x32xf32, #tpu.memory_space<vmem>>, %arg7: memref<2x1x32xf32, #tpu.memory_space<vmem>>, %arg8: memref<2x1x32xf32, #tpu.memory_space<vmem>>, %arg9: memref<2x1x32xf32, #tpu.memory_space<vmem>>, %arg10: memref<2x1x32xf32, #tpu.memory_space<vmem>>, %arg11: memref<32x128xf32, #tpu.memory_space<vmem>>, %arg12: memref<1x128xf32, #tpu.memory_space<vmem>>, %arg13: memref<16x128xf32, #tpu.memory_space<vmem>>, %arg14: memref<16x32xf32, #tpu.memory_space<vmem>>) attributes {dimension_semantics = [], scalar_prefetch = 0 : i64, scratch_operands = 1 : i64, tpu.core_type = #tpu.core_type<tc>} {
    %c0 = arith.constant 0 : index
    %c0_0 = arith.constant 0 : index
    %0 = vector.load %arg0[%c0, %c0_0] : memref<16x32xf32, #tpu.memory_space<vmem>>, vector<16x32xf32>
    %c0_1 = arith.constant 0 : index
    %c0_2 = arith.constant 0 : index
    %c0_3 = arith.constant 0 : index
    %1 = vector.load %arg1[%c0_1, %c0_2, %c0_3] : memref<2x32x32xf32, #tpu.memory_space<vmem>>, vector<1x32x32xf32>
    %2 = vector.shape_cast %1 : vector<1x32x32xf32> to vector<32x32xf32>
    %cst = arith.constant dense<0.000000e+00> : vector<16x32xf32>
    %3 = tpu.matmul %0, %2, %cst {dimension_numbers = #tpu.dot_dimension_numbers<[1], [0], [0], [1], [0, 0, 1, 1], [], []>} : vector<16x32xf32>, vector<32x32xf32>, vector<16x32xf32> -> vector<16x32xf32>
    %c0_4 = arith.constant 0 : index
    %c0_5 = arith.constant 0 : index
    %c0_6 = arith.constant 0 : index
    %4 = vector.load %arg2[%c0_4, %c0_5, %c0_6] : memref<2x32x32xf32, #tpu.memory_space<vmem>>, vector<1x32x32xf32>
    %5 = vector.shape_cast %4 : vector<1x32x32xf32> to vector<32x32xf32>
    %cst_7 = arith.constant dense<0.000000e+00> : vector<16x32xf32>
    %6 = tpu.matmul %0, %5, %cst_7 {dimension_numbers = #tpu.dot_dimension_numbers<[1], [0], [0], [1], [0, 0, 1, 1], [], []>} : vector<16x32xf32>, vector<32x32xf32>, vector<16x32xf32> -> vector<16x32xf32>
    %c0_8 = arith.constant 0 : index
    %c0_9 = arith.constant 0 : index
    %c0_10 = arith.constant 0 : index
    %7 = vector.load %arg3[%c0_8, %c0_9, %c0_10] : memref<2x32x32xf32, #tpu.memory_space<vmem>>, vector<1x32x32xf32>
    %8 = vector.shape_cast %7 : vector<1x32x32xf32> to vector<32x32xf32>
    %cst_11 = arith.constant dense<0.000000e+00> : vector<16x32xf32>
    %9 = tpu.matmul %0, %8, %cst_11 {dimension_numbers = #tpu.dot_dimension_numbers<[1], [0], [0], [1], [0, 0, 1, 1], [], []>} : vector<16x32xf32>, vector<32x32xf32>, vector<16x32xf32> -> vector<16x32xf32>
    %cst_12 = arith.constant 0.000000e+00 : f32
    %10 = vector.broadcast %cst_12 : f32 to vector<2x32xf32>
    %11 = vector.extract_strided_slice %3 {offsets = [0, 0], sizes = [2, 32], strides = [1, 1]} : vector<16x32xf32> to vector<2x32xf32>
    %c0_13 = arith.constant 0 : index
    %c0_14 = arith.constant 0 : index
    %c0_15 = arith.constant 0 : index
    %12 = vector.load %arg4[%c0_13, %c0_14, %c0_15] : memref<2x32x32xf32, #tpu.memory_space<vmem>>, vector<1x32x32xf32>
    %13 = vector.shape_cast %12 : vector<1x32x32xf32> to vector<32x32xf32>
    %cst_16 = arith.constant dense<0.000000e+00> : vector<2x32xf32>
    %14 = tpu.matmul %10, %13, %cst_16 {dimension_numbers = #tpu.dot_dimension_numbers<[1], [0], [0], [1], [0, 0, 1, 1], [], []>} : vector<2x32xf32>, vector<32x32xf32>, vector<2x32xf32> -> vector<2x32xf32>
    %15 = arith.addf %11, %14 : vector<2x32xf32>
    %c0_17 = arith.constant 0 : index
    %c0_18 = arith.constant 0 : index
    %c0_19 = arith.constant 0 : index
    %16 = vector.load %arg7[%c0_17, %c0_18, %c0_19] : memref<2x1x32xf32, #tpu.memory_space<vmem>>, vector<1x1x32xf32>
    %17 = vector.shape_cast %16 : vector<1x1x32xf32> to vector<1x32xf32>
    %18 = vector.broadcast %17 : vector<1x32xf32> to vector<2x32xf32>
    %19 = arith.addf %15, %18 : vector<2x32xf32>
    %20 = arith.negf %19 : vector<2x32xf32>
    %21 = math.exp %20 : vector<2x32xf32>
    %cst_20 = arith.constant 1.000000e+00 : f32
    %22 = vector.broadcast %cst_20 : f32 to vector<2x32xf32>
    %23 = arith.addf %22, %21 : vector<2x32xf32>
    %24 = arith.divf %22, %23 : vector<2x32xf32>
    %25 = vector.extract_strided_slice %6 {offsets = [0, 0], sizes = [2, 32], strides = [1, 1]} : vector<16x32xf32> to vector<2x32xf32>
    %c0_21 = arith.constant 0 : index
    %c0_22 = arith.constant 0 : index
    %c0_23 = arith.constant 0 : index
    %26 = vector.load %arg5[%c0_21, %c0_22, %c0_23] : memref<2x32x32xf32, #tpu.memory_space<vmem>>, vector<1x32x32xf32>
    %27 = vector.shape_cast %26 : vector<1x32x32xf32> to vector<32x32xf32>
    %cst_24 = arith.constant dense<0.000000e+00> : vector<2x32xf32>
    %28 = tpu.matmul %10, %27, %cst_24 {dimension_numbers = #tpu.dot_dimension_numbers<[1], [0], [0], [1], [0, 0, 1, 1], [], []>} : vector<2x32xf32>, vector<32x32xf32>, vector<2x32xf32> -> vector<2x32xf32>
    %29 = arith.addf %25, %28 : vector<2x32xf32>
    %c0_25 = arith.constant 0 : index
    %c0_26 = arith.constant 0 : index
    %c0_27 = arith.constant 0 : index
    %30 = vector.load %arg8[%c0_25, %c0_26, %c0_27] : memref<2x1x32xf32, #tpu.memory_space<vmem>>, vector<1x1x32xf32>
    %31 = vector.shape_cast %30 : vector<1x1x32xf32> to vector<1x32xf32>
    %32 = vector.broadcast %31 : vector<1x32xf32> to vector<2x32xf32>
    %33 = arith.addf %29, %32 : vector<2x32xf32>
    %34 = arith.negf %33 : vector<2x32xf32>
    %35 = math.exp %34 : vector<2x32xf32>
    %cst_28 = arith.constant 1.000000e+00 : f32
    %36 = vector.broadcast %cst_28 : f32 to vector<2x32xf32>
    %37 = arith.addf %36, %35 : vector<2x32xf32>
    %38 = arith.divf %36, %37 : vector<2x32xf32>
    %39 = vector.extract_strided_slice %9 {offsets = [0, 0], sizes = [2, 32], strides = [1, 1]} : vector<16x32xf32> to vector<2x32xf32>
    %c0_29 = arith.constant 0 : index
    %c0_30 = arith.constant 0 : index
    %c0_31 = arith.constant 0 : index
    %40 = vector.load %arg9[%c0_29, %c0_30, %c0_31] : memref<2x1x32xf32, #tpu.memory_space<vmem>>, vector<1x1x32xf32>
    %41 = vector.shape_cast %40 : vector<1x1x32xf32> to vector<1x32xf32>
    %42 = vector.broadcast %41 : vector<1x32xf32> to vector<2x32xf32>
    %43 = arith.addf %39, %42 : vector<2x32xf32>
    %c0_32 = arith.constant 0 : index
    %c0_33 = arith.constant 0 : index
    %c0_34 = arith.constant 0 : index
    %44 = vector.load %arg6[%c0_32, %c0_33, %c0_34] : memref<2x32x32xf32, #tpu.memory_space<vmem>>, vector<1x32x32xf32>
    %45 = vector.shape_cast %44 : vector<1x32x32xf32> to vector<32x32xf32>
    %cst_35 = arith.constant dense<0.000000e+00> : vector<2x32xf32>
    %46 = tpu.matmul %10, %45, %cst_35 {dimension_numbers = #tpu.dot_dimension_numbers<[1], [0], [0], [1], [0, 0, 1, 1], [], []>} : vector<2x32xf32>, vector<32x32xf32>, vector<2x32xf32> -> vector<2x32xf32>
    %c0_36 = arith.constant 0 : index
    %c0_37 = arith.constant 0 : index
    %c0_38 = arith.constant 0 : index
    %47 = vector.load %arg10[%c0_36, %c0_37, %c0_38] : memref<2x1x32xf32, #tpu.memory_space<vmem>>, vector<1x1x32xf32>
    %48 = vector.shape_cast %47 : vector<1x1x32xf32> to vector<1x32xf32>
    %49 = vector.broadcast %48 : vector<1x32xf32> to vector<2x32xf32>
    %50 = arith.addf %46, %49 : vector<2x32xf32>
    %51 = arith.mulf %24, %50 : vector<2x32xf32>
    %52 = arith.addf %43, %51 : vector<2x32xf32>
    %53 = math.tanh %52 : vector<2x32xf32>
    %cst_39 = arith.constant 1.000000e+00 : f32
    %54 = vector.broadcast %cst_39 : f32 to vector<2x32xf32>
    %55 = arith.subf %54, %38 : vector<2x32xf32>
    %56 = arith.mulf %55, %53 : vector<2x32xf32>
    %57 = arith.mulf %38, %10 : vector<2x32xf32>
    %58 = arith.addf %56, %57 : vector<2x32xf32>
    %c1 = arith.constant 1 : index
    %c0_40 = arith.constant 0 : index
    %c0_41 = arith.constant 0 : index
    %59 = vector.load %arg1[%c1, %c0_40, %c0_41] : memref<2x32x32xf32, #tpu.memory_space<vmem>>, vector<1x32x32xf32>
    %60 = vector.shape_cast %59 : vector<1x32x32xf32> to vector<32x32xf32>
    %cst_42 = arith.constant dense<0.000000e+00> : vector<2x32xf32>
    %61 = tpu.matmul %58, %60, %cst_42 {dimension_numbers = #tpu.dot_dimension_numbers<[1], [0], [0], [1], [0, 0, 1, 1], [], []>} : vector<2x32xf32>, vector<32x32xf32>, vector<2x32xf32> -> vector<2x32xf32>
    %c1_43 = arith.constant 1 : index
    %c0_44 = arith.constant 0 : index
    %c0_45 = arith.constant 0 : index
    %62 = vector.load %arg4[%c1_43, %c0_44, %c0_45] : memref<2x32x32xf32, #tpu.memory_space<vmem>>, vector<1x32x32xf32>
    %63 = vector.shape_cast %62 : vector<1x32x32xf32> to vector<32x32xf32>
    %cst_46 = arith.constant dense<0.000000e+00> : vector<2x32xf32>
    %64 = tpu.matmul %58, %63, %cst_46 {dimension_numbers = #tpu.dot_dimension_numbers<[1], [0], [0], [1], [0, 0, 1, 1], [], []>} : vector<2x32xf32>, vector<32x32xf32>, vector<2x32xf32> -> vector<2x32xf32>
    %65 = arith.addf %61, %64 : vector<2x32xf32>
    %c1_47 = arith.constant 1 : index
    %c0_48 = arith.constant 0 : index
    %c0_49 = arith.constant 0 : index
    %66 = vector.load %arg7[%c1_47, %c0_48, %c0_49] : memref<2x1x32xf32, #tpu.memory_space<vmem>>, vector<1x1x32xf32>
    %67 = vector.shape_cast %66 : vector<1x1x32xf32> to vector<1x32xf32>
    %68 = vector.broadcast %67 : vector<1x32xf32> to vector<2x32xf32>
    %69 = arith.addf %65, %68 : vector<2x32xf32>
    %70 = arith.negf %69 : vector<2x32xf32>
    %71 = math.exp %70 : vector<2x32xf32>
    %cst_50 = arith.constant 1.000000e+00 : f32
    %72 = vector.broadcast %cst_50 : f32 to vector<2x32xf32>
    %73 = arith.addf %72, %71 : vector<2x32xf32>
    %74 = arith.divf %72, %73 : vector<2x32xf32>
    %c1_51 = arith.constant 1 : index
    %c0_52 = arith.constant 0 : index
    %c0_53 = arith.constant 0 : index
    %75 = vector.load %arg2[%c1_51, %c0_52, %c0_53] : memref<2x32x32xf32, #tpu.memory_space<vmem>>, vector<1x32x32xf32>
    %76 = vector.shape_cast %75 : vector<1x32x32xf32> to vector<32x32xf32>
    %cst_54 = arith.constant dense<0.000000e+00> : vector<2x32xf32>
    %77 = tpu.matmul %58, %76, %cst_54 {dimension_numbers = #tpu.dot_dimension_numbers<[1], [0], [0], [1], [0, 0, 1, 1], [], []>} : vector<2x32xf32>, vector<32x32xf32>, vector<2x32xf32> -> vector<2x32xf32>
    %c1_55 = arith.constant 1 : index
    %c0_56 = arith.constant 0 : index
    %c0_57 = arith.constant 0 : index
    %78 = vector.load %arg5[%c1_55, %c0_56, %c0_57] : memref<2x32x32xf32, #tpu.memory_space<vmem>>, vector<1x32x32xf32>
    %79 = vector.shape_cast %78 : vector<1x32x32xf32> to vector<32x32xf32>
    %cst_58 = arith.constant dense<0.000000e+00> : vector<2x32xf32>
    %80 = tpu.matmul %58, %79, %cst_58 {dimension_numbers = #tpu.dot_dimension_numbers<[1], [0], [0], [1], [0, 0, 1, 1], [], []>} : vector<2x32xf32>, vector<32x32xf32>, vector<2x32xf32> -> vector<2x32xf32>
    %81 = arith.addf %77, %80 : vector<2x32xf32>
    %c1_59 = arith.constant 1 : index
    %c0_60 = arith.constant 0 : index
    %c0_61 = arith.constant 0 : index
    %82 = vector.load %arg8[%c1_59, %c0_60, %c0_61] : memref<2x1x32xf32, #tpu.memory_space<vmem>>, vector<1x1x32xf32>
    %83 = vector.shape_cast %82 : vector<1x1x32xf32> to vector<1x32xf32>
    %84 = vector.broadcast %83 : vector<1x32xf32> to vector<2x32xf32>
    %85 = arith.addf %81, %84 : vector<2x32xf32>
    %86 = arith.negf %85 : vector<2x32xf32>
    %87 = math.exp %86 : vector<2x32xf32>
    %cst_62 = arith.constant 1.000000e+00 : f32
    %88 = vector.broadcast %cst_62 : f32 to vector<2x32xf32>
    %89 = arith.addf %88, %87 : vector<2x32xf32>
    %90 = arith.divf %88, %89 : vector<2x32xf32>
    %c1_63 = arith.constant 1 : index
    %c0_64 = arith.constant 0 : index
    %c0_65 = arith.constant 0 : index
    %91 = vector.load %arg3[%c1_63, %c0_64, %c0_65] : memref<2x32x32xf32, #tpu.memory_space<vmem>>, vector<1x32x32xf32>
    %92 = vector.shape_cast %91 : vector<1x32x32xf32> to vector<32x32xf32>
    %cst_66 = arith.constant dense<0.000000e+00> : vector<2x32xf32>
    %93 = tpu.matmul %58, %92, %cst_66 {dimension_numbers = #tpu.dot_dimension_numbers<[1], [0], [0], [1], [0, 0, 1, 1], [], []>} : vector<2x32xf32>, vector<32x32xf32>, vector<2x32xf32> -> vector<2x32xf32>
    %c1_67 = arith.constant 1 : index
    %c0_68 = arith.constant 0 : index
    %c0_69 = arith.constant 0 : index
    %94 = vector.load %arg9[%c1_67, %c0_68, %c0_69] : memref<2x1x32xf32, #tpu.memory_space<vmem>>, vector<1x1x32xf32>
    %95 = vector.shape_cast %94 : vector<1x1x32xf32> to vector<1x32xf32>
    %96 = vector.broadcast %95 : vector<1x32xf32> to vector<2x32xf32>
    %97 = arith.addf %93, %96 : vector<2x32xf32>
    %c1_70 = arith.constant 1 : index
    %c0_71 = arith.constant 0 : index
    %c0_72 = arith.constant 0 : index
    %98 = vector.load %arg6[%c1_70, %c0_71, %c0_72] : memref<2x32x32xf32, #tpu.memory_space<vmem>>, vector<1x32x32xf32>
    %99 = vector.shape_cast %98 : vector<1x32x32xf32> to vector<32x32xf32>
    %cst_73 = arith.constant dense<0.000000e+00> : vector<2x32xf32>
    %100 = tpu.matmul %58, %99, %cst_73 {dimension_numbers = #tpu.dot_dimension_numbers<[1], [0], [0], [1], [0, 0, 1, 1], [], []>} : vector<2x32xf32>, vector<32x32xf32>, vector<2x32xf32> -> vector<2x32xf32>
    %c1_74 = arith.constant 1 : index
    %c0_75 = arith.constant 0 : index
    %c0_76 = arith.constant 0 : index
    %101 = vector.load %arg10[%c1_74, %c0_75, %c0_76] : memref<2x1x32xf32, #tpu.memory_space<vmem>>, vector<1x1x32xf32>
    %102 = vector.shape_cast %101 : vector<1x1x32xf32> to vector<1x32xf32>
    %103 = vector.broadcast %102 : vector<1x32xf32> to vector<2x32xf32>
    %104 = arith.addf %100, %103 : vector<2x32xf32>
    %105 = arith.mulf %74, %104 : vector<2x32xf32>
    %106 = arith.addf %97, %105 : vector<2x32xf32>
    %107 = math.tanh %106 : vector<2x32xf32>
    %cst_77 = arith.constant 1.000000e+00 : f32
    %108 = vector.broadcast %cst_77 : f32 to vector<2x32xf32>
    %109 = arith.subf %108, %90 : vector<2x32xf32>
    %110 = arith.mulf %109, %107 : vector<2x32xf32>
    %111 = arith.mulf %90, %58 : vector<2x32xf32>
    %112 = arith.addf %110, %111 : vector<2x32xf32>
    %c0_78 = arith.constant 0 : index
    %c0_79 = arith.constant 0 : index
    %113 = vector.load %arg14[%c0_78, %c0_79] : memref<16x32xf32, #tpu.memory_space<vmem>>, vector<2x32xf32>
    tpu.vector_store %arg14[%c0_78, %c0_79], %112 {strides = array<i32>} : memref<16x32xf32, #tpu.memory_space<vmem>>, vector<2x32xf32>,
    %114 = vector.extract_strided_slice %3 {offsets = [2, 0], sizes = [2, 32], strides = [1, 1]} : vector<16x32xf32> to vector<2x32xf32>
    %c0_80 = arith.constant 0 : index
    %c0_81 = arith.constant 0 : index
    %c0_82 = arith.constant 0 : index
    %115 = vector.load %arg4[%c0_80, %c0_81, %c0_82] : memref<2x32x32xf32, #tpu.memory_space<vmem>>, vector<1x32x32xf32>
    %116 = vector.shape_cast %115 : vector<1x32x32xf32> to vector<32x32xf32>
    %cst_83 = arith.constant dense<0.000000e+00> : vector<2x32xf32>
    %117 = tpu.matmul %112, %116, %cst_83 {dimension_numbers = #tpu.dot_dimension_numbers<[1], [0], [0], [1], [0, 0, 1, 1], [], []>} : vector<2x32xf32>, vector<32x32xf32>, vector<2x32xf32> -> vector<2x32xf32>
    %118 = arith.addf %114, %117 : vector<2x32xf32>
    %c0_84 = arith.constant 0 : index
    %c0_85 = arith.constant 0 : index
    %c0_86 = arith.constant 0 : index
    %119 = vector.load %arg7[%c0_84, %c0_85, %c0_86] : memref<2x1x32xf32, #tpu.memory_space<vmem>>, vector<1x1x32xf32>
    %120 = vector.shape_cast %119 : vector<1x1x32xf32> to vector<1x32xf32>
    %121 = vector.broadcast %120 : vector<1x32xf32> to vector<2x32xf32>
    %122 = arith.addf %118, %121 : vector<2x32xf32>
    %123 = arith.negf %122 : vector<2x32xf32>
    %124 = math.exp %123 : vector<2x32xf32>
    %cst_87 = arith.constant 1.000000e+00 : f32
    %125 = vector.broadcast %cst_87 : f32 to vector<2x32xf32>
    %126 = arith.addf %125, %124 : vector<2x32xf32>
    %127 = arith.divf %125, %126 : vector<2x32xf32>
    %128 = vector.extract_strided_slice %6 {offsets = [2, 0], sizes = [2, 32], strides = [1, 1]} : vector<16x32xf32> to vector<2x32xf32>
    %c0_88 = arith.constant 0 : index
    %c0_89 = arith.constant 0 : index
    %c0_90 = arith.constant 0 : index
    %129 = vector.load %arg5[%c0_88, %c0_89, %c0_90] : memref<2x32x32xf32, #tpu.memory_space<vmem>>, vector<1x32x32xf32>
    %130 = vector.shape_cast %129 : vector<1x32x32xf32> to vector<32x32xf32>
    %cst_91 = arith.constant dense<0.000000e+00> : vector<2x32xf32>
    %131 = tpu.matmul %112, %130, %cst_91 {dimension_numbers = #tpu.dot_dimension_numbers<[1], [0], [0], [1], [0, 0, 1, 1], [], []>} : vector<2x32xf32>, vector<32x32xf32>, vector<2x32xf32> -> vector<2x32xf32>
    %132 = arith.addf %128, %131 : vector<2x32xf32>
    %c0_92 = arith.constant 0 : index
    %c0_93 = arith.constant 0 : index
    %c0_94 = arith.constant 0 : index
    %133 = vector.load %arg8[%c0_92, %c0_93, %c0_94] : memref<2x1x32xf32, #tpu.memory_space<vmem>>, vector<1x1x32xf32>
    %134 = vector.shape_cast %133 : vector<1x1x32xf32> to vector<1x32xf32>
    %135 = vector.broadcast %134 : vector<1x32xf32> to vector<2x32xf32>
    %136 = arith.addf %132, %135 : vector<2x32xf32>
    %137 = arith.negf %136 : vector<2x32xf32>
    %138 = math.exp %137 : vector<2x32xf32>
    %cst_95 = arith.constant 1.000000e+00 : f32
    %139 = vector.broadcast %cst_95 : f32 to vector<2x32xf32>
    %140 = arith.addf %139, %138 : vector<2x32xf32>
    %141 = arith.divf %139, %140 : vector<2x32xf32>
    %142 = vector.extract_strided_slice %9 {offsets = [2, 0], sizes = [2, 32], strides = [1, 1]} : vector<16x32xf32> to vector<2x32xf32>
    %c0_96 = arith.constant 0 : index
    %c0_97 = arith.constant 0 : index
    %c0_98 = arith.constant 0 : index
    %143 = vector.load %arg9[%c0_96, %c0_97, %c0_98] : memref<2x1x32xf32, #tpu.memory_space<vmem>>, vector<1x1x32xf32>
    %144 = vector.shape_cast %143 : vector<1x1x32xf32> to vector<1x32xf32>
    %145 = vector.broadcast %144 : vector<1x32xf32> to vector<2x32xf32>
    %146 = arith.addf %142, %145 : vector<2x32xf32>
    %c0_99 = arith.constant 0 : index
    %c0_100 = arith.constant 0 : index
    %c0_101 = arith.constant 0 : index
    %147 = vector.load %arg6[%c0_99, %c0_100, %c0_101] : memref<2x32x32xf32, #tpu.memory_space<vmem>>, vector<1x32x32xf32>
    %148 = vector.shape_cast %147 : vector<1x32x32xf32> to vector<32x32xf32>
    %cst_102 = arith.constant dense<0.000000e+00> : vector<2x32xf32>
    %149 = tpu.matmul %112, %148, %cst_102 {dimension_numbers = #tpu.dot_dimension_numbers<[1], [0], [0], [1], [0, 0, 1, 1], [], []>} : vector<2x32xf32>, vector<32x32xf32>, vector<2x32xf32> -> vector<2x32xf32>
    %c0_103 = arith.constant 0 : index
    %c0_104 = arith.constant 0 : index
    %c0_105 = arith.constant 0 : index
    %150 = vector.load %arg10[%c0_103, %c0_104, %c0_105] : memref<2x1x32xf32, #tpu.memory_space<vmem>>, vector<1x1x32xf32>
    %151 = vector.shape_cast %150 : vector<1x1x32xf32> to vector<1x32xf32>
    %152 = vector.broadcast %151 : vector<1x32xf32> to vector<2x32xf32>
    %153 = arith.addf %149, %152 : vector<2x32xf32>
    %154 = arith.mulf %127, %153 : vector<2x32xf32>
    %155 = arith.addf %146, %154 : vector<2x32xf32>
    %156 = math.tanh %155 : vector<2x32xf32>
    %cst_106 = arith.constant 1.000000e+00 : f32
    %157 = vector.broadcast %cst_106 : f32 to vector<2x32xf32>
    %158 = arith.subf %157, %141 : vector<2x32xf32>
    %159 = arith.mulf %158, %156 : vector<2x32xf32>
    %160 = arith.mulf %141, %112 : vector<2x32xf32>
    %161 = arith.addf %159, %160 : vector<2x32xf32>
    %c1_107 = arith.constant 1 : index
    %c0_108 = arith.constant 0 : index
    %c0_109 = arith.constant 0 : index
    %162 = vector.load %arg1[%c1_107, %c0_108, %c0_109] : memref<2x32x32xf32, #tpu.memory_space<vmem>>, vector<1x32x32xf32>
    %163 = vector.shape_cast %162 : vector<1x32x32xf32> to vector<32x32xf32>
    %cst_110 = arith.constant dense<0.000000e+00> : vector<2x32xf32>
    %164 = tpu.matmul %161, %163, %cst_110 {dimension_numbers = #tpu.dot_dimension_numbers<[1], [0], [0], [1], [0, 0, 1, 1], [], []>} : vector<2x32xf32>, vector<32x32xf32>, vector<2x32xf32> -> vector<2x32xf32>
    %c1_111 = arith.constant 1 : index
    %c0_112 = arith.constant 0 : index
    %c0_113 = arith.constant 0 : index
    %165 = vector.load %arg4[%c1_111, %c0_112, %c0_113] : memref<2x32x32xf32, #tpu.memory_space<vmem>>, vector<1x32x32xf32>
    %166 = vector.shape_cast %165 : vector<1x32x32xf32> to vector<32x32xf32>
    %cst_114 = arith.constant dense<0.000000e+00> : vector<2x32xf32>
    %167 = tpu.matmul %161, %166, %cst_114 {dimension_numbers = #tpu.dot_dimension_numbers<[1], [0], [0], [1], [0, 0, 1, 1], [], []>} : vector<2x32xf32>, vector<32x32xf32>, vector<2x32xf32> -> vector<2x32xf32>
    %168 = arith.addf %164, %167 : vector<2x32xf32>
    %c1_115 = arith.constant 1 : index
    %c0_116 = arith.constant 0 : index
    %c0_117 = arith.constant 0 : index
    %169 = vector.load %arg7[%c1_115, %c0_116, %c0_117] : memref<2x1x32xf32, #tpu.memory_space<vmem>>, vector<1x1x32xf32>
    %170 = vector.shape_cast %169 : vector<1x1x32xf32> to vector<1x32xf32>
    %171 = vector.broadcast %170 : vector<1x32xf32> to vector<2x32xf32>
    %172 = arith.addf %168, %171 : vector<2x32xf32>
    %173 = arith.negf %172 : vector<2x32xf32>
    %174 = math.exp %173 : vector<2x32xf32>
    %cst_118 = arith.constant 1.000000e+00 : f32
    %175 = vector.broadcast %cst_118 : f32 to vector<2x32xf32>
    %176 = arith.addf %175, %174 : vector<2x32xf32>
    %177 = arith.divf %175, %176 : vector<2x32xf32>
    %c1_119 = arith.constant 1 : index
    %c0_120 = arith.constant 0 : index
    %c0_121 = arith.constant 0 : index
    %178 = vector.load %arg2[%c1_119, %c0_120, %c0_121] : memref<2x32x32xf32, #tpu.memory_space<vmem>>, vector<1x32x32xf32>
    %179 = vector.shape_cast %178 : vector<1x32x32xf32> to vector<32x32xf32>
    %cst_122 = arith.constant dense<0.000000e+00> : vector<2x32xf32>
    %180 = tpu.matmul %161, %179, %cst_122 {dimension_numbers = #tpu.dot_dimension_numbers<[1], [0], [0], [1], [0, 0, 1, 1], [], []>} : vector<2x32xf32>, vector<32x32xf32>, vector<2x32xf32> -> vector<2x32xf32>
    %c1_123 = arith.constant 1 : index
    %c0_124 = arith.constant 0 : index
    %c0_125 = arith.constant 0 : index
    %181 = vector.load %arg5[%c1_123, %c0_124, %c0_125] : memref<2x32x32xf32, #tpu.memory_space<vmem>>, vector<1x32x32xf32>
    %182 = vector.shape_cast %181 : vector<1x32x32xf32> to vector<32x32xf32>
    %cst_126 = arith.constant dense<0.000000e+00> : vector<2x32xf32>
    %183 = tpu.matmul %161, %182, %cst_126 {dimension_numbers = #tpu.dot_dimension_numbers<[1], [0], [0], [1], [0, 0, 1, 1], [], []>} : vector<2x32xf32>, vector<32x32xf32>, vector<2x32xf32> -> vector<2x32xf32>
    %184 = arith.addf %180, %183 : vector<2x32xf32>
    %c1_127 = arith.constant 1 : index
    %c0_128 = arith.constant 0 : index
    %c0_129 = arith.constant 0 : index
    %185 = vector.load %arg8[%c1_127, %c0_128, %c0_129] : memref<2x1x32xf32, #tpu.memory_space<vmem>>, vector<1x1x32xf32>
    %186 = vector.shape_cast %185 : vector<1x1x32xf32> to vector<1x32xf32>
    %187 = vector.broadcast %186 : vector<1x32xf32> to vector<2x32xf32>
    %188 = arith.addf %184, %187 : vector<2x32xf32>
    %189 = arith.negf %188 : vector<2x32xf32>
    %190 = math.exp %189 : vector<2x32xf32>
    %cst_130 = arith.constant 1.000000e+00 : f32
    %191 = vector.broadcast %cst_130 : f32 to vector<2x32xf32>
    %192 = arith.addf %191, %190 : vector<2x32xf32>
    %193 = arith.divf %191, %192 : vector<2x32xf32>
    %c1_131 = arith.constant 1 : index
    %c0_132 = arith.constant 0 : index
    %c0_133 = arith.constant 0 : index
    %194 = vector.load %arg3[%c1_131, %c0_132, %c0_133] : memref<2x32x32xf32, #tpu.memory_space<vmem>>, vector<1x32x32xf32>
    %195 = vector.shape_cast %194 : vector<1x32x32xf32> to vector<32x32xf32>
    %cst_134 = arith.constant dense<0.000000e+00> : vector<2x32xf32>
    %196 = tpu.matmul %161, %195, %cst_134 {dimension_numbers = #tpu.dot_dimension_numbers<[1], [0], [0], [1], [0, 0, 1, 1], [], []>} : vector<2x32xf32>, vector<32x32xf32>, vector<2x32xf32> -> vector<2x32xf32>
    %c1_135 = arith.constant 1 : index
    %c0_136 = arith.constant 0 : index
    %c0_137 = arith.constant 0 : index
    %197 = vector.load %arg9[%c1_135, %c0_136, %c0_137] : memref<2x1x32xf32, #tpu.memory_space<vmem>>, vector<1x1x32xf32>
    %198 = vector.shape_cast %197 : vector<1x1x32xf32> to vector<1x32xf32>
    %199 = vector.broadcast %198 : vector<1x32xf32> to vector<2x32xf32>
    %200 = arith.addf %196, %199 : vector<2x32xf32>
    %c1_138 = arith.constant 1 : index
    %c0_139 = arith.constant 0 : index
    %c0_140 = arith.constant 0 : index
    %201 = vector.load %arg6[%c1_138, %c0_139, %c0_140] : memref<2x32x32xf32, #tpu.memory_space<vmem>>, vector<1x32x32xf32>
    %202 = vector.shape_cast %201 : vector<1x32x32xf32> to vector<32x32xf32>
    %cst_141 = arith.constant dense<0.000000e+00> : vector<2x32xf32>
    %203 = tpu.matmul %161, %202, %cst_141 {dimension_numbers = #tpu.dot_dimension_numbers<[1], [0], [0], [1], [0, 0, 1, 1], [], []>} : vector<2x32xf32>, vector<32x32xf32>, vector<2x32xf32> -> vector<2x32xf32>
    %c1_142 = arith.constant 1 : index
    %c0_143 = arith.constant 0 : index
    %c0_144 = arith.constant 0 : index
    %204 = vector.load %arg10[%c1_142, %c0_143, %c0_144] : memref<2x1x32xf32, #tpu.memory_space<vmem>>, vector<1x1x32xf32>
    %205 = vector.shape_cast %204 : vector<1x1x32xf32> to vector<1x32xf32>
    %206 = vector.broadcast %205 : vector<1x32xf32> to vector<2x32xf32>
    %207 = arith.addf %203, %206 : vector<2x32xf32>
    %208 = arith.mulf %177, %207 : vector<2x32xf32>
    %209 = arith.addf %200, %208 : vector<2x32xf32>
    %210 = math.tanh %209 : vector<2x32xf32>
    %cst_145 = arith.constant 1.000000e+00 : f32
    %211 = vector.broadcast %cst_145 : f32 to vector<2x32xf32>
    %212 = arith.subf %211, %193 : vector<2x32xf32>
    %213 = arith.mulf %212, %210 : vector<2x32xf32>
    %214 = arith.mulf %193, %161 : vector<2x32xf32>
    %215 = arith.addf %213, %214 : vector<2x32xf32>
    %c2 = arith.constant 2 : index
    %c0_146 = arith.constant 0 : index
    %216 = vector.load %arg14[%c2, %c0_146] : memref<16x32xf32, #tpu.memory_space<vmem>>, vector<2x32xf32>
    tpu.vector_store %arg14[%c2, %c0_146], %215 {strides = array<i32>} : memref<16x32xf32, #tpu.memory_space<vmem>>, vector<2x32xf32>,
    %217 = vector.extract_strided_slice %3 {offsets = [4, 0], sizes = [2, 32], strides = [1, 1]} : vector<16x32xf32> to vector<2x32xf32>
    %c0_147 = arith.constant 0 : index
    %c0_148 = arith.constant 0 : index
    %c0_149 = arith.constant 0 : index
    %218 = vector.load %arg4[%c0_147, %c0_148, %c0_149] : memref<2x32x32xf32, #tpu.memory_space<vmem>>, vector<1x32x32xf32>
    %219 = vector.shape_cast %218 : vector<1x32x32xf32> to vector<32x32xf32>
    %cst_150 = arith.constant dense<0.000000e+00> : vector<2x32xf32>
    %220 = tpu.matmul %215, %219, %cst_150 {dimension_numbers = #tpu.dot_dimension_numbers<[1], [0], [0], [1], [0, 0, 1, 1], [], []>} : vector<2x32xf32>, vector<32x32xf32>, vector<2x32xf32> -> vector<2x32xf32>
    %221 = arith.addf %217, %220 : vector<2x32xf32>
    %c0_151 = arith.constant 0 : index
    %c0_152 = arith.constant 0 : index
    %c0_153 = arith.constant 0 : index
    %222 = vector.load %arg7[%c0_151, %c0_152, %c0_153] : memref<2x1x32xf32, #tpu.memory_space<vmem>>, vector<1x1x32xf32>
    %223 = vector.shape_cast %222 : vector<1x1x32xf32> to vector<1x32xf32>
    %224 = vector.broadcast %223 : vector<1x32xf32> to vector<2x32xf32>
    %225 = arith.addf %221, %224 : vector<2x32xf32>
    %226 = arith.negf %225 : vector<2x32xf32>
    %227 = math.exp %226 : vector<2x32xf32>
    %cst_154 = arith.constant 1.000000e+00 : f32
    %228 = vector.broadcast %cst_154 : f32 to vector<2x32xf32>
    %229 = arith.addf %228, %227 : vector<2x32xf32>
    %230 = arith.divf %228, %229 : vector<2x32xf32>
    %231 = vector.extract_strided_slice %6 {offsets = [4, 0], sizes = [2, 32], strides = [1, 1]} : vector<16x32xf32> to vector<2x32xf32>
    %c0_155 = arith.constant 0 : index
    %c0_156 = arith.constant 0 : index
    %c0_157 = arith.constant 0 : index
    %232 = vector.load %arg5[%c0_155, %c0_156, %c0_157] : memref<2x32x32xf32, #tpu.memory_space<vmem>>, vector<1x32x32xf32>
    %233 = vector.shape_cast %232 : vector<1x32x32xf32> to vector<32x32xf32>
    %cst_158 = arith.constant dense<0.000000e+00> : vector<2x32xf32>
    %234 = tpu.matmul %215, %233, %cst_158 {dimension_numbers = #tpu.dot_dimension_numbers<[1], [0], [0], [1], [0, 0, 1, 1], [], []>} : vector<2x32xf32>, vector<32x32xf32>, vector<2x32xf32> -> vector<2x32xf32>
    %235 = arith.addf %231, %234 : vector<2x32xf32>
    %c0_159 = arith.constant 0 : index
    %c0_160 = arith.constant 0 : index
    %c0_161 = arith.constant 0 : index
    %236 = vector.load %arg8[%c0_159, %c0_160, %c0_161] : memref<2x1x32xf32, #tpu.memory_space<vmem>>, vector<1x1x32xf32>
    %237 = vector.shape_cast %236 : vector<1x1x32xf32> to vector<1x32xf32>
    %238 = vector.broadcast %237 : vector<1x32xf32> to vector<2x32xf32>
    %239 = arith.addf %235, %238 : vector<2x32xf32>
    %240 = arith.negf %239 : vector<2x32xf32>
    %241 = math.exp %240 : vector<2x32xf32>
    %cst_162 = arith.constant 1.000000e+00 : f32
    %242 = vector.broadcast %cst_162 : f32 to vector<2x32xf32>
    %243 = arith.addf %242, %241 : vector<2x32xf32>
    %244 = arith.divf %242, %243 : vector<2x32xf32>
    %245 = vector.extract_strided_slice %9 {offsets = [4, 0], sizes = [2, 32], strides = [1, 1]} : vector<16x32xf32> to vector<2x32xf32>
    %c0_163 = arith.constant 0 : index
    %c0_164 = arith.constant 0 : index
    %c0_165 = arith.constant 0 : index
    %246 = vector.load %arg9[%c0_163, %c0_164, %c0_165] : memref<2x1x32xf32, #tpu.memory_space<vmem>>, vector<1x1x32xf32>
    %247 = vector.shape_cast %246 : vector<1x1x32xf32> to vector<1x32xf32>
    %248 = vector.broadcast %247 : vector<1x32xf32> to vector<2x32xf32>
    %249 = arith.addf %245, %248 : vector<2x32xf32>
    %c0_166 = arith.constant 0 : index
    %c0_167 = arith.constant 0 : index
    %c0_168 = arith.constant 0 : index
    %250 = vector.load %arg6[%c0_166, %c0_167, %c0_168] : memref<2x32x32xf32, #tpu.memory_space<vmem>>, vector<1x32x32xf32>
    %251 = vector.shape_cast %250 : vector<1x32x32xf32> to vector<32x32xf32>
    %cst_169 = arith.constant dense<0.000000e+00> : vector<2x32xf32>
    %252 = tpu.matmul %215, %251, %cst_169 {dimension_numbers = #tpu.dot_dimension_numbers<[1], [0], [0], [1], [0, 0, 1, 1], [], []>} : vector<2x32xf32>, vector<32x32xf32>, vector<2x32xf32> -> vector<2x32xf32>
    %c0_170 = arith.constant 0 : index
    %c0_171 = arith.constant 0 : index
    %c0_172 = arith.constant 0 : index
    %253 = vector.load %arg10[%c0_170, %c0_171, %c0_172] : memref<2x1x32xf32, #tpu.memory_space<vmem>>, vector<1x1x32xf32>
    %254 = vector.shape_cast %253 : vector<1x1x32xf32> to vector<1x32xf32>
    %255 = vector.broadcast %254 : vector<1x32xf32> to vector<2x32xf32>
    %256 = arith.addf %252, %255 : vector<2x32xf32>
    %257 = arith.mulf %230, %256 : vector<2x32xf32>
    %258 = arith.addf %249, %257 : vector<2x32xf32>
    %259 = math.tanh %258 : vector<2x32xf32>
    %cst_173 = arith.constant 1.000000e+00 : f32
    %260 = vector.broadcast %cst_173 : f32 to vector<2x32xf32>
    %261 = arith.subf %260, %244 : vector<2x32xf32>
    %262 = arith.mulf %261, %259 : vector<2x32xf32>
    %263 = arith.mulf %244, %215 : vector<2x32xf32>
    %264 = arith.addf %262, %263 : vector<2x32xf32>
    %c1_174 = arith.constant 1 : index
    %c0_175 = arith.constant 0 : index
    %c0_176 = arith.constant 0 : index
    %265 = vector.load %arg1[%c1_174, %c0_175, %c0_176] : memref<2x32x32xf32, #tpu.memory_space<vmem>>, vector<1x32x32xf32>
    %266 = vector.shape_cast %265 : vector<1x32x32xf32> to vector<32x32xf32>
    %cst_177 = arith.constant dense<0.000000e+00> : vector<2x32xf32>
    %267 = tpu.matmul %264, %266, %cst_177 {dimension_numbers = #tpu.dot_dimension_numbers<[1], [0], [0], [1], [0, 0, 1, 1], [], []>} : vector<2x32xf32>, vector<32x32xf32>, vector<2x32xf32> -> vector<2x32xf32>
    %c1_178 = arith.constant 1 : index
    %c0_179 = arith.constant 0 : index
    %c0_180 = arith.constant 0 : index
    %268 = vector.load %arg4[%c1_178, %c0_179, %c0_180] : memref<2x32x32xf32, #tpu.memory_space<vmem>>, vector<1x32x32xf32>
    %269 = vector.shape_cast %268 : vector<1x32x32xf32> to vector<32x32xf32>
    %cst_181 = arith.constant dense<0.000000e+00> : vector<2x32xf32>
    %270 = tpu.matmul %264, %269, %cst_181 {dimension_numbers = #tpu.dot_dimension_numbers<[1], [0], [0], [1], [0, 0, 1, 1], [], []>} : vector<2x32xf32>, vector<32x32xf32>, vector<2x32xf32> -> vector<2x32xf32>
    %271 = arith.addf %267, %270 : vector<2x32xf32>
    %c1_182 = arith.constant 1 : index
    %c0_183 = arith.constant 0 : index
    %c0_184 = arith.constant 0 : index
    %272 = vector.load %arg7[%c1_182, %c0_183, %c0_184] : memref<2x1x32xf32, #tpu.memory_space<vmem>>, vector<1x1x32xf32>
    %273 = vector.shape_cast %272 : vector<1x1x32xf32> to vector<1x32xf32>
    %274 = vector.broadcast %273 : vector<1x32xf32> to vector<2x32xf32>
    %275 = arith.addf %271, %274 : vector<2x32xf32>
    %276 = arith.negf %275 : vector<2x32xf32>
    %277 = math.exp %276 : vector<2x32xf32>
    %cst_185 = arith.constant 1.000000e+00 : f32
    %278 = vector.broadcast %cst_185 : f32 to vector<2x32xf32>
    %279 = arith.addf %278, %277 : vector<2x32xf32>
    %280 = arith.divf %278, %279 : vector<2x32xf32>
    %c1_186 = arith.constant 1 : index
    %c0_187 = arith.constant 0 : index
    %c0_188 = arith.constant 0 : index
    %281 = vector.load %arg2[%c1_186, %c0_187, %c0_188] : memref<2x32x32xf32, #tpu.memory_space<vmem>>, vector<1x32x32xf32>
    %282 = vector.shape_cast %281 : vector<1x32x32xf32> to vector<32x32xf32>
    %cst_189 = arith.constant dense<0.000000e+00> : vector<2x32xf32>
    %283 = tpu.matmul %264, %282, %cst_189 {dimension_numbers = #tpu.dot_dimension_numbers<[1], [0], [0], [1], [0, 0, 1, 1], [], []>} : vector<2x32xf32>, vector<32x32xf32>, vector<2x32xf32> -> vector<2x32xf32>
    %c1_190 = arith.constant 1 : index
    %c0_191 = arith.constant 0 : index
    %c0_192 = arith.constant 0 : index
    %284 = vector.load %arg5[%c1_190, %c0_191, %c0_192] : memref<2x32x32xf32, #tpu.memory_space<vmem>>, vector<1x32x32xf32>
    %285 = vector.shape_cast %284 : vector<1x32x32xf32> to vector<32x32xf32>
    %cst_193 = arith.constant dense<0.000000e+00> : vector<2x32xf32>
    %286 = tpu.matmul %264, %285, %cst_193 {dimension_numbers = #tpu.dot_dimension_numbers<[1], [0], [0], [1], [0, 0, 1, 1], [], []>} : vector<2x32xf32>, vector<32x32xf32>, vector<2x32xf32> -> vector<2x32xf32>
    %287 = arith.addf %283, %286 : vector<2x32xf32>
    %c1_194 = arith.constant 1 : index
    %c0_195 = arith.constant 0 : index
    %c0_196 = arith.constant 0 : index
    %288 = vector.load %arg8[%c1_194, %c0_195, %c0_196] : memref<2x1x32xf32, #tpu.memory_space<vmem>>, vector<1x1x32xf32>
    %289 = vector.shape_cast %288 : vector<1x1x32xf32> to vector<1x32xf32>
    %290 = vector.broadcast %289 : vector<1x32xf32> to vector<2x32xf32>
    %291 = arith.addf %287, %290 : vector<2x32xf32>
    %292 = arith.negf %291 : vector<2x32xf32>
    %293 = math.exp %292 : vector<2x32xf32>
    %cst_197 = arith.constant 1.000000e+00 : f32
    %294 = vector.broadcast %cst_197 : f32 to vector<2x32xf32>
    %295 = arith.addf %294, %293 : vector<2x32xf32>
    %296 = arith.divf %294, %295 : vector<2x32xf32>
    %c1_198 = arith.constant 1 : index
    %c0_199 = arith.constant 0 : index
    %c0_200 = arith.constant 0 : index
    %297 = vector.load %arg3[%c1_198, %c0_199, %c0_200] : memref<2x32x32xf32, #tpu.memory_space<vmem>>, vector<1x32x32xf32>
    %298 = vector.shape_cast %297 : vector<1x32x32xf32> to vector<32x32xf32>
    %cst_201 = arith.constant dense<0.000000e+00> : vector<2x32xf32>
    %299 = tpu.matmul %264, %298, %cst_201 {dimension_numbers = #tpu.dot_dimension_numbers<[1], [0], [0], [1], [0, 0, 1, 1], [], []>} : vector<2x32xf32>, vector<32x32xf32>, vector<2x32xf32> -> vector<2x32xf32>
    %c1_202 = arith.constant 1 : index
    %c0_203 = arith.constant 0 : index
    %c0_204 = arith.constant 0 : index
    %300 = vector.load %arg9[%c1_202, %c0_203, %c0_204] : memref<2x1x32xf32, #tpu.memory_space<vmem>>, vector<1x1x32xf32>
    %301 = vector.shape_cast %300 : vector<1x1x32xf32> to vector<1x32xf32>
    %302 = vector.broadcast %301 : vector<1x32xf32> to vector<2x32xf32>
    %303 = arith.addf %299, %302 : vector<2x32xf32>
    %c1_205 = arith.constant 1 : index
    %c0_206 = arith.constant 0 : index
    %c0_207 = arith.constant 0 : index
    %304 = vector.load %arg6[%c1_205, %c0_206, %c0_207] : memref<2x32x32xf32, #tpu.memory_space<vmem>>, vector<1x32x32xf32>
    %305 = vector.shape_cast %304 : vector<1x32x32xf32> to vector<32x32xf32>
    %cst_208 = arith.constant dense<0.000000e+00> : vector<2x32xf32>
    %306 = tpu.matmul %264, %305, %cst_208 {dimension_numbers = #tpu.dot_dimension_numbers<[1], [0], [0], [1], [0, 0, 1, 1], [], []>} : vector<2x32xf32>, vector<32x32xf32>, vector<2x32xf32> -> vector<2x32xf32>
    %c1_209 = arith.constant 1 : index
    %c0_210 = arith.constant 0 : index
    %c0_211 = arith.constant 0 : index
    %307 = vector.load %arg10[%c1_209, %c0_210, %c0_211] : memref<2x1x32xf32, #tpu.memory_space<vmem>>, vector<1x1x32xf32>
    %308 = vector.shape_cast %307 : vector<1x1x32xf32> to vector<1x32xf32>
    %309 = vector.broadcast %308 : vector<1x32xf32> to vector<2x32xf32>
    %310 = arith.addf %306, %309 : vector<2x32xf32>
    %311 = arith.mulf %280, %310 : vector<2x32xf32>
    %312 = arith.addf %303, %311 : vector<2x32xf32>
    %313 = math.tanh %312 : vector<2x32xf32>
    %cst_212 = arith.constant 1.000000e+00 : f32
    %314 = vector.broadcast %cst_212 : f32 to vector<2x32xf32>
    %315 = arith.subf %314, %296 : vector<2x32xf32>
    %316 = arith.mulf %315, %313 : vector<2x32xf32>
    %317 = arith.mulf %296, %264 : vector<2x32xf32>
    %318 = arith.addf %316, %317 : vector<2x32xf32>
    %c4 = arith.constant 4 : index
    %c0_213 = arith.constant 0 : index
    %319 = vector.load %arg14[%c4, %c0_213] : memref<16x32xf32, #tpu.memory_space<vmem>>, vector<2x32xf32>
    tpu.vector_store %arg14[%c4, %c0_213], %318 {strides = array<i32>} : memref<16x32xf32, #tpu.memory_space<vmem>>, vector<2x32xf32>,
    %320 = vector.extract_strided_slice %3 {offsets = [6, 0], sizes = [2, 32], strides = [1, 1]} : vector<16x32xf32> to vector<2x32xf32>
    %c0_214 = arith.constant 0 : index
    %c0_215 = arith.constant 0 : index
    %c0_216 = arith.constant 0 : index
    %321 = vector.load %arg4[%c0_214, %c0_215, %c0_216] : memref<2x32x32xf32, #tpu.memory_space<vmem>>, vector<1x32x32xf32>
    %322 = vector.shape_cast %321 : vector<1x32x32xf32> to vector<32x32xf32>
    %cst_217 = arith.constant dense<0.000000e+00> : vector<2x32xf32>
    %323 = tpu.matmul %318, %322, %cst_217 {dimension_numbers = #tpu.dot_dimension_numbers<[1], [0], [0], [1], [0, 0, 1, 1], [], []>} : vector<2x32xf32>, vector<32x32xf32>, vector<2x32xf32> -> vector<2x32xf32>
    %324 = arith.addf %320, %323 : vector<2x32xf32>
    %c0_218 = arith.constant 0 : index
    %c0_219 = arith.constant 0 : index
    %c0_220 = arith.constant 0 : index
    %325 = vector.load %arg7[%c0_218, %c0_219, %c0_220] : memref<2x1x32xf32, #tpu.memory_space<vmem>>, vector<1x1x32xf32>
    %326 = vector.shape_cast %325 : vector<1x1x32xf32> to vector<1x32xf32>
    %327 = vector.broadcast %326 : vector<1x32xf32> to vector<2x32xf32>
    %328 = arith.addf %324, %327 : vector<2x32xf32>
    %329 = arith.negf %328 : vector<2x32xf32>
    %330 = math.exp %329 : vector<2x32xf32>
    %cst_221 = arith.constant 1.000000e+00 : f32
    %331 = vector.broadcast %cst_221 : f32 to vector<2x32xf32>
    %332 = arith.addf %331, %330 : vector<2x32xf32>
    %333 = arith.divf %331, %332 : vector<2x32xf32>
    %334 = vector.extract_strided_slice %6 {offsets = [6, 0], sizes = [2, 32], strides = [1, 1]} : vector<16x32xf32> to vector<2x32xf32>
    %c0_222 = arith.constant 0 : index
    %c0_223 = arith.constant 0 : index
    %c0_224 = arith.constant 0 : index
    %335 = vector.load %arg5[%c0_222, %c0_223, %c0_224] : memref<2x32x32xf32, #tpu.memory_space<vmem>>, vector<1x32x32xf32>
    %336 = vector.shape_cast %335 : vector<1x32x32xf32> to vector<32x32xf32>
    %cst_225 = arith.constant dense<0.000000e+00> : vector<2x32xf32>
    %337 = tpu.matmul %318, %336, %cst_225 {dimension_numbers = #tpu.dot_dimension_numbers<[1], [0], [0], [1], [0, 0, 1, 1], [], []>} : vector<2x32xf32>, vector<32x32xf32>, vector<2x32xf32> -> vector<2x32xf32>
    %338 = arith.addf %334, %337 : vector<2x32xf32>
    %c0_226 = arith.constant 0 : index
    %c0_227 = arith.constant 0 : index
    %c0_228 = arith.constant 0 : index
    %339 = vector.load %arg8[%c0_226, %c0_227, %c0_228] : memref<2x1x32xf32, #tpu.memory_space<vmem>>, vector<1x1x32xf32>
    %340 = vector.shape_cast %339 : vector<1x1x32xf32> to vector<1x32xf32>
    %341 = vector.broadcast %340 : vector<1x32xf32> to vector<2x32xf32>
    %342 = arith.addf %338, %341 : vector<2x32xf32>
    %343 = arith.negf %342 : vector<2x32xf32>
    %344 = math.exp %343 : vector<2x32xf32>
    %cst_229 = arith.constant 1.000000e+00 : f32
    %345 = vector.broadcast %cst_229 : f32 to vector<2x32xf32>
    %346 = arith.addf %345, %344 : vector<2x32xf32>
    %347 = arith.divf %345, %346 : vector<2x32xf32>
    %348 = vector.extract_strided_slice %9 {offsets = [6, 0], sizes = [2, 32], strides = [1, 1]} : vector<16x32xf32> to vector<2x32xf32>
    %c0_230 = arith.constant 0 : index
    %c0_231 = arith.constant 0 : index
    %c0_232 = arith.constant 0 : index
    %349 = vector.load %arg9[%c0_230, %c0_231, %c0_232] : memref<2x1x32xf32, #tpu.memory_space<vmem>>, vector<1x1x32xf32>
    %350 = vector.shape_cast %349 : vector<1x1x32xf32> to vector<1x32xf32>
    %351 = vector.broadcast %350 : vector<1x32xf32> to vector<2x32xf32>
    %352 = arith.addf %348, %351 : vector<2x32xf32>
    %c0_233 = arith.constant 0 : index
    %c0_234 = arith.constant 0 : index
    %c0_235 = arith.constant 0 : index
    %353 = vector.load %arg6[%c0_233, %c0_234, %c0_235] : memref<2x32x32xf32, #tpu.memory_space<vmem>>, vector<1x32x32xf32>
    %354 = vector.shape_cast %353 : vector<1x32x32xf32> to vector<32x32xf32>
    %cst_236 = arith.constant dense<0.000000e+00> : vector<2x32xf32>
    %355 = tpu.matmul %318, %354, %cst_236 {dimension_numbers = #tpu.dot_dimension_numbers<[1], [0], [0], [1], [0, 0, 1, 1], [], []>} : vector<2x32xf32>, vector<32x32xf32>, vector<2x32xf32> -> vector<2x32xf32>
    %c0_237 = arith.constant 0 : index
    %c0_238 = arith.constant 0 : index
    %c0_239 = arith.constant 0 : index
    %356 = vector.load %arg10[%c0_237, %c0_238, %c0_239] : memref<2x1x32xf32, #tpu.memory_space<vmem>>, vector<1x1x32xf32>
    %357 = vector.shape_cast %356 : vector<1x1x32xf32> to vector<1x32xf32>
    %358 = vector.broadcast %357 : vector<1x32xf32> to vector<2x32xf32>
    %359 = arith.addf %355, %358 : vector<2x32xf32>
    %360 = arith.mulf %333, %359 : vector<2x32xf32>
    %361 = arith.addf %352, %360 : vector<2x32xf32>
    %362 = math.tanh %361 : vector<2x32xf32>
    %cst_240 = arith.constant 1.000000e+00 : f32
    %363 = vector.broadcast %cst_240 : f32 to vector<2x32xf32>
    %364 = arith.subf %363, %347 : vector<2x32xf32>
    %365 = arith.mulf %364, %362 : vector<2x32xf32>
    %366 = arith.mulf %347, %318 : vector<2x32xf32>
    %367 = arith.addf %365, %366 : vector<2x32xf32>
    %c1_241 = arith.constant 1 : index
    %c0_242 = arith.constant 0 : index
    %c0_243 = arith.constant 0 : index
    %368 = vector.load %arg1[%c1_241, %c0_242, %c0_243] : memref<2x32x32xf32, #tpu.memory_space<vmem>>, vector<1x32x32xf32>
    %369 = vector.shape_cast %368 : vector<1x32x32xf32> to vector<32x32xf32>
    %cst_244 = arith.constant dense<0.000000e+00> : vector<2x32xf32>
    %370 = tpu.matmul %367, %369, %cst_244 {dimension_numbers = #tpu.dot_dimension_numbers<[1], [0], [0], [1], [0, 0, 1, 1], [], []>} : vector<2x32xf32>, vector<32x32xf32>, vector<2x32xf32> -> vector<2x32xf32>
    %c1_245 = arith.constant 1 : index
    %c0_246 = arith.constant 0 : index
    %c0_247 = arith.constant 0 : index
    %371 = vector.load %arg4[%c1_245, %c0_246, %c0_247] : memref<2x32x32xf32, #tpu.memory_space<vmem>>, vector<1x32x32xf32>
    %372 = vector.shape_cast %371 : vector<1x32x32xf32> to vector<32x32xf32>
    %cst_248 = arith.constant dense<0.000000e+00> : vector<2x32xf32>
    %373 = tpu.matmul %367, %372, %cst_248 {dimension_numbers = #tpu.dot_dimension_numbers<[1], [0], [0], [1], [0, 0, 1, 1], [], []>} : vector<2x32xf32>, vector<32x32xf32>, vector<2x32xf32> -> vector<2x32xf32>
    %374 = arith.addf %370, %373 : vector<2x32xf32>
    %c1_249 = arith.constant 1 : index
    %c0_250 = arith.constant 0 : index
    %c0_251 = arith.constant 0 : index
    %375 = vector.load %arg7[%c1_249, %c0_250, %c0_251] : memref<2x1x32xf32, #tpu.memory_space<vmem>>, vector<1x1x32xf32>
    %376 = vector.shape_cast %375 : vector<1x1x32xf32> to vector<1x32xf32>
    %377 = vector.broadcast %376 : vector<1x32xf32> to vector<2x32xf32>
    %378 = arith.addf %374, %377 : vector<2x32xf32>
    %379 = arith.negf %378 : vector<2x32xf32>
    %380 = math.exp %379 : vector<2x32xf32>
    %cst_252 = arith.constant 1.000000e+00 : f32
    %381 = vector.broadcast %cst_252 : f32 to vector<2x32xf32>
    %382 = arith.addf %381, %380 : vector<2x32xf32>
    %383 = arith.divf %381, %382 : vector<2x32xf32>
    %c1_253 = arith.constant 1 : index
    %c0_254 = arith.constant 0 : index
    %c0_255 = arith.constant 0 : index
    %384 = vector.load %arg2[%c1_253, %c0_254, %c0_255] : memref<2x32x32xf32, #tpu.memory_space<vmem>>, vector<1x32x32xf32>
    %385 = vector.shape_cast %384 : vector<1x32x32xf32> to vector<32x32xf32>
    %cst_256 = arith.constant dense<0.000000e+00> : vector<2x32xf32>
    %386 = tpu.matmul %367, %385, %cst_256 {dimension_numbers = #tpu.dot_dimension_numbers<[1], [0], [0], [1], [0, 0, 1, 1], [], []>} : vector<2x32xf32>, vector<32x32xf32>, vector<2x32xf32> -> vector<2x32xf32>
    %c1_257 = arith.constant 1 : index
    %c0_258 = arith.constant 0 : index
    %c0_259 = arith.constant 0 : index
    %387 = vector.load %arg5[%c1_257, %c0_258, %c0_259] : memref<2x32x32xf32, #tpu.memory_space<vmem>>, vector<1x32x32xf32>
    %388 = vector.shape_cast %387 : vector<1x32x32xf32> to vector<32x32xf32>
    %cst_260 = arith.constant dense<0.000000e+00> : vector<2x32xf32>
    %389 = tpu.matmul %367, %388, %cst_260 {dimension_numbers = #tpu.dot_dimension_numbers<[1], [0], [0], [1], [0, 0, 1, 1], [], []>} : vector<2x32xf32>, vector<32x32xf32>, vector<2x32xf32> -> vector<2x32xf32>
    %390 = arith.addf %386, %389 : vector<2x32xf32>
    %c1_261 = arith.constant 1 : index
    %c0_262 = arith.constant 0 : index
    %c0_263 = arith.constant 0 : index
    %391 = vector.load %arg8[%c1_261, %c0_262, %c0_263] : memref<2x1x32xf32, #tpu.memory_space<vmem>>, vector<1x1x32xf32>
    %392 = vector.shape_cast %391 : vector<1x1x32xf32> to vector<1x32xf32>
    %393 = vector.broadcast %392 : vector<1x32xf32> to vector<2x32xf32>
    %394 = arith.addf %390, %393 : vector<2x32xf32>
    %395 = arith.negf %394 : vector<2x32xf32>
    %396 = math.exp %395 : vector<2x32xf32>
    %cst_264 = arith.constant 1.000000e+00 : f32
    %397 = vector.broadcast %cst_264 : f32 to vector<2x32xf32>
    %398 = arith.addf %397, %396 : vector<2x32xf32>
    %399 = arith.divf %397, %398 : vector<2x32xf32>
    %c1_265 = arith.constant 1 : index
    %c0_266 = arith.constant 0 : index
    %c0_267 = arith.constant 0 : index
    %400 = vector.load %arg3[%c1_265, %c0_266, %c0_267] : memref<2x32x32xf32, #tpu.memory_space<vmem>>, vector<1x32x32xf32>
    %401 = vector.shape_cast %400 : vector<1x32x32xf32> to vector<32x32xf32>
    %cst_268 = arith.constant dense<0.000000e+00> : vector<2x32xf32>
    %402 = tpu.matmul %367, %401, %cst_268 {dimension_numbers = #tpu.dot_dimension_numbers<[1], [0], [0], [1], [0, 0, 1, 1], [], []>} : vector<2x32xf32>, vector<32x32xf32>, vector<2x32xf32> -> vector<2x32xf32>
    %c1_269 = arith.constant 1 : index
    %c0_270 = arith.constant 0 : index
    %c0_271 = arith.constant 0 : index
    %403 = vector.load %arg9[%c1_269, %c0_270, %c0_271] : memref<2x1x32xf32, #tpu.memory_space<vmem>>, vector<1x1x32xf32>
    %404 = vector.shape_cast %403 : vector<1x1x32xf32> to vector<1x32xf32>
    %405 = vector.broadcast %404 : vector<1x32xf32> to vector<2x32xf32>
    %406 = arith.addf %402, %405 : vector<2x32xf32>
    %c1_272 = arith.constant 1 : index
    %c0_273 = arith.constant 0 : index
    %c0_274 = arith.constant 0 : index
    %407 = vector.load %arg6[%c1_272, %c0_273, %c0_274] : memref<2x32x32xf32, #tpu.memory_space<vmem>>, vector<1x32x32xf32>
    %408 = vector.shape_cast %407 : vector<1x32x32xf32> to vector<32x32xf32>
    %cst_275 = arith.constant dense<0.000000e+00> : vector<2x32xf32>
    %409 = tpu.matmul %367, %408, %cst_275 {dimension_numbers = #tpu.dot_dimension_numbers<[1], [0], [0], [1], [0, 0, 1, 1], [], []>} : vector<2x32xf32>, vector<32x32xf32>, vector<2x32xf32> -> vector<2x32xf32>
    %c1_276 = arith.constant 1 : index
    %c0_277 = arith.constant 0 : index
    %c0_278 = arith.constant 0 : index
    %410 = vector.load %arg10[%c1_276, %c0_277, %c0_278] : memref<2x1x32xf32, #tpu.memory_space<vmem>>, vector<1x1x32xf32>
    %411 = vector.shape_cast %410 : vector<1x1x32xf32> to vector<1x32xf32>
    %412 = vector.broadcast %411 : vector<1x32xf32> to vector<2x32xf32>
    %413 = arith.addf %409, %412 : vector<2x32xf32>
    %414 = arith.mulf %383, %413 : vector<2x32xf32>
    %415 = arith.addf %406, %414 : vector<2x32xf32>
    %416 = math.tanh %415 : vector<2x32xf32>
    %cst_279 = arith.constant 1.000000e+00 : f32
    %417 = vector.broadcast %cst_279 : f32 to vector<2x32xf32>
    %418 = arith.subf %417, %399 : vector<2x32xf32>
    %419 = arith.mulf %418, %416 : vector<2x32xf32>
    %420 = arith.mulf %399, %367 : vector<2x32xf32>
    %421 = arith.addf %419, %420 : vector<2x32xf32>
    %c6 = arith.constant 6 : index
    %c0_280 = arith.constant 0 : index
    %422 = vector.load %arg14[%c6, %c0_280] : memref<16x32xf32, #tpu.memory_space<vmem>>, vector<2x32xf32>
    tpu.vector_store %arg14[%c6, %c0_280], %421 {strides = array<i32>} : memref<16x32xf32, #tpu.memory_space<vmem>>, vector<2x32xf32>,
    %423 = vector.extract_strided_slice %3 {offsets = [8, 0], sizes = [2, 32], strides = [1, 1]} : vector<16x32xf32> to vector<2x32xf32>
    %c0_281 = arith.constant 0 : index
    %c0_282 = arith.constant 0 : index
    %c0_283 = arith.constant 0 : index
    %424 = vector.load %arg4[%c0_281, %c0_282, %c0_283] : memref<2x32x32xf32, #tpu.memory_space<vmem>>, vector<1x32x32xf32>
    %425 = vector.shape_cast %424 : vector<1x32x32xf32> to vector<32x32xf32>
    %cst_284 = arith.constant dense<0.000000e+00> : vector<2x32xf32>
    %426 = tpu.matmul %421, %425, %cst_284 {dimension_numbers = #tpu.dot_dimension_numbers<[1], [0], [0], [1], [0, 0, 1, 1], [], []>} : vector<2x32xf32>, vector<32x32xf32>, vector<2x32xf32> -> vector<2x32xf32>
    %427 = arith.addf %423, %426 : vector<2x32xf32>
    %c0_285 = arith.constant 0 : index
    %c0_286 = arith.constant 0 : index
    %c0_287 = arith.constant 0 : index
    %428 = vector.load %arg7[%c0_285, %c0_286, %c0_287] : memref<2x1x32xf32, #tpu.memory_space<vmem>>, vector<1x1x32xf32>
    %429 = vector.shape_cast %428 : vector<1x1x32xf32> to vector<1x32xf32>
    %430 = vector.broadcast %429 : vector<1x32xf32> to vector<2x32xf32>
    %431 = arith.addf %427, %430 : vector<2x32xf32>
    %432 = arith.negf %431 : vector<2x32xf32>
    %433 = math.exp %432 : vector<2x32xf32>
    %cst_288 = arith.constant 1.000000e+00 : f32
    %434 = vector.broadcast %cst_288 : f32 to vector<2x32xf32>
    %435 = arith.addf %434, %433 : vector<2x32xf32>
    %436 = arith.divf %434, %435 : vector<2x32xf32>
    %437 = vector.extract_strided_slice %6 {offsets = [8, 0], sizes = [2, 32], strides = [1, 1]} : vector<16x32xf32> to vector<2x32xf32>
    %c0_289 = arith.constant 0 : index
    %c0_290 = arith.constant 0 : index
    %c0_291 = arith.constant 0 : index
    %438 = vector.load %arg5[%c0_289, %c0_290, %c0_291] : memref<2x32x32xf32, #tpu.memory_space<vmem>>, vector<1x32x32xf32>
    %439 = vector.shape_cast %438 : vector<1x32x32xf32> to vector<32x32xf32>
    %cst_292 = arith.constant dense<0.000000e+00> : vector<2x32xf32>
    %440 = tpu.matmul %421, %439, %cst_292 {dimension_numbers = #tpu.dot_dimension_numbers<[1], [0], [0], [1], [0, 0, 1, 1], [], []>} : vector<2x32xf32>, vector<32x32xf32>, vector<2x32xf32> -> vector<2x32xf32>
    %441 = arith.addf %437, %440 : vector<2x32xf32>
    %c0_293 = arith.constant 0 : index
    %c0_294 = arith.constant 0 : index
    %c0_295 = arith.constant 0 : index
    %442 = vector.load %arg8[%c0_293, %c0_294, %c0_295] : memref<2x1x32xf32, #tpu.memory_space<vmem>>, vector<1x1x32xf32>
    %443 = vector.shape_cast %442 : vector<1x1x32xf32> to vector<1x32xf32>
    %444 = vector.broadcast %443 : vector<1x32xf32> to vector<2x32xf32>
    %445 = arith.addf %441, %444 : vector<2x32xf32>
    %446 = arith.negf %445 : vector<2x32xf32>
    %447 = math.exp %446 : vector<2x32xf32>
    %cst_296 = arith.constant 1.000000e+00 : f32
    %448 = vector.broadcast %cst_296 : f32 to vector<2x32xf32>
    %449 = arith.addf %448, %447 : vector<2x32xf32>
    %450 = arith.divf %448, %449 : vector<2x32xf32>
    %451 = vector.extract_strided_slice %9 {offsets = [8, 0], sizes = [2, 32], strides = [1, 1]} : vector<16x32xf32> to vector<2x32xf32>
    %c0_297 = arith.constant 0 : index
    %c0_298 = arith.constant 0 : index
    %c0_299 = arith.constant 0 : index
    %452 = vector.load %arg9[%c0_297, %c0_298, %c0_299] : memref<2x1x32xf32, #tpu.memory_space<vmem>>, vector<1x1x32xf32>
    %453 = vector.shape_cast %452 : vector<1x1x32xf32> to vector<1x32xf32>
    %454 = vector.broadcast %453 : vector<1x32xf32> to vector<2x32xf32>
    %455 = arith.addf %451, %454 : vector<2x32xf32>
    %c0_300 = arith.constant 0 : index
    %c0_301 = arith.constant 0 : index
    %c0_302 = arith.constant 0 : index
    %456 = vector.load %arg6[%c0_300, %c0_301, %c0_302] : memref<2x32x32xf32, #tpu.memory_space<vmem>>, vector<1x32x32xf32>
    %457 = vector.shape_cast %456 : vector<1x32x32xf32> to vector<32x32xf32>
    %cst_303 = arith.constant dense<0.000000e+00> : vector<2x32xf32>
    %458 = tpu.matmul %421, %457, %cst_303 {dimension_numbers = #tpu.dot_dimension_numbers<[1], [0], [0], [1], [0, 0, 1, 1], [], []>} : vector<2x32xf32>, vector<32x32xf32>, vector<2x32xf32> -> vector<2x32xf32>
    %c0_304 = arith.constant 0 : index
    %c0_305 = arith.constant 0 : index
    %c0_306 = arith.constant 0 : index
    %459 = vector.load %arg10[%c0_304, %c0_305, %c0_306] : memref<2x1x32xf32, #tpu.memory_space<vmem>>, vector<1x1x32xf32>
    %460 = vector.shape_cast %459 : vector<1x1x32xf32> to vector<1x32xf32>
    %461 = vector.broadcast %460 : vector<1x32xf32> to vector<2x32xf32>
    %462 = arith.addf %458, %461 : vector<2x32xf32>
    %463 = arith.mulf %436, %462 : vector<2x32xf32>
    %464 = arith.addf %455, %463 : vector<2x32xf32>
    %465 = math.tanh %464 : vector<2x32xf32>
    %cst_307 = arith.constant 1.000000e+00 : f32
    %466 = vector.broadcast %cst_307 : f32 to vector<2x32xf32>
    %467 = arith.subf %466, %450 : vector<2x32xf32>
    %468 = arith.mulf %467, %465 : vector<2x32xf32>
    %469 = arith.mulf %450, %421 : vector<2x32xf32>
    %470 = arith.addf %468, %469 : vector<2x32xf32>
    %c1_308 = arith.constant 1 : index
    %c0_309 = arith.constant 0 : index
    %c0_310 = arith.constant 0 : index
    %471 = vector.load %arg1[%c1_308, %c0_309, %c0_310] : memref<2x32x32xf32, #tpu.memory_space<vmem>>, vector<1x32x32xf32>
    %472 = vector.shape_cast %471 : vector<1x32x32xf32> to vector<32x32xf32>
    %cst_311 = arith.constant dense<0.000000e+00> : vector<2x32xf32>
    %473 = tpu.matmul %470, %472, %cst_311 {dimension_numbers = #tpu.dot_dimension_numbers<[1], [0], [0], [1], [0, 0, 1, 1], [], []>} : vector<2x32xf32>, vector<32x32xf32>, vector<2x32xf32> -> vector<2x32xf32>
    %c1_312 = arith.constant 1 : index
    %c0_313 = arith.constant 0 : index
    %c0_314 = arith.constant 0 : index
    %474 = vector.load %arg4[%c1_312, %c0_313, %c0_314] : memref<2x32x32xf32, #tpu.memory_space<vmem>>, vector<1x32x32xf32>
    %475 = vector.shape_cast %474 : vector<1x32x32xf32> to vector<32x32xf32>
    %cst_315 = arith.constant dense<0.000000e+00> : vector<2x32xf32>
    %476 = tpu.matmul %470, %475, %cst_315 {dimension_numbers = #tpu.dot_dimension_numbers<[1], [0], [0], [1], [0, 0, 1, 1], [], []>} : vector<2x32xf32>, vector<32x32xf32>, vector<2x32xf32> -> vector<2x32xf32>
    %477 = arith.addf %473, %476 : vector<2x32xf32>
    %c1_316 = arith.constant 1 : index
    %c0_317 = arith.constant 0 : index
    %c0_318 = arith.constant 0 : index
    %478 = vector.load %arg7[%c1_316, %c0_317, %c0_318] : memref<2x1x32xf32, #tpu.memory_space<vmem>>, vector<1x1x32xf32>
    %479 = vector.shape_cast %478 : vector<1x1x32xf32> to vector<1x32xf32>
    %480 = vector.broadcast %479 : vector<1x32xf32> to vector<2x32xf32>
    %481 = arith.addf %477, %480 : vector<2x32xf32>
    %482 = arith.negf %481 : vector<2x32xf32>
    %483 = math.exp %482 : vector<2x32xf32>
    %cst_319 = arith.constant 1.000000e+00 : f32
    %484 = vector.broadcast %cst_319 : f32 to vector<2x32xf32>
    %485 = arith.addf %484, %483 : vector<2x32xf32>
    %486 = arith.divf %484, %485 : vector<2x32xf32>
    %c1_320 = arith.constant 1 : index
    %c0_321 = arith.constant 0 : index
    %c0_322 = arith.constant 0 : index
    %487 = vector.load %arg2[%c1_320, %c0_321, %c0_322] : memref<2x32x32xf32, #tpu.memory_space<vmem>>, vector<1x32x32xf32>
    %488 = vector.shape_cast %487 : vector<1x32x32xf32> to vector<32x32xf32>
    %cst_323 = arith.constant dense<0.000000e+00> : vector<2x32xf32>
    %489 = tpu.matmul %470, %488, %cst_323 {dimension_numbers = #tpu.dot_dimension_numbers<[1], [0], [0], [1], [0, 0, 1, 1], [], []>} : vector<2x32xf32>, vector<32x32xf32>, vector<2x32xf32> -> vector<2x32xf32>
    %c1_324 = arith.constant 1 : index
    %c0_325 = arith.constant 0 : index
    %c0_326 = arith.constant 0 : index
    %490 = vector.load %arg5[%c1_324, %c0_325, %c0_326] : memref<2x32x32xf32, #tpu.memory_space<vmem>>, vector<1x32x32xf32>
    %491 = vector.shape_cast %490 : vector<1x32x32xf32> to vector<32x32xf32>
    %cst_327 = arith.constant dense<0.000000e+00> : vector<2x32xf32>
    %492 = tpu.matmul %470, %491, %cst_327 {dimension_numbers = #tpu.dot_dimension_numbers<[1], [0], [0], [1], [0, 0, 1, 1], [], []>} : vector<2x32xf32>, vector<32x32xf32>, vector<2x32xf32> -> vector<2x32xf32>
    %493 = arith.addf %489, %492 : vector<2x32xf32>
    %c1_328 = arith.constant 1 : index
    %c0_329 = arith.constant 0 : index
    %c0_330 = arith.constant 0 : index
    %494 = vector.load %arg8[%c1_328, %c0_329, %c0_330] : memref<2x1x32xf32, #tpu.memory_space<vmem>>, vector<1x1x32xf32>
    %495 = vector.shape_cast %494 : vector<1x1x32xf32> to vector<1x32xf32>
    %496 = vector.broadcast %495 : vector<1x32xf32> to vector<2x32xf32>
    %497 = arith.addf %493, %496 : vector<2x32xf32>
    %498 = arith.negf %497 : vector<2x32xf32>
    %499 = math.exp %498 : vector<2x32xf32>
    %cst_331 = arith.constant 1.000000e+00 : f32
    %500 = vector.broadcast %cst_331 : f32 to vector<2x32xf32>
    %501 = arith.addf %500, %499 : vector<2x32xf32>
    %502 = arith.divf %500, %501 : vector<2x32xf32>
    %c1_332 = arith.constant 1 : index
    %c0_333 = arith.constant 0 : index
    %c0_334 = arith.constant 0 : index
    %503 = vector.load %arg3[%c1_332, %c0_333, %c0_334] : memref<2x32x32xf32, #tpu.memory_space<vmem>>, vector<1x32x32xf32>
    %504 = vector.shape_cast %503 : vector<1x32x32xf32> to vector<32x32xf32>
    %cst_335 = arith.constant dense<0.000000e+00> : vector<2x32xf32>
    %505 = tpu.matmul %470, %504, %cst_335 {dimension_numbers = #tpu.dot_dimension_numbers<[1], [0], [0], [1], [0, 0, 1, 1], [], []>} : vector<2x32xf32>, vector<32x32xf32>, vector<2x32xf32> -> vector<2x32xf32>
    %c1_336 = arith.constant 1 : index
    %c0_337 = arith.constant 0 : index
    %c0_338 = arith.constant 0 : index
    %506 = vector.load %arg9[%c1_336, %c0_337, %c0_338] : memref<2x1x32xf32, #tpu.memory_space<vmem>>, vector<1x1x32xf32>
    %507 = vector.shape_cast %506 : vector<1x1x32xf32> to vector<1x32xf32>
    %508 = vector.broadcast %507 : vector<1x32xf32> to vector<2x32xf32>
    %509 = arith.addf %505, %508 : vector<2x32xf32>
    %c1_339 = arith.constant 1 : index
    %c0_340 = arith.constant 0 : index
    %c0_341 = arith.constant 0 : index
    %510 = vector.load %arg6[%c1_339, %c0_340, %c0_341] : memref<2x32x32xf32, #tpu.memory_space<vmem>>, vector<1x32x32xf32>
    %511 = vector.shape_cast %510 : vector<1x32x32xf32> to vector<32x32xf32>
    %cst_342 = arith.constant dense<0.000000e+00> : vector<2x32xf32>
    %512 = tpu.matmul %470, %511, %cst_342 {dimension_numbers = #tpu.dot_dimension_numbers<[1], [0], [0], [1], [0, 0, 1, 1], [], []>} : vector<2x32xf32>, vector<32x32xf32>, vector<2x32xf32> -> vector<2x32xf32>
    %c1_343 = arith.constant 1 : index
    %c0_344 = arith.constant 0 : index
    %c0_345 = arith.constant 0 : index
    %513 = vector.load %arg10[%c1_343, %c0_344, %c0_345] : memref<2x1x32xf32, #tpu.memory_space<vmem>>, vector<1x1x32xf32>
    %514 = vector.shape_cast %513 : vector<1x1x32xf32> to vector<1x32xf32>
    %515 = vector.broadcast %514 : vector<1x32xf32> to vector<2x32xf32>
    %516 = arith.addf %512, %515 : vector<2x32xf32>
    %517 = arith.mulf %486, %516 : vector<2x32xf32>
    %518 = arith.addf %509, %517 : vector<2x32xf32>
    %519 = math.tanh %518 : vector<2x32xf32>
    %cst_346 = arith.constant 1.000000e+00 : f32
    %520 = vector.broadcast %cst_346 : f32 to vector<2x32xf32>
    %521 = arith.subf %520, %502 : vector<2x32xf32>
    %522 = arith.mulf %521, %519 : vector<2x32xf32>
    %523 = arith.mulf %502, %470 : vector<2x32xf32>
    %524 = arith.addf %522, %523 : vector<2x32xf32>
    %c8 = arith.constant 8 : index
    %c0_347 = arith.constant 0 : index
    %525 = vector.load %arg14[%c8, %c0_347] : memref<16x32xf32, #tpu.memory_space<vmem>>, vector<2x32xf32>
    tpu.vector_store %arg14[%c8, %c0_347], %524 {strides = array<i32>} : memref<16x32xf32, #tpu.memory_space<vmem>>, vector<2x32xf32>,
    %526 = vector.extract_strided_slice %3 {offsets = [10, 0], sizes = [2, 32], strides = [1, 1]} : vector<16x32xf32> to vector<2x32xf32>
    %c0_348 = arith.constant 0 : index
    %c0_349 = arith.constant 0 : index
    %c0_350 = arith.constant 0 : index
    %527 = vector.load %arg4[%c0_348, %c0_349, %c0_350] : memref<2x32x32xf32, #tpu.memory_space<vmem>>, vector<1x32x32xf32>
    %528 = vector.shape_cast %527 : vector<1x32x32xf32> to vector<32x32xf32>
    %cst_351 = arith.constant dense<0.000000e+00> : vector<2x32xf32>
    %529 = tpu.matmul %524, %528, %cst_351 {dimension_numbers = #tpu.dot_dimension_numbers<[1], [0], [0], [1], [0, 0, 1, 1], [], []>} : vector<2x32xf32>, vector<32x32xf32>, vector<2x32xf32> -> vector<2x32xf32>
    %530 = arith.addf %526, %529 : vector<2x32xf32>
    %c0_352 = arith.constant 0 : index
    %c0_353 = arith.constant 0 : index
    %c0_354 = arith.constant 0 : index
    %531 = vector.load %arg7[%c0_352, %c0_353, %c0_354] : memref<2x1x32xf32, #tpu.memory_space<vmem>>, vector<1x1x32xf32>
    %532 = vector.shape_cast %531 : vector<1x1x32xf32> to vector<1x32xf32>
    %533 = vector.broadcast %532 : vector<1x32xf32> to vector<2x32xf32>
    %534 = arith.addf %530, %533 : vector<2x32xf32>
    %535 = arith.negf %534 : vector<2x32xf32>
    %536 = math.exp %535 : vector<2x32xf32>
    %cst_355 = arith.constant 1.000000e+00 : f32
    %537 = vector.broadcast %cst_355 : f32 to vector<2x32xf32>
    %538 = arith.addf %537, %536 : vector<2x32xf32>
    %539 = arith.divf %537, %538 : vector<2x32xf32>
    %540 = vector.extract_strided_slice %6 {offsets = [10, 0], sizes = [2, 32], strides = [1, 1]} : vector<16x32xf32> to vector<2x32xf32>
    %c0_356 = arith.constant 0 : index
    %c0_357 = arith.constant 0 : index
    %c0_358 = arith.constant 0 : index
    %541 = vector.load %arg5[%c0_356, %c0_357, %c0_358] : memref<2x32x32xf32, #tpu.memory_space<vmem>>, vector<1x32x32xf32>
    %542 = vector.shape_cast %541 : vector<1x32x32xf32> to vector<32x32xf32>
    %cst_359 = arith.constant dense<0.000000e+00> : vector<2x32xf32>
    %543 = tpu.matmul %524, %542, %cst_359 {dimension_numbers = #tpu.dot_dimension_numbers<[1], [0], [0], [1], [0, 0, 1, 1], [], []>} : vector<2x32xf32>, vector<32x32xf32>, vector<2x32xf32> -> vector<2x32xf32>
    %544 = arith.addf %540, %543 : vector<2x32xf32>
    %c0_360 = arith.constant 0 : index
    %c0_361 = arith.constant 0 : index
    %c0_362 = arith.constant 0 : index
    %545 = vector.load %arg8[%c0_360, %c0_361, %c0_362] : memref<2x1x32xf32, #tpu.memory_space<vmem>>, vector<1x1x32xf32>
    %546 = vector.shape_cast %545 : vector<1x1x32xf32> to vector<1x32xf32>
    %547 = vector.broadcast %546 : vector<1x32xf32> to vector<2x32xf32>
    %548 = arith.addf %544, %547 : vector<2x32xf32>
    %549 = arith.negf %548 : vector<2x32xf32>
    %550 = math.exp %549 : vector<2x32xf32>
    %cst_363 = arith.constant 1.000000e+00 : f32
    %551 = vector.broadcast %cst_363 : f32 to vector<2x32xf32>
    %552 = arith.addf %551, %550 : vector<2x32xf32>
    %553 = arith.divf %551, %552 : vector<2x32xf32>
    %554 = vector.extract_strided_slice %9 {offsets = [10, 0], sizes = [2, 32], strides = [1, 1]} : vector<16x32xf32> to vector<2x32xf32>
    %c0_364 = arith.constant 0 : index
    %c0_365 = arith.constant 0 : index
    %c0_366 = arith.constant 0 : index
    %555 = vector.load %arg9[%c0_364, %c0_365, %c0_366] : memref<2x1x32xf32, #tpu.memory_space<vmem>>, vector<1x1x32xf32>
    %556 = vector.shape_cast %555 : vector<1x1x32xf32> to vector<1x32xf32>
    %557 = vector.broadcast %556 : vector<1x32xf32> to vector<2x32xf32>
    %558 = arith.addf %554, %557 : vector<2x32xf32>
    %c0_367 = arith.constant 0 : index
    %c0_368 = arith.constant 0 : index
    %c0_369 = arith.constant 0 : index
    %559 = vector.load %arg6[%c0_367, %c0_368, %c0_369] : memref<2x32x32xf32, #tpu.memory_space<vmem>>, vector<1x32x32xf32>
    %560 = vector.shape_cast %559 : vector<1x32x32xf32> to vector<32x32xf32>
    %cst_370 = arith.constant dense<0.000000e+00> : vector<2x32xf32>
    %561 = tpu.matmul %524, %560, %cst_370 {dimension_numbers = #tpu.dot_dimension_numbers<[1], [0], [0], [1], [0, 0, 1, 1], [], []>} : vector<2x32xf32>, vector<32x32xf32>, vector<2x32xf32> -> vector<2x32xf32>
    %c0_371 = arith.constant 0 : index
    %c0_372 = arith.constant 0 : index
    %c0_373 = arith.constant 0 : index
    %562 = vector.load %arg10[%c0_371, %c0_372, %c0_373] : memref<2x1x32xf32, #tpu.memory_space<vmem>>, vector<1x1x32xf32>
    %563 = vector.shape_cast %562 : vector<1x1x32xf32> to vector<1x32xf32>
    %564 = vector.broadcast %563 : vector<1x32xf32> to vector<2x32xf32>
    %565 = arith.addf %561, %564 : vector<2x32xf32>
    %566 = arith.mulf %539, %565 : vector<2x32xf32>
    %567 = arith.addf %558, %566 : vector<2x32xf32>
    %568 = math.tanh %567 : vector<2x32xf32>
    %cst_374 = arith.constant 1.000000e+00 : f32
    %569 = vector.broadcast %cst_374 : f32 to vector<2x32xf32>
    %570 = arith.subf %569, %553 : vector<2x32xf32>
    %571 = arith.mulf %570, %568 : vector<2x32xf32>
    %572 = arith.mulf %553, %524 : vector<2x32xf32>
    %573 = arith.addf %571, %572 : vector<2x32xf32>
    %c1_375 = arith.constant 1 : index
    %c0_376 = arith.constant 0 : index
    %c0_377 = arith.constant 0 : index
    %574 = vector.load %arg1[%c1_375, %c0_376, %c0_377] : memref<2x32x32xf32, #tpu.memory_space<vmem>>, vector<1x32x32xf32>
    %575 = vector.shape_cast %574 : vector<1x32x32xf32> to vector<32x32xf32>
    %cst_378 = arith.constant dense<0.000000e+00> : vector<2x32xf32>
    %576 = tpu.matmul %573, %575, %cst_378 {dimension_numbers = #tpu.dot_dimension_numbers<[1], [0], [0], [1], [0, 0, 1, 1], [], []>} : vector<2x32xf32>, vector<32x32xf32>, vector<2x32xf32> -> vector<2x32xf32>
    %c1_379 = arith.constant 1 : index
    %c0_380 = arith.constant 0 : index
    %c0_381 = arith.constant 0 : index
    %577 = vector.load %arg4[%c1_379, %c0_380, %c0_381] : memref<2x32x32xf32, #tpu.memory_space<vmem>>, vector<1x32x32xf32>
    %578 = vector.shape_cast %577 : vector<1x32x32xf32> to vector<32x32xf32>
    %cst_382 = arith.constant dense<0.000000e+00> : vector<2x32xf32>
    %579 = tpu.matmul %573, %578, %cst_382 {dimension_numbers = #tpu.dot_dimension_numbers<[1], [0], [0], [1], [0, 0, 1, 1], [], []>} : vector<2x32xf32>, vector<32x32xf32>, vector<2x32xf32> -> vector<2x32xf32>
    %580 = arith.addf %576, %579 : vector<2x32xf32>
    %c1_383 = arith.constant 1 : index
    %c0_384 = arith.constant 0 : index
    %c0_385 = arith.constant 0 : index
    %581 = vector.load %arg7[%c1_383, %c0_384, %c0_385] : memref<2x1x32xf32, #tpu.memory_space<vmem>>, vector<1x1x32xf32>
    %582 = vector.shape_cast %581 : vector<1x1x32xf32> to vector<1x32xf32>
    %583 = vector.broadcast %582 : vector<1x32xf32> to vector<2x32xf32>
    %584 = arith.addf %580, %583 : vector<2x32xf32>
    %585 = arith.negf %584 : vector<2x32xf32>
    %586 = math.exp %585 : vector<2x32xf32>
    %cst_386 = arith.constant 1.000000e+00 : f32
    %587 = vector.broadcast %cst_386 : f32 to vector<2x32xf32>
    %588 = arith.addf %587, %586 : vector<2x32xf32>
    %589 = arith.divf %587, %588 : vector<2x32xf32>
    %c1_387 = arith.constant 1 : index
    %c0_388 = arith.constant 0 : index
    %c0_389 = arith.constant 0 : index
    %590 = vector.load %arg2[%c1_387, %c0_388, %c0_389] : memref<2x32x32xf32, #tpu.memory_space<vmem>>, vector<1x32x32xf32>
    %591 = vector.shape_cast %590 : vector<1x32x32xf32> to vector<32x32xf32>
    %cst_390 = arith.constant dense<0.000000e+00> : vector<2x32xf32>
    %592 = tpu.matmul %573, %591, %cst_390 {dimension_numbers = #tpu.dot_dimension_numbers<[1], [0], [0], [1], [0, 0, 1, 1], [], []>} : vector<2x32xf32>, vector<32x32xf32>, vector<2x32xf32> -> vector<2x32xf32>
    %c1_391 = arith.constant 1 : index
    %c0_392 = arith.constant 0 : index
    %c0_393 = arith.constant 0 : index
    %593 = vector.load %arg5[%c1_391, %c0_392, %c0_393] : memref<2x32x32xf32, #tpu.memory_space<vmem>>, vector<1x32x32xf32>
    %594 = vector.shape_cast %593 : vector<1x32x32xf32> to vector<32x32xf32>
    %cst_394 = arith.constant dense<0.000000e+00> : vector<2x32xf32>
    %595 = tpu.matmul %573, %594, %cst_394 {dimension_numbers = #tpu.dot_dimension_numbers<[1], [0], [0], [1], [0, 0, 1, 1], [], []>} : vector<2x32xf32>, vector<32x32xf32>, vector<2x32xf32> -> vector<2x32xf32>
    %596 = arith.addf %592, %595 : vector<2x32xf32>
    %c1_395 = arith.constant 1 : index
    %c0_396 = arith.constant 0 : index
    %c0_397 = arith.constant 0 : index
    %597 = vector.load %arg8[%c1_395, %c0_396, %c0_397] : memref<2x1x32xf32, #tpu.memory_space<vmem>>, vector<1x1x32xf32>
    %598 = vector.shape_cast %597 : vector<1x1x32xf32> to vector<1x32xf32>
    %599 = vector.broadcast %598 : vector<1x32xf32> to vector<2x32xf32>
    %600 = arith.addf %596, %599 : vector<2x32xf32>
    %601 = arith.negf %600 : vector<2x32xf32>
    %602 = math.exp %601 : vector<2x32xf32>
    %cst_398 = arith.constant 1.000000e+00 : f32
    %603 = vector.broadcast %cst_398 : f32 to vector<2x32xf32>
    %604 = arith.addf %603, %602 : vector<2x32xf32>
    %605 = arith.divf %603, %604 : vector<2x32xf32>
    %c1_399 = arith.constant 1 : index
    %c0_400 = arith.constant 0 : index
    %c0_401 = arith.constant 0 : index
    %606 = vector.load %arg3[%c1_399, %c0_400, %c0_401] : memref<2x32x32xf32, #tpu.memory_space<vmem>>, vector<1x32x32xf32>
    %607 = vector.shape_cast %606 : vector<1x32x32xf32> to vector<32x32xf32>
    %cst_402 = arith.constant dense<0.000000e+00> : vector<2x32xf32>
    %608 = tpu.matmul %573, %607, %cst_402 {dimension_numbers = #tpu.dot_dimension_numbers<[1], [0], [0], [1], [0, 0, 1, 1], [], []>} : vector<2x32xf32>, vector<32x32xf32>, vector<2x32xf32> -> vector<2x32xf32>
    %c1_403 = arith.constant 1 : index
    %c0_404 = arith.constant 0 : index
    %c0_405 = arith.constant 0 : index
    %609 = vector.load %arg9[%c1_403, %c0_404, %c0_405] : memref<2x1x32xf32, #tpu.memory_space<vmem>>, vector<1x1x32xf32>
    %610 = vector.shape_cast %609 : vector<1x1x32xf32> to vector<1x32xf32>
    %611 = vector.broadcast %610 : vector<1x32xf32> to vector<2x32xf32>
    %612 = arith.addf %608, %611 : vector<2x32xf32>
    %c1_406 = arith.constant 1 : index
    %c0_407 = arith.constant 0 : index
    %c0_408 = arith.constant 0 : index
    %613 = vector.load %arg6[%c1_406, %c0_407, %c0_408] : memref<2x32x32xf32, #tpu.memory_space<vmem>>, vector<1x32x32xf32>
    %614 = vector.shape_cast %613 : vector<1x32x32xf32> to vector<32x32xf32>
    %cst_409 = arith.constant dense<0.000000e+00> : vector<2x32xf32>
    %615 = tpu.matmul %573, %614, %cst_409 {dimension_numbers = #tpu.dot_dimension_numbers<[1], [0], [0], [1], [0, 0, 1, 1], [], []>} : vector<2x32xf32>, vector<32x32xf32>, vector<2x32xf32> -> vector<2x32xf32>
    %c1_410 = arith.constant 1 : index
    %c0_411 = arith.constant 0 : index
    %c0_412 = arith.constant 0 : index
    %616 = vector.load %arg10[%c1_410, %c0_411, %c0_412] : memref<2x1x32xf32, #tpu.memory_space<vmem>>, vector<1x1x32xf32>
    %617 = vector.shape_cast %616 : vector<1x1x32xf32> to vector<1x32xf32>
    %618 = vector.broadcast %617 : vector<1x32xf32> to vector<2x32xf32>
    %619 = arith.addf %615, %618 : vector<2x32xf32>
    %620 = arith.mulf %589, %619 : vector<2x32xf32>
    %621 = arith.addf %612, %620 : vector<2x32xf32>
    %622 = math.tanh %621 : vector<2x32xf32>
    %cst_413 = arith.constant 1.000000e+00 : f32
    %623 = vector.broadcast %cst_413 : f32 to vector<2x32xf32>
    %624 = arith.subf %623, %605 : vector<2x32xf32>
    %625 = arith.mulf %624, %622 : vector<2x32xf32>
    %626 = arith.mulf %605, %573 : vector<2x32xf32>
    %627 = arith.addf %625, %626 : vector<2x32xf32>
    %c10 = arith.constant 10 : index
    %c0_414 = arith.constant 0 : index
    %628 = vector.load %arg14[%c10, %c0_414] : memref<16x32xf32, #tpu.memory_space<vmem>>, vector<2x32xf32>
    tpu.vector_store %arg14[%c10, %c0_414], %627 {strides = array<i32>} : memref<16x32xf32, #tpu.memory_space<vmem>>, vector<2x32xf32>,
    %629 = vector.extract_strided_slice %3 {offsets = [12, 0], sizes = [2, 32], strides = [1, 1]} : vector<16x32xf32> to vector<2x32xf32>
    %c0_415 = arith.constant 0 : index
    %c0_416 = arith.constant 0 : index
    %c0_417 = arith.constant 0 : index
    %630 = vector.load %arg4[%c0_415, %c0_416, %c0_417] : memref<2x32x32xf32, #tpu.memory_space<vmem>>, vector<1x32x32xf32>
    %631 = vector.shape_cast %630 : vector<1x32x32xf32> to vector<32x32xf32>
    %cst_418 = arith.constant dense<0.000000e+00> : vector<2x32xf32>
    %632 = tpu.matmul %627, %631, %cst_418 {dimension_numbers = #tpu.dot_dimension_numbers<[1], [0], [0], [1], [0, 0, 1, 1], [], []>} : vector<2x32xf32>, vector<32x32xf32>, vector<2x32xf32> -> vector<2x32xf32>
    %633 = arith.addf %629, %632 : vector<2x32xf32>
    %c0_419 = arith.constant 0 : index
    %c0_420 = arith.constant 0 : index
    %c0_421 = arith.constant 0 : index
    %634 = vector.load %arg7[%c0_419, %c0_420, %c0_421] : memref<2x1x32xf32, #tpu.memory_space<vmem>>, vector<1x1x32xf32>
    %635 = vector.shape_cast %634 : vector<1x1x32xf32> to vector<1x32xf32>
    %636 = vector.broadcast %635 : vector<1x32xf32> to vector<2x32xf32>
    %637 = arith.addf %633, %636 : vector<2x32xf32>
    %638 = arith.negf %637 : vector<2x32xf32>
    %639 = math.exp %638 : vector<2x32xf32>
    %cst_422 = arith.constant 1.000000e+00 : f32
    %640 = vector.broadcast %cst_422 : f32 to vector<2x32xf32>
    %641 = arith.addf %640, %639 : vector<2x32xf32>
    %642 = arith.divf %640, %641 : vector<2x32xf32>
    %643 = vector.extract_strided_slice %6 {offsets = [12, 0], sizes = [2, 32], strides = [1, 1]} : vector<16x32xf32> to vector<2x32xf32>
    %c0_423 = arith.constant 0 : index
    %c0_424 = arith.constant 0 : index
    %c0_425 = arith.constant 0 : index
    %644 = vector.load %arg5[%c0_423, %c0_424, %c0_425] : memref<2x32x32xf32, #tpu.memory_space<vmem>>, vector<1x32x32xf32>
    %645 = vector.shape_cast %644 : vector<1x32x32xf32> to vector<32x32xf32>
    %cst_426 = arith.constant dense<0.000000e+00> : vector<2x32xf32>
    %646 = tpu.matmul %627, %645, %cst_426 {dimension_numbers = #tpu.dot_dimension_numbers<[1], [0], [0], [1], [0, 0, 1, 1], [], []>} : vector<2x32xf32>, vector<32x32xf32>, vector<2x32xf32> -> vector<2x32xf32>
    %647 = arith.addf %643, %646 : vector<2x32xf32>
    %c0_427 = arith.constant 0 : index
    %c0_428 = arith.constant 0 : index
    %c0_429 = arith.constant 0 : index
    %648 = vector.load %arg8[%c0_427, %c0_428, %c0_429] : memref<2x1x32xf32, #tpu.memory_space<vmem>>, vector<1x1x32xf32>
    %649 = vector.shape_cast %648 : vector<1x1x32xf32> to vector<1x32xf32>
    %650 = vector.broadcast %649 : vector<1x32xf32> to vector<2x32xf32>
    %651 = arith.addf %647, %650 : vector<2x32xf32>
    %652 = arith.negf %651 : vector<2x32xf32>
    %653 = math.exp %652 : vector<2x32xf32>
    %cst_430 = arith.constant 1.000000e+00 : f32
    %654 = vector.broadcast %cst_430 : f32 to vector<2x32xf32>
    %655 = arith.addf %654, %653 : vector<2x32xf32>
    %656 = arith.divf %654, %655 : vector<2x32xf32>
    %657 = vector.extract_strided_slice %9 {offsets = [12, 0], sizes = [2, 32], strides = [1, 1]} : vector<16x32xf32> to vector<2x32xf32>
    %c0_431 = arith.constant 0 : index
    %c0_432 = arith.constant 0 : index
    %c0_433 = arith.constant 0 : index
    %658 = vector.load %arg9[%c0_431, %c0_432, %c0_433] : memref<2x1x32xf32, #tpu.memory_space<vmem>>, vector<1x1x32xf32>
    %659 = vector.shape_cast %658 : vector<1x1x32xf32> to vector<1x32xf32>
    %660 = vector.broadcast %659 : vector<1x32xf32> to vector<2x32xf32>
    %661 = arith.addf %657, %660 : vector<2x32xf32>
    %c0_434 = arith.constant 0 : index
    %c0_435 = arith.constant 0 : index
    %c0_436 = arith.constant 0 : index
    %662 = vector.load %arg6[%c0_434, %c0_435, %c0_436] : memref<2x32x32xf32, #tpu.memory_space<vmem>>, vector<1x32x32xf32>
    %663 = vector.shape_cast %662 : vector<1x32x32xf32> to vector<32x32xf32>
    %cst_437 = arith.constant dense<0.000000e+00> : vector<2x32xf32>
    %664 = tpu.matmul %627, %663, %cst_437 {dimension_numbers = #tpu.dot_dimension_numbers<[1], [0], [0], [1], [0, 0, 1, 1], [], []>} : vector<2x32xf32>, vector<32x32xf32>, vector<2x32xf32> -> vector<2x32xf32>
    %c0_438 = arith.constant 0 : index
    %c0_439 = arith.constant 0 : index
    %c0_440 = arith.constant 0 : index
    %665 = vector.load %arg10[%c0_438, %c0_439, %c0_440] : memref<2x1x32xf32, #tpu.memory_space<vmem>>, vector<1x1x32xf32>
    %666 = vector.shape_cast %665 : vector<1x1x32xf32> to vector<1x32xf32>
    %667 = vector.broadcast %666 : vector<1x32xf32> to vector<2x32xf32>
    %668 = arith.addf %664, %667 : vector<2x32xf32>
    %669 = arith.mulf %642, %668 : vector<2x32xf32>
    %670 = arith.addf %661, %669 : vector<2x32xf32>
    %671 = math.tanh %670 : vector<2x32xf32>
    %cst_441 = arith.constant 1.000000e+00 : f32
    %672 = vector.broadcast %cst_441 : f32 to vector<2x32xf32>
    %673 = arith.subf %672, %656 : vector<2x32xf32>
    %674 = arith.mulf %673, %671 : vector<2x32xf32>
    %675 = arith.mulf %656, %627 : vector<2x32xf32>
    %676 = arith.addf %674, %675 : vector<2x32xf32>
    %c1_442 = arith.constant 1 : index
    %c0_443 = arith.constant 0 : index
    %c0_444 = arith.constant 0 : index
    %677 = vector.load %arg1[%c1_442, %c0_443, %c0_444] : memref<2x32x32xf32, #tpu.memory_space<vmem>>, vector<1x32x32xf32>
    %678 = vector.shape_cast %677 : vector<1x32x32xf32> to vector<32x32xf32>
    %cst_445 = arith.constant dense<0.000000e+00> : vector<2x32xf32>
    %679 = tpu.matmul %676, %678, %cst_445 {dimension_numbers = #tpu.dot_dimension_numbers<[1], [0], [0], [1], [0, 0, 1, 1], [], []>} : vector<2x32xf32>, vector<32x32xf32>, vector<2x32xf32> -> vector<2x32xf32>
    %c1_446 = arith.constant 1 : index
    %c0_447 = arith.constant 0 : index
    %c0_448 = arith.constant 0 : index
    %680 = vector.load %arg4[%c1_446, %c0_447, %c0_448] : memref<2x32x32xf32, #tpu.memory_space<vmem>>, vector<1x32x32xf32>
    %681 = vector.shape_cast %680 : vector<1x32x32xf32> to vector<32x32xf32>
    %cst_449 = arith.constant dense<0.000000e+00> : vector<2x32xf32>
    %682 = tpu.matmul %676, %681, %cst_449 {dimension_numbers = #tpu.dot_dimension_numbers<[1], [0], [0], [1], [0, 0, 1, 1], [], []>} : vector<2x32xf32>, vector<32x32xf32>, vector<2x32xf32> -> vector<2x32xf32>
    %683 = arith.addf %679, %682 : vector<2x32xf32>
    %c1_450 = arith.constant 1 : index
    %c0_451 = arith.constant 0 : index
    %c0_452 = arith.constant 0 : index
    %684 = vector.load %arg7[%c1_450, %c0_451, %c0_452] : memref<2x1x32xf32, #tpu.memory_space<vmem>>, vector<1x1x32xf32>
    %685 = vector.shape_cast %684 : vector<1x1x32xf32> to vector<1x32xf32>
    %686 = vector.broadcast %685 : vector<1x32xf32> to vector<2x32xf32>
    %687 = arith.addf %683, %686 : vector<2x32xf32>
    %688 = arith.negf %687 : vector<2x32xf32>
    %689 = math.exp %688 : vector<2x32xf32>
    %cst_453 = arith.constant 1.000000e+00 : f32
    %690 = vector.broadcast %cst_453 : f32 to vector<2x32xf32>
    %691 = arith.addf %690, %689 : vector<2x32xf32>
    %692 = arith.divf %690, %691 : vector<2x32xf32>
    %c1_454 = arith.constant 1 : index
    %c0_455 = arith.constant 0 : index
    %c0_456 = arith.constant 0 : index
    %693 = vector.load %arg2[%c1_454, %c0_455, %c0_456] : memref<2x32x32xf32, #tpu.memory_space<vmem>>, vector<1x32x32xf32>
    %694 = vector.shape_cast %693 : vector<1x32x32xf32> to vector<32x32xf32>
    %cst_457 = arith.constant dense<0.000000e+00> : vector<2x32xf32>
    %695 = tpu.matmul %676, %694, %cst_457 {dimension_numbers = #tpu.dot_dimension_numbers<[1], [0], [0], [1], [0, 0, 1, 1], [], []>} : vector<2x32xf32>, vector<32x32xf32>, vector<2x32xf32> -> vector<2x32xf32>
    %c1_458 = arith.constant 1 : index
    %c0_459 = arith.constant 0 : index
    %c0_460 = arith.constant 0 : index
    %696 = vector.load %arg5[%c1_458, %c0_459, %c0_460] : memref<2x32x32xf32, #tpu.memory_space<vmem>>, vector<1x32x32xf32>
    %697 = vector.shape_cast %696 : vector<1x32x32xf32> to vector<32x32xf32>
    %cst_461 = arith.constant dense<0.000000e+00> : vector<2x32xf32>
    %698 = tpu.matmul %676, %697, %cst_461 {dimension_numbers = #tpu.dot_dimension_numbers<[1], [0], [0], [1], [0, 0, 1, 1], [], []>} : vector<2x32xf32>, vector<32x32xf32>, vector<2x32xf32> -> vector<2x32xf32>
    %699 = arith.addf %695, %698 : vector<2x32xf32>
    %c1_462 = arith.constant 1 : index
    %c0_463 = arith.constant 0 : index
    %c0_464 = arith.constant 0 : index
    %700 = vector.load %arg8[%c1_462, %c0_463, %c0_464] : memref<2x1x32xf32, #tpu.memory_space<vmem>>, vector<1x1x32xf32>
    %701 = vector.shape_cast %700 : vector<1x1x32xf32> to vector<1x32xf32>
    %702 = vector.broadcast %701 : vector<1x32xf32> to vector<2x32xf32>
    %703 = arith.addf %699, %702 : vector<2x32xf32>
    %704 = arith.negf %703 : vector<2x32xf32>
    %705 = math.exp %704 : vector<2x32xf32>
    %cst_465 = arith.constant 1.000000e+00 : f32
    %706 = vector.broadcast %cst_465 : f32 to vector<2x32xf32>
    %707 = arith.addf %706, %705 : vector<2x32xf32>
    %708 = arith.divf %706, %707 : vector<2x32xf32>
    %c1_466 = arith.constant 1 : index
    %c0_467 = arith.constant 0 : index
    %c0_468 = arith.constant 0 : index
    %709 = vector.load %arg3[%c1_466, %c0_467, %c0_468] : memref<2x32x32xf32, #tpu.memory_space<vmem>>, vector<1x32x32xf32>
    %710 = vector.shape_cast %709 : vector<1x32x32xf32> to vector<32x32xf32>
    %cst_469 = arith.constant dense<0.000000e+00> : vector<2x32xf32>
    %711 = tpu.matmul %676, %710, %cst_469 {dimension_numbers = #tpu.dot_dimension_numbers<[1], [0], [0], [1], [0, 0, 1, 1], [], []>} : vector<2x32xf32>, vector<32x32xf32>, vector<2x32xf32> -> vector<2x32xf32>
    %c1_470 = arith.constant 1 : index
    %c0_471 = arith.constant 0 : index
    %c0_472 = arith.constant 0 : index
    %712 = vector.load %arg9[%c1_470, %c0_471, %c0_472] : memref<2x1x32xf32, #tpu.memory_space<vmem>>, vector<1x1x32xf32>
    %713 = vector.shape_cast %712 : vector<1x1x32xf32> to vector<1x32xf32>
    %714 = vector.broadcast %713 : vector<1x32xf32> to vector<2x32xf32>
    %715 = arith.addf %711, %714 : vector<2x32xf32>
    %c1_473 = arith.constant 1 : index
    %c0_474 = arith.constant 0 : index
    %c0_475 = arith.constant 0 : index
    %716 = vector.load %arg6[%c1_473, %c0_474, %c0_475] : memref<2x32x32xf32, #tpu.memory_space<vmem>>, vector<1x32x32xf32>
    %717 = vector.shape_cast %716 : vector<1x32x32xf32> to vector<32x32xf32>
    %cst_476 = arith.constant dense<0.000000e+00> : vector<2x32xf32>
    %718 = tpu.matmul %676, %717, %cst_476 {dimension_numbers = #tpu.dot_dimension_numbers<[1], [0], [0], [1], [0, 0, 1, 1], [], []>} : vector<2x32xf32>, vector<32x32xf32>, vector<2x32xf32> -> vector<2x32xf32>
    %c1_477 = arith.constant 1 : index
    %c0_478 = arith.constant 0 : index
    %c0_479 = arith.constant 0 : index
    %719 = vector.load %arg10[%c1_477, %c0_478, %c0_479] : memref<2x1x32xf32, #tpu.memory_space<vmem>>, vector<1x1x32xf32>
    %720 = vector.shape_cast %719 : vector<1x1x32xf32> to vector<1x32xf32>
    %721 = vector.broadcast %720 : vector<1x32xf32> to vector<2x32xf32>
    %722 = arith.addf %718, %721 : vector<2x32xf32>
    %723 = arith.mulf %692, %722 : vector<2x32xf32>
    %724 = arith.addf %715, %723 : vector<2x32xf32>
    %725 = math.tanh %724 : vector<2x32xf32>
    %cst_480 = arith.constant 1.000000e+00 : f32
    %726 = vector.broadcast %cst_480 : f32 to vector<2x32xf32>
    %727 = arith.subf %726, %708 : vector<2x32xf32>
    %728 = arith.mulf %727, %725 : vector<2x32xf32>
    %729 = arith.mulf %708, %676 : vector<2x32xf32>
    %730 = arith.addf %728, %729 : vector<2x32xf32>
    %c12 = arith.constant 12 : index
    %c0_481 = arith.constant 0 : index
    %731 = vector.load %arg14[%c12, %c0_481] : memref<16x32xf32, #tpu.memory_space<vmem>>, vector<2x32xf32>
    tpu.vector_store %arg14[%c12, %c0_481], %730 {strides = array<i32>} : memref<16x32xf32, #tpu.memory_space<vmem>>, vector<2x32xf32>,
    %732 = vector.extract_strided_slice %3 {offsets = [14, 0], sizes = [2, 32], strides = [1, 1]} : vector<16x32xf32> to vector<2x32xf32>
    %c0_482 = arith.constant 0 : index
    %c0_483 = arith.constant 0 : index
    %c0_484 = arith.constant 0 : index
    %733 = vector.load %arg4[%c0_482, %c0_483, %c0_484] : memref<2x32x32xf32, #tpu.memory_space<vmem>>, vector<1x32x32xf32>
    %734 = vector.shape_cast %733 : vector<1x32x32xf32> to vector<32x32xf32>
    %cst_485 = arith.constant dense<0.000000e+00> : vector<2x32xf32>
    %735 = tpu.matmul %730, %734, %cst_485 {dimension_numbers = #tpu.dot_dimension_numbers<[1], [0], [0], [1], [0, 0, 1, 1], [], []>} : vector<2x32xf32>, vector<32x32xf32>, vector<2x32xf32> -> vector<2x32xf32>
    %736 = arith.addf %732, %735 : vector<2x32xf32>
    %c0_486 = arith.constant 0 : index
    %c0_487 = arith.constant 0 : index
    %c0_488 = arith.constant 0 : index
    %737 = vector.load %arg7[%c0_486, %c0_487, %c0_488] : memref<2x1x32xf32, #tpu.memory_space<vmem>>, vector<1x1x32xf32>
    %738 = vector.shape_cast %737 : vector<1x1x32xf32> to vector<1x32xf32>
    %739 = vector.broadcast %738 : vector<1x32xf32> to vector<2x32xf32>
    %740 = arith.addf %736, %739 : vector<2x32xf32>
    %741 = arith.negf %740 : vector<2x32xf32>
    %742 = math.exp %741 : vector<2x32xf32>
    %cst_489 = arith.constant 1.000000e+00 : f32
    %743 = vector.broadcast %cst_489 : f32 to vector<2x32xf32>
    %744 = arith.addf %743, %742 : vector<2x32xf32>
    %745 = arith.divf %743, %744 : vector<2x32xf32>
    %746 = vector.extract_strided_slice %6 {offsets = [14, 0], sizes = [2, 32], strides = [1, 1]} : vector<16x32xf32> to vector<2x32xf32>
    %c0_490 = arith.constant 0 : index
    %c0_491 = arith.constant 0 : index
    %c0_492 = arith.constant 0 : index
    %747 = vector.load %arg5[%c0_490, %c0_491, %c0_492] : memref<2x32x32xf32, #tpu.memory_space<vmem>>, vector<1x32x32xf32>
    %748 = vector.shape_cast %747 : vector<1x32x32xf32> to vector<32x32xf32>
    %cst_493 = arith.constant dense<0.000000e+00> : vector<2x32xf32>
    %749 = tpu.matmul %730, %748, %cst_493 {dimension_numbers = #tpu.dot_dimension_numbers<[1], [0], [0], [1], [0, 0, 1, 1], [], []>} : vector<2x32xf32>, vector<32x32xf32>, vector<2x32xf32> -> vector<2x32xf32>
    %750 = arith.addf %746, %749 : vector<2x32xf32>
    %c0_494 = arith.constant 0 : index
    %c0_495 = arith.constant 0 : index
    %c0_496 = arith.constant 0 : index
    %751 = vector.load %arg8[%c0_494, %c0_495, %c0_496] : memref<2x1x32xf32, #tpu.memory_space<vmem>>, vector<1x1x32xf32>
    %752 = vector.shape_cast %751 : vector<1x1x32xf32> to vector<1x32xf32>
    %753 = vector.broadcast %752 : vector<1x32xf32> to vector<2x32xf32>
    %754 = arith.addf %750, %753 : vector<2x32xf32>
    %755 = arith.negf %754 : vector<2x32xf32>
    %756 = math.exp %755 : vector<2x32xf32>
    %cst_497 = arith.constant 1.000000e+00 : f32
    %757 = vector.broadcast %cst_497 : f32 to vector<2x32xf32>
    %758 = arith.addf %757, %756 : vector<2x32xf32>
    %759 = arith.divf %757, %758 : vector<2x32xf32>
    %760 = vector.extract_strided_slice %9 {offsets = [14, 0], sizes = [2, 32], strides = [1, 1]} : vector<16x32xf32> to vector<2x32xf32>
    %c0_498 = arith.constant 0 : index
    %c0_499 = arith.constant 0 : index
    %c0_500 = arith.constant 0 : index
    %761 = vector.load %arg9[%c0_498, %c0_499, %c0_500] : memref<2x1x32xf32, #tpu.memory_space<vmem>>, vector<1x1x32xf32>
    %762 = vector.shape_cast %761 : vector<1x1x32xf32> to vector<1x32xf32>
    %763 = vector.broadcast %762 : vector<1x32xf32> to vector<2x32xf32>
    %764 = arith.addf %760, %763 : vector<2x32xf32>
    %c0_501 = arith.constant 0 : index
    %c0_502 = arith.constant 0 : index
    %c0_503 = arith.constant 0 : index
    %765 = vector.load %arg6[%c0_501, %c0_502, %c0_503] : memref<2x32x32xf32, #tpu.memory_space<vmem>>, vector<1x32x32xf32>
    %766 = vector.shape_cast %765 : vector<1x32x32xf32> to vector<32x32xf32>
    %cst_504 = arith.constant dense<0.000000e+00> : vector<2x32xf32>
    %767 = tpu.matmul %730, %766, %cst_504 {dimension_numbers = #tpu.dot_dimension_numbers<[1], [0], [0], [1], [0, 0, 1, 1], [], []>} : vector<2x32xf32>, vector<32x32xf32>, vector<2x32xf32> -> vector<2x32xf32>
    %c0_505 = arith.constant 0 : index
    %c0_506 = arith.constant 0 : index
    %c0_507 = arith.constant 0 : index
    %768 = vector.load %arg10[%c0_505, %c0_506, %c0_507] : memref<2x1x32xf32, #tpu.memory_space<vmem>>, vector<1x1x32xf32>
    %769 = vector.shape_cast %768 : vector<1x1x32xf32> to vector<1x32xf32>
    %770 = vector.broadcast %769 : vector<1x32xf32> to vector<2x32xf32>
    %771 = arith.addf %767, %770 : vector<2x32xf32>
    %772 = arith.mulf %745, %771 : vector<2x32xf32>
    %773 = arith.addf %764, %772 : vector<2x32xf32>
    %774 = math.tanh %773 : vector<2x32xf32>
    %cst_508 = arith.constant 1.000000e+00 : f32
    %775 = vector.broadcast %cst_508 : f32 to vector<2x32xf32>
    %776 = arith.subf %775, %759 : vector<2x32xf32>
    %777 = arith.mulf %776, %774 : vector<2x32xf32>
    %778 = arith.mulf %759, %730 : vector<2x32xf32>
    %779 = arith.addf %777, %778 : vector<2x32xf32>
    %c1_509 = arith.constant 1 : index
    %c0_510 = arith.constant 0 : index
    %c0_511 = arith.constant 0 : index
    %780 = vector.load %arg1[%c1_509, %c0_510, %c0_511] : memref<2x32x32xf32, #tpu.memory_space<vmem>>, vector<1x32x32xf32>
    %781 = vector.shape_cast %780 : vector<1x32x32xf32> to vector<32x32xf32>
    %cst_512 = arith.constant dense<0.000000e+00> : vector<2x32xf32>
    %782 = tpu.matmul %779, %781, %cst_512 {dimension_numbers = #tpu.dot_dimension_numbers<[1], [0], [0], [1], [0, 0, 1, 1], [], []>} : vector<2x32xf32>, vector<32x32xf32>, vector<2x32xf32> -> vector<2x32xf32>
    %c1_513 = arith.constant 1 : index
    %c0_514 = arith.constant 0 : index
    %c0_515 = arith.constant 0 : index
    %783 = vector.load %arg4[%c1_513, %c0_514, %c0_515] : memref<2x32x32xf32, #tpu.memory_space<vmem>>, vector<1x32x32xf32>
    %784 = vector.shape_cast %783 : vector<1x32x32xf32> to vector<32x32xf32>
    %cst_516 = arith.constant dense<0.000000e+00> : vector<2x32xf32>
    %785 = tpu.matmul %779, %784, %cst_516 {dimension_numbers = #tpu.dot_dimension_numbers<[1], [0], [0], [1], [0, 0, 1, 1], [], []>} : vector<2x32xf32>, vector<32x32xf32>, vector<2x32xf32> -> vector<2x32xf32>
    %786 = arith.addf %782, %785 : vector<2x32xf32>
    %c1_517 = arith.constant 1 : index
    %c0_518 = arith.constant 0 : index
    %c0_519 = arith.constant 0 : index
    %787 = vector.load %arg7[%c1_517, %c0_518, %c0_519] : memref<2x1x32xf32, #tpu.memory_space<vmem>>, vector<1x1x32xf32>
    %788 = vector.shape_cast %787 : vector<1x1x32xf32> to vector<1x32xf32>
    %789 = vector.broadcast %788 : vector<1x32xf32> to vector<2x32xf32>
    %790 = arith.addf %786, %789 : vector<2x32xf32>
    %791 = arith.negf %790 : vector<2x32xf32>
    %792 = math.exp %791 : vector<2x32xf32>
    %cst_520 = arith.constant 1.000000e+00 : f32
    %793 = vector.broadcast %cst_520 : f32 to vector<2x32xf32>
    %794 = arith.addf %793, %792 : vector<2x32xf32>
    %795 = arith.divf %793, %794 : vector<2x32xf32>
    %c1_521 = arith.constant 1 : index
    %c0_522 = arith.constant 0 : index
    %c0_523 = arith.constant 0 : index
    %796 = vector.load %arg2[%c1_521, %c0_522, %c0_523] : memref<2x32x32xf32, #tpu.memory_space<vmem>>, vector<1x32x32xf32>
    %797 = vector.shape_cast %796 : vector<1x32x32xf32> to vector<32x32xf32>
    %cst_524 = arith.constant dense<0.000000e+00> : vector<2x32xf32>
    %798 = tpu.matmul %779, %797, %cst_524 {dimension_numbers = #tpu.dot_dimension_numbers<[1], [0], [0], [1], [0, 0, 1, 1], [], []>} : vector<2x32xf32>, vector<32x32xf32>, vector<2x32xf32> -> vector<2x32xf32>
    %c1_525 = arith.constant 1 : index
    %c0_526 = arith.constant 0 : index
    %c0_527 = arith.constant 0 : index
    %799 = vector.load %arg5[%c1_525, %c0_526, %c0_527] : memref<2x32x32xf32, #tpu.memory_space<vmem>>, vector<1x32x32xf32>
    %800 = vector.shape_cast %799 : vector<1x32x32xf32> to vector<32x32xf32>
    %cst_528 = arith.constant dense<0.000000e+00> : vector<2x32xf32>
    %801 = tpu.matmul %779, %800, %cst_528 {dimension_numbers = #tpu.dot_dimension_numbers<[1], [0], [0], [1], [0, 0, 1, 1], [], []>} : vector<2x32xf32>, vector<32x32xf32>, vector<2x32xf32> -> vector<2x32xf32>
    %802 = arith.addf %798, %801 : vector<2x32xf32>
    %c1_529 = arith.constant 1 : index
    %c0_530 = arith.constant 0 : index
    %c0_531 = arith.constant 0 : index
    %803 = vector.load %arg8[%c1_529, %c0_530, %c0_531] : memref<2x1x32xf32, #tpu.memory_space<vmem>>, vector<1x1x32xf32>
    %804 = vector.shape_cast %803 : vector<1x1x32xf32> to vector<1x32xf32>
    %805 = vector.broadcast %804 : vector<1x32xf32> to vector<2x32xf32>
    %806 = arith.addf %802, %805 : vector<2x32xf32>
    %807 = arith.negf %806 : vector<2x32xf32>
    %808 = math.exp %807 : vector<2x32xf32>
    %cst_532 = arith.constant 1.000000e+00 : f32
    %809 = vector.broadcast %cst_532 : f32 to vector<2x32xf32>
    %810 = arith.addf %809, %808 : vector<2x32xf32>
    %811 = arith.divf %809, %810 : vector<2x32xf32>
    %c1_533 = arith.constant 1 : index
    %c0_534 = arith.constant 0 : index
    %c0_535 = arith.constant 0 : index
    %812 = vector.load %arg3[%c1_533, %c0_534, %c0_535] : memref<2x32x32xf32, #tpu.memory_space<vmem>>, vector<1x32x32xf32>
    %813 = vector.shape_cast %812 : vector<1x32x32xf32> to vector<32x32xf32>
    %cst_536 = arith.constant dense<0.000000e+00> : vector<2x32xf32>
    %814 = tpu.matmul %779, %813, %cst_536 {dimension_numbers = #tpu.dot_dimension_numbers<[1], [0], [0], [1], [0, 0, 1, 1], [], []>} : vector<2x32xf32>, vector<32x32xf32>, vector<2x32xf32> -> vector<2x32xf32>
    %c1_537 = arith.constant 1 : index
    %c0_538 = arith.constant 0 : index
    %c0_539 = arith.constant 0 : index
    %815 = vector.load %arg9[%c1_537, %c0_538, %c0_539] : memref<2x1x32xf32, #tpu.memory_space<vmem>>, vector<1x1x32xf32>
    %816 = vector.shape_cast %815 : vector<1x1x32xf32> to vector<1x32xf32>
    %817 = vector.broadcast %816 : vector<1x32xf32> to vector<2x32xf32>
    %818 = arith.addf %814, %817 : vector<2x32xf32>
    %c1_540 = arith.constant 1 : index
    %c0_541 = arith.constant 0 : index
    %c0_542 = arith.constant 0 : index
    %819 = vector.load %arg6[%c1_540, %c0_541, %c0_542] : memref<2x32x32xf32, #tpu.memory_space<vmem>>, vector<1x32x32xf32>
    %820 = vector.shape_cast %819 : vector<1x32x32xf32> to vector<32x32xf32>
    %cst_543 = arith.constant dense<0.000000e+00> : vector<2x32xf32>
    %821 = tpu.matmul %779, %820, %cst_543 {dimension_numbers = #tpu.dot_dimension_numbers<[1], [0], [0], [1], [0, 0, 1, 1], [], []>} : vector<2x32xf32>, vector<32x32xf32>, vector<2x32xf32> -> vector<2x32xf32>
    %c1_544 = arith.constant 1 : index
    %c0_545 = arith.constant 0 : index
    %c0_546 = arith.constant 0 : index
    %822 = vector.load %arg10[%c1_544, %c0_545, %c0_546] : memref<2x1x32xf32, #tpu.memory_space<vmem>>, vector<1x1x32xf32>
    %823 = vector.shape_cast %822 : vector<1x1x32xf32> to vector<1x32xf32>
    %824 = vector.broadcast %823 : vector<1x32xf32> to vector<2x32xf32>
    %825 = arith.addf %821, %824 : vector<2x32xf32>
    %826 = arith.mulf %795, %825 : vector<2x32xf32>
    %827 = arith.addf %818, %826 : vector<2x32xf32>
    %828 = math.tanh %827 : vector<2x32xf32>
    %cst_547 = arith.constant 1.000000e+00 : f32
    %829 = vector.broadcast %cst_547 : f32 to vector<2x32xf32>
    %830 = arith.subf %829, %811 : vector<2x32xf32>
    %831 = arith.mulf %830, %828 : vector<2x32xf32>
    %832 = arith.mulf %811, %779 : vector<2x32xf32>
    %833 = arith.addf %831, %832 : vector<2x32xf32>
    %c14 = arith.constant 14 : index
    %c0_548 = arith.constant 0 : index
    %834 = vector.load %arg14[%c14, %c0_548] : memref<16x32xf32, #tpu.memory_space<vmem>>, vector<2x32xf32>
    tpu.vector_store %arg14[%c14, %c0_548], %833 {strides = array<i32>} : memref<16x32xf32, #tpu.memory_space<vmem>>, vector<2x32xf32>,
    %c0_549 = arith.constant 0 : index
    %c0_550 = arith.constant 0 : index
    %835 = vector.load %arg14[%c0_549, %c0_550] : memref<16x32xf32, #tpu.memory_space<vmem>>, vector<16x32xf32>
    %c0_551 = arith.constant 0 : index
    %c0_552 = arith.constant 0 : index
    %836 = vector.load %arg11[%c0_551, %c0_552] : memref<32x128xf32, #tpu.memory_space<vmem>>, vector<32x128xf32>
    %cst_553 = arith.constant dense<0.000000e+00> : vector<16x128xf32>
    %837 = tpu.matmul %835, %836, %cst_553 {dimension_numbers = #tpu.dot_dimension_numbers<[1], [0], [0], [1], [0, 0, 1, 1], [], []>} : vector<16x32xf32>, vector<32x128xf32>, vector<16x128xf32> -> vector<16x128xf32>
    %c0_554 = arith.constant 0 : index
    %c0_555 = arith.constant 0 : index
    %838 = vector.load %arg12[%c0_554, %c0_555] : memref<1x128xf32, #tpu.memory_space<vmem>>, vector<1x128xf32>
    %839 = vector.broadcast %838 : vector<1x128xf32> to vector<16x128xf32>
    %840 = arith.addf %837, %839 : vector<16x128xf32>
    %cst_556 = arith.constant 1.500000e+00 : f32
    %841 = vector.broadcast %cst_556 : f32 to vector<16x128xf32>
    %842 = arith.mulf %840, %841 : vector<16x128xf32>
    %c0_557 = arith.constant 0 : index
    %c0_558 = arith.constant 0 : index
    %843 = vector.load %arg13[%c0_557, %c0_558] : memref<16x128xf32, #tpu.memory_space<vmem>>, vector<16x128xf32>
    tpu.vector_store %arg13[%c0_557, %c0_558], %842 {strides = array<i32>} : memref<16x128xf32, #tpu.memory_space<vmem>>, vector<16x128xf32>,
    return
  }
}

</mosaic_0001>

<llo_original>
// kernel: tpu_custom_call.1
$region0: #{tpu_custom_call.1}
  #allocation0 [shape = 'u32[]', space=smem, size = 0x4, offset = 0x4, fixed_abs, tag = 'smem constant byte address 0x4 - core index']
  #allocation1 [shape = 'u32[72,128]{1,0:T(1,128)}', space=vmem, size = 0x9000, scoped, tag = 'internal scratch']
  #allocation2 [shape = 'f32[16,32]{1,0:T(8,128)}', space=vmem, size = 0x2000, scoped, tag = 'scratch operand']
  %s0 = inlined_call_operand.hbm [shape: f32[16,32], index: 0, kind: input, shape index: {}]
  %s1 = inlined_call_operand.hbm [shape: f32[2,32,32], index: 1, kind: input, shape index: {}]
  %s2 = inlined_call_operand.hbm [shape: f32[2,32,32], index: 2, kind: input, shape index: {}]
  %s3 = inlined_call_operand.hbm [shape: f32[2,32,32], index: 3, kind: input, shape index: {}]
  %s4 = inlined_call_operand.hbm [shape: f32[2,32,32], index: 4, kind: input, shape index: {}]
  %s5 = inlined_call_operand.hbm [shape: f32[2,32,32], index: 5, kind: input, shape index: {}]
  %s6 = inlined_call_operand.hbm [shape: f32[2,32,32], index: 6, kind: input, shape index: {}]
  %s7 = inlined_call_operand.vmem [shape: f32[2,1,32], index: 7, kind: input, shape index: {}]
  %s8 = inlined_call_operand.vmem [shape: f32[2,1,32], index: 8, kind: input, shape index: {}]
  %s9 = inlined_call_operand.vmem [shape: f32[2,1,32], index: 9, kind: input, shape index: {}]
  %s10 = inlined_call_operand.vmem [shape: f32[2,1,32], index: 10, kind: input, shape index: {}]
  %s11 = inlined_call_operand.hbm [shape: f32[32,128], index: 11, kind: input, shape index: {}]
  %s12 = inlined_call_operand.vmem [shape: f32[1,128], index: 12, kind: input, shape index: {}]
  %s13 = inlined_call_operand.hbm [shape: f32[16,128], index: 13, kind: output, shape index: {}]
  %s14 = sld [smem:[#allocation0]]
  $region94: #{tpu_custom_call.1} parent=0
    _
  %s16 = ssub.s32 1, %s14
  %s17 = scalar_select 0, %s16, %s14
  $region1: #{tpu_custom_call.1} parent=0
    #allocation3 [shape = 'u8[8192]{0}', space=vmem, size = 0x2000, scoped, tag = 'input window, operand 0, single buffered']
    #allocation4 [shape = 's32[1]{0}', space=sflag, size = 0x4, scoped, tag = 'scoped memory for tpu_custom_call.1']
    #allocation5 [shape = 's32[1]{0}', space=sflag, size = 0x4, scoped, tag = 'scoped memory for tpu_custom_call.1']
    #allocation6 [shape = 'u8[32768]{0}', space=vmem, size = 0x8000, scoped, tag = 'input window, operand 1, single buffered']
    #allocation7 [shape = 's32[1]{0}', space=sflag, size = 0x4, scoped, tag = 'scoped memory for tpu_custom_call.1']
    #allocation8 [shape = 'u8[32768]{0}', space=vmem, size = 0x8000, scoped, tag = 'input window, operand 2, single buffered']
    #allocation9 [shape = 'u8[32768]{0}', space=vmem, size = 0x8000, scoped, tag = 'input window, operand 3, single buffered']
    #allocation10 [shape = 's32[1]{0}', space=sflag, size = 0x4, scoped, tag = 'scoped memory for tpu_custom_call.1']
    #allocation11 [shape = 'u8[32768]{0}', space=vmem, size = 0x8000, scoped, tag = 'input window, operand 4, single buffered']
    #allocation12 [shape = 'u8[32768]{0}', space=vmem, size = 0x8000, scoped, tag = 'input window, operand 5, single buffered']
    #allocation13 [shape = 's32[1]{0}', space=sflag, size = 0x4, scoped, tag = 'scoped memory for tpu_custom_call.1']
    #allocation14 [shape = 'u8[32768]{0}', space=vmem, size = 0x8000, scoped, tag = 'input window, operand 6, single buffered']
    #allocation15 [shape = 'u8[16384]{0}', space=vmem, size = 0x4000, scoped, tag = 'input window, operand 11, single buffered']
    #allocation16 [shape = 's32[1]{0}', space=sflag, size = 0x4, scoped, tag = 'scoped memory for tpu_custom_call.1']
    #allocation17 [shape = 'u8[8192]{0}', space=vmem, size = 0x2000, scoped, tag = 'output window, operand 0, single buffered']
    %18 = vsyncpa [#allocation4], 0
    %19 = vsyncpa [#allocation7], 0
    %20 = vsyncpa [#allocation10], 0
    %21 = vsyncpa [#allocation13], 0
    %22 = vsyncpa [#allocation16], 0
    %23 = vsyncpa [#allocation5], 0
    // Predicated region
    $region2: #{tpu_custom_call.1} parent=1 // pred_check
      _
    $region3: #{tpu_custom_call.1} parent=1 // pred_check_branch
      %25 = sbr.rel (0) target = $region5
    $region4: #{tpu_custom_call.1} parent=1 // pred_region
      %27 = vsyncadd [#allocation4], 0
      %s28 = sshll.u32 %s0, 4
      %s29 = int_to_ptr.hbm [resolvable:$true] %s28
      %s30 = sshll.u32 [#allocation3], 4
      %s31 = int_to_ptr.vmem [resolvable:$true] %s30
      %36 = dma.hbm_to_vmem [thread:$0]  %s29, 256, %s31, [#allocation4], 128, 128, 8
    $region5: #{tpu_custom_call.1} parent=1 // pred_fallthru
      _
    // Predicated region
    $region6: #{tpu_custom_call.1} parent=1 // pred_check
      _
    $region7: #{tpu_custom_call.1} parent=1 // pred_check_branch
      %38 = sbr.rel (0) target = $region9
    $region8: #{tpu_custom_call.1} parent=1 // pred_region
      %40 = vsyncadd [#allocation7], 0
      %s41 = sshll.u32 %s1, 4
      %s42 = int_to_ptr.hbm [resolvable:$true] %s41
      %s43 = sshll.u32 [#allocation6], 4
      %s44 = int_to_ptr.vmem [resolvable:$true] %s43
      %49 = dma.hbm_to_vmem [thread:$0]  %s42, 1024, %s44, [#allocation7], 128, 128, 8
    $region9: #{tpu_custom_call.1} parent=1 // pred_fallthru
      _
    // Predicated region
    $region10: #{tpu_custom_call.1} parent=1 // pred_check
      _
    $region11: #{tpu_custom_call.1} parent=1 // pred_check_branch
      %51 = sbr.rel (0) target = $region13
    $region12: #{tpu_custom_call.1} parent=1 // pred_region
      %53 = vsyncadd [#allocation7], 0
      %s54 = sshll.u32 %s2, 4
      %s55 = int_to_ptr.hbm [resolvable:$true] %s54
      %s56 = sshll.u32 [#allocation8], 4
      %s57 = int_to_ptr.vmem [resolvable:$true] %s56
      %62 = dma.hbm_to_vmem [thread:$0]  %s55, 1024, %s57, [#allocation7], 128, 128, 8
    $region13: #{tpu_custom_call.1} parent=1 // pred_fallthru
      _
    // Predicated region
    $region14: #{tpu_custom_call.1} parent=1 // pred_check
      _
    $region15: #{tpu_custom_call.1} parent=1 // pred_check_branch
      %64 = sbr.rel (0) target = $region17
    $region16: #{tpu_custom_call.1} parent=1 // pred_region
      %66 = vsyncadd [#allocation10], 0
      %s67 = sshll.u32 %s3, 4
      %s68 = int_to_ptr.hbm [resolvable:$true] %s67
      %s69 = sshll.u32 [#allocation9], 4
      %s70 = int_to_ptr.vmem [resolvable:$true] %s69
      %75 = dma.hbm_to_vmem [thread:$0]  %s68, 1024, %s70, [#allocation10], 128, 128, 8
    $region17: #{tpu_custom_call.1} parent=1 // pred_fallthru
      _
    // Predicated region
    $region18: #{tpu_custom_call.1} parent=1 // pred_check
      _
    $region19: #{tpu_custom_call.1} parent=1 // pred_check_branch
      %77 = sbr.rel (0) target = $region21
    $region20: #{tpu_custom_call.1} parent=1 // pred_region
      %79 = vsyncadd [#allocation10], 0
      %s80 = sshll.u32 %s4, 4
      %s81 = int_to_ptr.hbm [resolvable:$true] %s80
      %s82 = sshll.u32 [#allocation11], 4
      %s83 = int_to_ptr.vmem [resolvable:$true] %s82
      %88 = dma.hbm_to_vmem [thread:$0]  %s81, 1024, %s83, [#allocation10], 128, 128, 8
    $region21: #{tpu_custom_call.1} parent=1 // pred_fallthru
      _
    // Predicated region
    $region22: #{tpu_custom_call.1} parent=1 // pred_check
      _
    $region23: #{tpu_custom_call.1} parent=1 // pred_check_branch
      %90 = sbr.rel (0) target = $region25
    $region24: #{tpu_custom_call.1} parent=1 // pred_region
      %92 = vsyncadd [#allocation13], 0
      %s93 = sshll.u32 %s5, 4
      %s94 = int_to_ptr.hbm [resolvable:$true] %s93
      %s95 = sshll.u32 [#allocation12], 4
      %s96 = int_to_ptr.vmem [resolvable:$true] %s95
      %101 = dma.hbm_to_vmem [thread:$0]  %s94, 1024, %s96, [#allocation13], 128, 128, 8
    $region25: #{tpu_custom_call.1} parent=1 // pred_fallthru
      _
    // Predicated region
    $region26: #{tpu_custom_call.1} parent=1 // pred_check
      _
    $region27: #{tpu_custom_call.1} parent=1 // pred_check_branch
      %103 = sbr.rel (0) target = $region29
    $region28: #{tpu_custom_call.1} parent=1 // pred_region
      %105 = vsyncadd [#allocation13], 0
      %s106 = sshll.u32 %s6, 4
      %s107 = int_to_ptr.hbm [resolvable:$true] %s106
      %s108 = sshll.u32 [#allocation14], 4
      %s109 = int_to_ptr.vmem [resolvable:$true] %s108
      %114 = dma.hbm_to_vmem [thread:$0]  %s107, 1024, %s109, [#allocation13], 128, 128, 8
    $region29: #{tpu_custom_call.1} parent=1 // pred_fallthru
      _
    // Predicated region
    $region30: #{tpu_custom_call.1} parent=1 // pred_check
      _
    $region31: #{tpu_custom_call.1} parent=1 // pred_check_branch
      %116 = sbr.rel (0) target = $region33
    $region32: #{tpu_custom_call.1} parent=1 // pred_region
      _
    $region33: #{tpu_custom_call.1} parent=1 // pred_fallthru
      _
    // Predicated region
    $region34: #{tpu_custom_call.1} parent=1 // pred_check
      _
    $region35: #{tpu_custom_call.1} parent=1 // pred_check_branch
      %118 = sbr.rel (0) target = $region37
    $region36: #{tpu_custom_call.1} parent=1 // pred_region
      _
    $region37: #{tpu_custom_call.1} parent=1 // pred_fallthru
      _
    // Predicated region
    $region38: #{tpu_custom_call.1} parent=1 // pred_check
      _
    $region39: #{tpu_custom_call.1} parent=1 // pred_check_branch
      %120 = sbr.rel (0) target = $region41
    $region40: #{tpu_custom_call.1} parent=1 // pred_region
      _
    $region41: #{tpu_custom_call.1} parent=1 // pred_fallthru
      _
    // Predicated region
    $region42: #{tpu_custom_call.1} parent=1 // pred_check
      _
    $region43: #{tpu_custom_call.1} parent=1 // pred_check_branch
      %122 = sbr.rel (0) target = $region45
    $region44: #{tpu_custom_call.1} parent=1 // pred_region
      _
    $region45: #{tpu_custom_call.1} parent=1 // pred_fallthru
      _
    // Predicated region
    $region46: #{tpu_custom_call.1} parent=1 // pred_check
      _
    $region47: #{tpu_custom_call.1} parent=1 // pred_check_branch
      %124 = sbr.rel (0) target = $region49
    $region48: #{tpu_custom_call.1} parent=1 // pred_region
      %126 = vsyncadd [#allocation16], 0
      %s127 = sshll.u32 %s11, 4
      %s128 = int_to_ptr.hbm [resolvable:$true] %s127
      %s129 = sshll.u32 [#allocation15], 4
      %s130 = int_to_ptr.vmem [resolvable:$true] %s129
      %135 = dma.hbm_to_vmem [thread:$0]  %s128, 512, %s130, [#allocation16], 128, 128, 8
    $region49: #{tpu_custom_call.1} parent=1 // pred_fallthru
      _
    // Predicated region
    $region50: #{tpu_custom_call.1} parent=1 // pred_check
      _
    $region51: #{tpu_custom_call.1} parent=1 // pred_check_branch
      %137 = sbr.rel (0) target = $region53
    $region52: #{tpu_custom_call.1} parent=1 // pred_region
      _
    $region53: #{tpu_custom_call.1} parent=1 // pred_fallthru
      _
    // Predicated region
    $region54: #{tpu_custom_call.1} parent=1 // pred_check
      _
    $region55: #{tpu_custom_call.1} parent=1 // pred_check_branch
      %139 = sbr.rel (0) target = $region57
    $region56: #{tpu_custom_call.1} parent=1 // pred_region
      %141 = dma.done [#allocation4], 256
    $region57: #{tpu_custom_call.1} parent=1 // pred_fallthru
      _
    // Predicated region
    $region58: #{tpu_custom_call.1} parent=1 // pred_check
      _
    $region59: #{tpu_custom_call.1} parent=1 // pred_check_branch
      %143 = sbr.rel (0) target = $region61
    $region60: #{tpu_custom_call.1} parent=1 // pred_region
      %145 = dma.done [#allocation7], 1024
    $region61: #{tpu_custom_call.1} parent=1 // pred_fallthru
      _
    // Predicated region
    $region62: #{tpu_custom_call.1} parent=1 // pred_check
      _
    $region63: #{tpu_custom_call.1} parent=1 // pred_check_branch
      %147 = sbr.rel (0) target = $region65
    $region64: #{tpu_custom_call.1} parent=1 // pred_region
      %149 = dma.done [#allocation7], 1024
    $region65: #{tpu_custom_call.1} parent=1 // pred_fallthru
      _
    // Predicated region
    $region66: #{tpu_custom_call.1} parent=1 // pred_check
      _
    $region67: #{tpu_custom_call.1} parent=1 // pred_check_branch
      %151 = sbr.rel (0) target = $region69
    $region68: #{tpu_custom_call.1} parent=1 // pred_region
      %153 = dma.done [#allocation10], 1024
    $region69: #{tpu_custom_call.1} parent=1 // pred_fallthru
      _
    // Predicated region
    $region70: #{tpu_custom_call.1} parent=1 // pred_check
      _
    $region71: #{tpu_custom_call.1} parent=1 // pred_check_branch
      %155 = sbr.rel (0) target = $region73
    $region72: #{tpu_custom_call.1} parent=1 // pred_region
      %157 = dma.done [#allocation10], 1024
    $region73: #{tpu_custom_call.1} parent=1 // pred_fallthru
      _
    // Predicated region
    $region74: #{tpu_custom_call.1} parent=1 // pred_check
      _
    $region75: #{tpu_custom_call.1} parent=1 // pred_check_branch
      %159 = sbr.rel (0) target = $region77
    $region76: #{tpu_custom_call.1} parent=1 // pred_region
      %161 = dma.done [#allocation13], 1024
    $region77: #{tpu_custom_call.1} parent=1 // pred_fallthru
      _
    // Predicated region
    $region78: #{tpu_custom_call.1} parent=1 // pred_check
      _
    $region79: #{tpu_custom_call.1} parent=1 // pred_check_branch
      %163 = sbr.rel (0) target = $region81
    $region80: #{tpu_custom_call.1} parent=1 // pred_region
      %165 = dma.done [#allocation13], 1024
    $region81: #{tpu_custom_call.1} parent=1 // pred_fallthru
      _
    // Predicated region
    $region82: #{tpu_custom_call.1} parent=1 // pred_check
      _
    $region83: #{tpu_custom_call.1} parent=1 // pred_check_branch
      %167 = sbr.rel (0) target = $region85
    $region84: #{tpu_custom_call.1} parent=1 // pred_region
      %169 = dma.done [#allocation16], 512
    $region85: #{tpu_custom_call.1} parent=1 // pred_fallthru
      _
    %v170 = vld [vmem:[#allocation3] sm:$0xff]
    %v171 = vld [vmem:[#allocation3 + $0x8] sm:$0xff]
    %v172 = vld [vmem:[#allocation6] sm:$0xff]
    %v173 = vld [vmem:[#allocation6 + $0x8] sm:$0xff]
    %v174 = vld [vmem:[#allocation6 + $0x10] sm:$0xff]
    %v175 = vld [vmem:[#allocation6 + $0x18] sm:$0xff]
    %vm176 = vcmask 261120
    %v178 = vsel %vm176, %v170, 0
    %v181 = vsel %vm176, %v171, 0
    %183 = vmatpush.msra.mxu0 0.0
    %184 = vmatpush.msra.mxu0 0.0
    %185 = vmatpush.msra.mxu0 0.0
    %186 = vmatpush.msra.mxu0 0.0
    %187 = vmatpush.msra.mxu0 0.0
    %188 = vmatpush.msra.mxu0 0.0
    %189 = vmatpush.msra.mxu0 0.0
    %190 = vmatpush.msra.mxu0 0.0
    %191 = vmatpush.msra.mxu0 0.0
    %192 = vmatpush.msra.mxu0 0.0
    %193 = vmatpush.msra.mxu0 0.0
    %194 = vmatpush.msra.mxu0 0.0
    %195 = vmatpush.msra.mxu0 %v175
    %196 = vmatpush.msra.mxu0 %v174
    %197 = vmatpush.msra.mxu0 %v173
    %198 = vmatpush.msra.mxu0 %v172
    %199 = vmatmul.f32.gmra.mxu0 %v178
    %v200 = vpop.f32.mrf.mxu0
    %v201 = vadd.f32 0.0, %v200
    %202 = vmatmul.f32.gmra.mxu0 %v181
    %v203 = vpop.f32.mrf.mxu0
    %v204 = vadd.f32 0.0, %v203
    %205 = vdwg.mxu0
    %v206 = vld [vmem:[#allocation8] sm:$0xff]
    %v207 = vld [vmem:[#allocation8 + $0x8] sm:$0xff]
    %v208 = vld [vmem:[#allocation8 + $0x10] sm:$0xff]
    %v209 = vld [vmem:[#allocation8 + $0x18] sm:$0xff]
    %210 = vmatpush.msra.mxu0 0.0
    %211 = vmatpush.msra.mxu0 0.0
    %212 = vmatpush.msra.mxu0 0.0
    %213 = vmatpush.msra.mxu0 0.0
    %214 = vmatpush.msra.mxu0 0.0
    %215 = vmatpush.msra.mxu0 0.0
    %216 = vmatpush.msra.mxu0 0.0
    %217 = vmatpush.msra.mxu0 0.0
    %218 = vmatpush.msra.mxu0 0.0
    %219 = vmatpush.msra.mxu0 0.0
    %220 = vmatpush.msra.mxu0 0.0
    %221 = vmatpush.msra.mxu0 0.0
    %222 = vmatpush.msra.mxu0 %v209
    %223 = vmatpush.msra.mxu0 %v208
    %224 = vmatpush.msra.mxu0 %v207
    %225 = vmatpush.msra.mxu0 %v206
    %226 = vmatmul.f32.gmra.mxu0 %v178
    %v227 = vpop.f32.mrf.mxu0
    %v228 = vadd.f32 0.0, %v227
    %229 = vmatmul.f32.gmra.mxu0 %v181
    %v230 = vpop.f32.mrf.mxu0
    %v231 = vadd.f32 0.0, %v230
    %232 = vdwg.mxu0
    %v233 = vld [vmem:[#allocation9] sm:$0xff]
    %v234 = vld [vmem:[#allocation9 + $0x8] sm:$0xff]
    %v235 = vld [vmem:[#allocation9 + $0x10] sm:$0xff]
    %v236 = vld [vmem:[#allocation9 + $0x18] sm:$0xff]
    %237 = vmatpush.msra.mxu0 0.0
    %238 = vmatpush.msra.mxu0 0.0
    %239 = vmatpush.msra.mxu0 0.0
    %240 = vmatpush.msra.mxu0 0.0
    %241 = vmatpush.msra.mxu0 0.0
    %242 = vmatpush.msra.mxu0 0.0
    %243 = vmatpush.msra.mxu0 0.0
    %244 = vmatpush.msra.mxu0 0.0
    %245 = vmatpush.msra.mxu0 0.0
    %246 = vmatpush.msra.mxu0 0.0
    %247 = vmatpush.msra.mxu0 0.0
    %248 = vmatpush.msra.mxu0 0.0
    %249 = vmatpush.msra.mxu0 %v236
    %250 = vmatpush.msra.mxu0 %v235
    %251 = vmatpush.msra.mxu0 %v234
    %252 = vmatpush.msra.mxu0 %v233
    %253 = vmatmul.f32.gmra.mxu0 %v178
    %v254 = vpop.f32.mrf.mxu0
    %v255 = vadd.f32 0.0, %v254
    %256 = vmatmul.f32.gmra.mxu0 %v181
    %v257 = vpop.f32.mrf.mxu0
    %v258 = vadd.f32 0.0, %v257
    %259 = vdwg.mxu0
    %v260 = vld [vmem:[#allocation11] sm:$0xff]
    %v261 = vld [vmem:[#allocation11 + $0x8] sm:$0xff]
    %v262 = vld [vmem:[#allocation11 + $0x10] sm:$0xff]
    %v263 = vld [vmem:[#allocation11 + $0x18] sm:$0xff]
    %v265 = vsel %vm176, 0.0, 0
    %267 = vmatpush.msra.mxu0 0.0
    %268 = vmatpush.msra.mxu0 0.0
    %269 = vmatpush.msra.mxu0 0.0
    %270 = vmatpush.msra.mxu0 0.0
    %271 = vmatpush.msra.mxu0 0.0
    %272 = vmatpush.msra.mxu0 0.0
    %273 = vmatpush.msra.mxu0 0.0
    %274 = vmatpush.msra.mxu0 0.0
    %275 = vmatpush.msra.mxu0 0.0
    %276 = vmatpush.msra.mxu0 0.0
    %277 = vmatpush.msra.mxu0 0.0
    %278 = vmatpush.msra.mxu0 0.0
    %279 = vmatpush.msra.mxu0 %v263
    %280 = vmatpush.msra.mxu0 %v262
    %281 = vmatpush.msra.mxu0 %v261
    %282 = vmatpush.msra.mxu0 %v260
    %283 = vmatmul.f32.gmra.mxu0 %v265
    %v284 = vpop.f32.mrf.mxu0
    %v285 = vadd.f32 0.0, %v284
    %286 = vdwg.mxu0
    %v287 = vadd.f32 %v201, %v285
    %v288 = vld [vmem:[%s7] sm:$0x1]
    %v290 = vperm.slane %v288, 0
    %v292 = vadd.f32 %v287, %v290
    %v293 = vxor.u32 %v292, 2147483648
    %v294 = vmul.f32 %v293, 1.442695
    %v295 = vpow.pop %v294
    %v296 = vadd.f32 %v295, 1.0
    %v297 = vrcp.pop %v296
    %v298 = vmul.f32 %v296, %v297
    %v299 = vsub.f32 1.0, %v298
    %v300 = vmul.f32 %v297, %v299
    %v301 = vadd.f32 %v297, %v300
    %vm302 = vweird.f32 %v296
    %vm303 = vweird.f32 %v297
    %vm304 = vmor %vm302, %vm303
    %v305 = vsel %vm304, %v297, %v301
    %v306 = vand.u32 2147483647, %v296
    %vm307 = vcmp.eq.f32.partialorder %v306, 8.507059e+37
    %v308 = vand.u32 %v296, 2147483648
    %v309 = vor.u32 1.1754944e-38, %v308
    %v310 = vsel %vm307, %v309, %v305
    %v311 = vmul.f32 1.0, %v310
    %v312 = vld [vmem:[#allocation12] sm:$0xff]
    %v313 = vld [vmem:[#allocation12 + $0x8] sm:$0xff]
    %v314 = vld [vmem:[#allocation12 + $0x10] sm:$0xff]
    %v315 = vld [vmem:[#allocation12 + $0x18] sm:$0xff]
    %316 = vmatpush.msra.mxu0 0.0
    %317 = vmatpush.msra.mxu0 0.0
    %318 = vmatpush.msra.mxu0 0.0
    %319 = vmatpush.msra.mxu0 0.0
    %320 = vmatpush.msra.mxu0 0.0
    %321 = vmatpush.msra.mxu0 0.0
    %322 = vmatpush.msra.mxu0 0.0
    %323 = vmatpush.msra.mxu0 0.0
    %324 = vmatpush.msra.mxu0 0.0
    %325 = vmatpush.msra.mxu0 0.0
    %326 = vmatpush.msra.mxu0 0.0
    %327 = vmatpush.msra.mxu0 0.0
    %328 = vmatpush.msra.mxu0 %v315
    %329 = vmatpush.msra.mxu0 %v314
    %330 = vmatpush.msra.mxu0 %v313
    %331 = vmatpush.msra.mxu0 %v312
    %332 = vmatmul.f32.gmra.mxu0 %v265
    %v333 = vpop.f32.mrf.mxu0
    %v334 = vadd.f32 0.0, %v333
    %335 = vdwg.mxu0
    %v336 = vadd.f32 %v228, %v334
    %v337 = vld [vmem:[%s8] sm:$0x1]
    %v339 = vperm.slane %v337, 0
    %v341 = vadd.f32 %v336, %v339
    %v342 = vxor.u32 %v341, 2147483648
    %v343 = vmul.f32 %v342, 1.442695
    %v344 = vpow.pop %v343
    %v345 = vadd.f32 %v344, 1.0
    %v346 = vrcp.pop %v345
    %v347 = vmul.f32 %v345, %v346
    %v348 = vsub.f32 1.0, %v347
    %v349 = vmul.f32 %v346, %v348
    %v350 = vadd.f32 %v346, %v349
    %vm351 = vweird.f32 %v345
    %vm352 = vweird.f32 %v346
    %vm353 = vmor %vm351, %vm352
    %v354 = vsel %vm353, %v346, %v350
    %v355 = vand.u32 2147483647, %v345
    %vm356 = vcmp.eq.f32.partialorder %v355, 8.507059e+37
    %v357 = vand.u32 %v345, 2147483648
    %v358 = vor.u32 1.1754944e-38, %v357
    %v359 = vsel %vm356, %v358, %v354
    %v360 = vmul.f32 1.0, %v359
    %v361 = vld [vmem:[%s9] sm:$0x1]
    %v363 = vperm.slane %v361, 0
    %v365 = vadd.f32 %v255, %v363
    %v366 = vld [vmem:[#allocation14] sm:$0xff]
    %v367 = vld [vmem:[#allocation14 + $0x8] sm:$0xff]
    %v368 = vld [vmem:[#allocation14 + $0x10] sm:$0xff]
    %v369 = vld [vmem:[#allocation14 + $0x18] sm:$0xff]
    %v370 = vld [vmem:[%s10] sm:$0x1]
    %v372 = vperm.slane %v370, 0
    %374 = vmatpush.msra.mxu0 0.0
    %375 = vmatpush.msra.mxu0 0.0
    %376 = vmatpush.msra.mxu0 0.0
    %377 = vmatpush.msra.mxu0 0.0
    %378 = vmatpush.msra.mxu0 0.0
    %379 = vmatpush.msra.mxu0 0.0
    %380 = vmatpush.msra.mxu0 0.0
    %381 = vmatpush.msra.mxu0 0.0
    %382 = vmatpush.msra.mxu0 0.0
    %383 = vmatpush.msra.mxu0 0.0
    %384 = vmatpush.msra.mxu0 0.0
    %385 = vmatpush.msra.mxu0 0.0
    %386 = vmatpush.msra.mxu0 %v369
    %387 = vmatpush.msra.mxu0 %v368
    %388 = vmatpush.msra.mxu0 %v367
    %389 = vmatpush.msra.mxu0 %v366
    %390 = vmatmul.f32.gmra.mxu0 %v265
    %v391 = vpop.f32.mrf.mxu0
    %v392 = vadd.f32 %v372, %v391
    %393 = vdwg.mxu0
    %v394 = vmul.f32 %v311, %v392
    %v395 = vadd.f32 %v365, %v394
    %v396 = vtanh.pop %v395
    %v397 = vsub.f32 1.0, %v360
    %v398 = vmul.f32 %v397, %v396
    %v399 = vmul.f32 %v360, 0.0
    %v400 = vadd.f32 %v398, %v399
    %s401 = scalar_lea.vmem [#allocation6], 32
    %v402 = vld [vmem:[%s401] sm:$0xff]
    %v403 = vld [vmem:[%s401 + $0x8] sm:$0xff]
    %v404 = vld [vmem:[%s401 + $0x10] sm:$0xff]
    %v405 = vld [vmem:[%s401 + $0x18] sm:$0xff]
    %s406 = scalar_lea.vmem [#allocation11], 32
    %v407 = vld [vmem:[%s406] sm:$0xff]
    %v408 = vld [vmem:[%s406 + $0x8] sm:$0xff]
    %v409 = vld [vmem:[%s406 + $0x10] sm:$0xff]
    %v410 = vld [vmem:[%s406 + $0x18] sm:$0xff]
    %v412 = vsel %vm176, %v400, 0
    %414 = vmatpush.msra.mxu0 0.0
    %415 = vmatpush.msra.mxu0 0.0
    %416 = vmatpush.msra.mxu0 0.0
    %417 = vmatpush.msra.mxu0 0.0
    %418 = vmatpush.msra.mxu0 0.0
    %419 = vmatpush.msra.mxu0 0.0
    %420 = vmatpush.msra.mxu0 0.0
    %421 = vmatpush.msra.mxu0 0.0
    %422 = vmatpush.msra.mxu0 0.0
    %423 = vmatpush.msra.mxu0 0.0
    %424 = vmatpush.msra.mxu0 0.0
    %425 = vmatpush.msra.mxu0 0.0
    %426 = vmatpush.msra.mxu0 %v410
    %427 = vmatpush.msra.mxu0 %v409
    %428 = vmatpush.msra.mxu0 %v408
    %429 = vmatpush.msra.mxu0 %v407
    %430 = vmatmul.f32.gmra.mxu0 %v412
    %v431 = vpop.f32.mrf.mxu0
    %v432 = vadd.f32 0.0, %v431
    %433 = vdwg.mxu0
    %434 = vmatpush.msra.mxu0 0.0
    %435 = vmatpush.msra.mxu0 0.0
    %436 = vmatpush.msra.mxu0 0.0
    %437 = vmatpush.msra.mxu0 0.0
    %438 = vmatpush.msra.mxu0 0.0
    %439 = vmatpush.msra.mxu0 0.0
    %440 = vmatpush.msra.mxu0 0.0
    %441 = vmatpush.msra.mxu0 0.0
    %442 = vmatpush.msra.mxu0 0.0
    %443 = vmatpush.msra.mxu0 0.0
    %444 = vmatpush.msra.mxu0 0.0
    %445 = vmatpush.msra.mxu0 0.0
    %446 = vmatpush.msra.mxu0 %v405
    %447 = vmatpush.msra.mxu0 %v404
    %448 = vmatpush.msra.mxu0 %v403
    %449 = vmatpush.msra.mxu0 %v402
    %450 = vmatmul.f32.gmra.mxu0 %v412
    %v451 = vpop.f32.mrf.mxu0
    %v452 = vadd.f32 %v432, %v451
    %453 = vdwg.mxu0
    %s454 = scalar_lea.vmem %s7, 1
    %v455 = vld [vmem:[%s454] sm:$0x1]
    %v457 = vperm.slane %v455, 0
    %v459 = vadd.f32 %v452, %v457
    %v460 = vxor.u32 %v459, 2147483648
    %v461 = vmul.f32 %v460, 1.442695
    %v462 = vpow.pop %v461
    %v463 = vadd.f32 %v462, 1.0
    %v464 = vrcp.pop %v463
    %v465 = vmul.f32 %v463, %v464
    %v466 = vsub.f32 1.0, %v465
    %v467 = vmul.f32 %v464, %v466
    %v468 = vadd.f32 %v464, %v467
    %vm469 = vweird.f32 %v463
    %vm470 = vweird.f32 %v464
    %vm471 = vmor %vm469, %vm470
    %v472 = vsel %vm471, %v464, %v468
    %v473 = vand.u32 2147483647, %v463
    %vm474 = vcmp.eq.f32.partialorder %v473, 8.507059e+37
    %v475 = vand.u32 %v463, 2147483648
    %v476 = vor.u32 1.1754944e-38, %v475
    %v477 = vsel %vm474, %v476, %v472
    %v478 = vmul.f32 1.0, %v477
    %s479 = scalar_lea.vmem [#allocation8], 32
    %v480 = vld [vmem:[%s479] sm:$0xff]
    %v481 = vld [vmem:[%s479 + $0x8] sm:$0xff]
    %v482 = vld [vmem:[%s479 + $0x10] sm:$0xff]
    %v483 = vld [vmem:[%s479 + $0x18] sm:$0xff]
    %s484 = scalar_lea.vmem [#allocation12], 32
    %v485 = vld [vmem:[%s484] sm:$0xff]
    %v486 = vld [vmem:[%s484 + $0x8] sm:$0xff]
    %v487 = vld [vmem:[%s484 + $0x10] sm:$0xff]
    %v488 = vld [vmem:[%s484 + $0x18] sm:$0xff]
    %489 = vmatpush.msra.mxu0 0.0
    %490 = vmatpush.msra.mxu0 0.0
    %491 = vmatpush.msra.mxu0 0.0
    %492 = vmatpush.msra.mxu0 0.0
    %493 = vmatpush.msra.mxu0 0.0
    %494 = vmatpush.msra.mxu0 0.0
    %495 = vmatpush.msra.mxu0 0.0
    %496 = vmatpush.msra.mxu0 0.0
    %497 = vmatpush.msra.mxu0 0.0
    %498 = vmatpush.msra.mxu0 0.0
    %499 = vmatpush.msra.mxu0 0.0
    %500 = vmatpush.msra.mxu0 0.0
    %501 = vmatpush.msra.mxu0 %v488
    %502 = vmatpush.msra.mxu0 %v487
    %503 = vmatpush.msra.mxu0 %v486
    %504 = vmatpush.msra.mxu0 %v485
    %505 = vmatmul.f32.gmra.mxu0 %v412
    %v506 = vpop.f32.mrf.mxu0
    %v507 = vadd.f32 0.0, %v506
    %508 = vdwg.mxu0
    %509 = vmatpush.msra.mxu0 0.0
    %510 = vmatpush.msra.mxu0 0.0
    %511 = vmatpush.msra.mxu0 0.0
    %512 = vmatpush.msra.mxu0 0.0
    %513 = vmatpush.msra.mxu0 0.0
    %514 = vmatpush.msra.mxu0 0.0
    %515 = vmatpush.msra.mxu0 0.0
    %516 = vmatpush.msra.mxu0 0.0
    %517 = vmatpush.msra.mxu0 0.0
    %518 = vmatpush.msra.mxu0 0.0
    %519 = vmatpush.msra.mxu0 0.0
    %520 = vmatpush.msra.mxu0 0.0
    %521 = vmatpush.msra.mxu0 %v483
    %522 = vmatpush.msra.mxu0 %v482
    %523 = vmatpush.msra.mxu0 %v481
    %524 = vmatpush.msra.mxu0 %v480
    %525 = vmatmul.f32.gmra.mxu0 %v412
    %v526 = vpop.f32.mrf.mxu0
    %v527 = vadd.f32 %v507, %v526
    %528 = vdwg.mxu0
    %s529 = scalar_lea.vmem %s8, 1
    %v530 = vld [vmem:[%s529] sm:$0x1]
    %v532 = vperm.slane %v530, 0
    %v534 = vadd.f32 %v527, %v532
    %v535 = vxor.u32 %v534, 2147483648
    %v536 = vmul.f32 %v535, 1.442695
    %v537 = vpow.pop %v536
    %v538 = vadd.f32 %v537, 1.0
    %v539 = vrcp.pop %v538
    %v540 = vmul.f32 %v538, %v539
    %v541 = vsub.f32 1.0, %v540
    %v542 = vmul.f32 %v539, %v541
    %v543 = vadd.f32 %v539, %v542
    %vm544 = vweird.f32 %v538
    %vm545 = vweird.f32 %v539
    %vm546 = vmor %vm544, %vm545
    %v547 = vsel %vm546, %v539, %v543
    %v548 = vand.u32 2147483647, %v538
    %vm549 = vcmp.eq.f32.partialorder %v548, 8.507059e+37
    %v550 = vand.u32 %v538, 2147483648
    %v551 = vor.u32 1.1754944e-38, %v550
    %v552 = vsel %vm549, %v551, %v547
    %v553 = vmul.f32 1.0, %v552
    %s554 = scalar_lea.vmem [#allocation9], 32
    %v555 = vld [vmem:[%s554] sm:$0xff]
    %v556 = vld [vmem:[%s554 + $0x8] sm:$0xff]
    %v557 = vld [vmem:[%s554 + $0x10] sm:$0xff]
    %v558 = vld [vmem:[%s554 + $0x18] sm:$0xff]
    %s559 = scalar_lea.vmem %s9, 1
    %v560 = vld [vmem:[%s559] sm:$0x1]
    %v562 = vperm.slane %v560, 0
    %564 = vmatpush.msra.mxu0 0.0
    %565 = vmatpush.msra.mxu0 0.0
    %566 = vmatpush.msra.mxu0 0.0
    %567 = vmatpush.msra.mxu0 0.0
    %568 = vmatpush.msra.mxu0 0.0
    %569 = vmatpush.msra.mxu0 0.0
    %570 = vmatpush.msra.mxu0 0.0
    %571 = vmatpush.msra.mxu0 0.0
    %572 = vmatpush.msra.mxu0 0.0
    %573 = vmatpush.msra.mxu0 0.0
    %574 = vmatpush.msra.mxu0 0.0
    %575 = vmatpush.msra.mxu0 0.0
    %576 = vmatpush.msra.mxu0 %v558
    %577 = vmatpush.msra.mxu0 %v557
    %578 = vmatpush.msra.mxu0 %v556
    %579 = vmatpush.msra.mxu0 %v555
    %580 = vmatmul.f32.gmra.mxu0 %v412
    %v581 = vpop.f32.mrf.mxu0
    %v582 = vadd.f32 %v562, %v581
    %583 = vdwg.mxu0
    %s584 = scalar_lea.vmem [#allocation14], 32
    %v585 = vld [vmem:[%s584] sm:$0xff]
    %v586 = vld [vmem:[%s584 + $0x8] sm:$0xff]
    %v587 = vld [vmem:[%s584 + $0x10] sm:$0xff]
    %v588 = vld [vmem:[%s584 + $0x18] sm:$0xff]
    %s589 = scalar_lea.vmem %s10, 1
    %v590 = vld [vmem:[%s589] sm:$0x1]
    %v592 = vperm.slane %v590, 0
    %594 = vmatpush.msra.mxu0 0.0
    %595 = vmatpush.msra.mxu0 0.0
    %596 = vmatpush.msra.mxu0 0.0
    %597 = vmatpush.msra.mxu0 0.0
    %598 = vmatpush.msra.mxu0 0.0
    %599 = vmatpush.msra.mxu0 0.0
    %600 = vmatpush.msra.mxu0 0.0
    %601 = vmatpush.msra.mxu0 0.0
    %602 = vmatpush.msra.mxu0 0.0
    %603 = vmatpush.msra.mxu0 0.0
    %604 = vmatpush.msra.mxu0 0.0
    %605 = vmatpush.msra.mxu0 0.0
    %606 = vmatpush.msra.mxu0 %v588
    %607 = vmatpush.msra.mxu0 %v587
    %608 = vmatpush.msra.mxu0 %v586
    %609 = vmatpush.msra.mxu0 %v585
    %610 = vmatmul.f32.gmra.mxu0 %v412
    %v611 = vpop.f32.mrf.mxu0
    %v612 = vadd.f32 %v592, %v611
    %613 = vdwg.mxu0
    %v614 = vmul.f32 %v478, %v612
    %v615 = vadd.f32 %v582, %v614
    %v616 = vtanh.pop %v615
    %v617 = vsub.f32 1.0, %v553
    %v618 = vmul.f32 %v617, %v616
    %v619 = vmul.f32 %v553, %v400
    %v620 = vadd.f32 %v618, %v619
    %vm621 = vcmask 254976
    %622 = vst.msk [vmem:[#allocation2] sm:$0x3] %vm621, %v620
    %v623 = vld [vmem:[#allocation11] sm:$0xff]
    %v624 = vld [vmem:[#allocation11 + $0x8] sm:$0xff]
    %v625 = vld [vmem:[#allocation11 + $0x10] sm:$0xff]
    %v626 = vld [vmem:[#allocation11 + $0x18] sm:$0xff]
    %v628 = vsel %vm176, %v620, 0
    %630 = vmatpush.msra.mxu0 0.0
    %631 = vmatpush.msra.mxu0 0.0
    %632 = vmatpush.msra.mxu0 0.0
    %633 = vmatpush.msra.mxu0 0.0
    %634 = vmatpush.msra.mxu0 0.0
    %635 = vmatpush.msra.mxu0 0.0
    %636 = vmatpush.msra.mxu0 0.0
    %637 = vmatpush.msra.mxu0 0.0
    %638 = vmatpush.msra.mxu0 0.0
    %639 = vmatpush.msra.mxu0 0.0
    %640 = vmatpush.msra.mxu0 0.0
    %641 = vmatpush.msra.mxu0 0.0
    %642 = vmatpush.msra.mxu0 %v626
    %643 = vmatpush.msra.mxu0 %v625
    %644 = vmatpush.msra.mxu0 %v624
    %645 = vmatpush.msra.mxu0 %v623
    %646 = vmatmul.f32.gmra.mxu0 %v628
    %v647 = vpop.f32.mrf.mxu0
    %v648 = vadd.f32 0.0, %v647
    %649 = vdwg.mxu0
    %v651 = vrot.slane %v648, 6
    %v653 = vadd.f32 %v201, %v651
    %v654 = vld [vmem:[%s7] sm:$0x1]
    %v656 = vperm.slane %v654, 0
    %v658 = vadd.f32 %v653, %v656
    %v659 = vxor.u32 %v658, 2147483648
    %v660 = vmul.f32 %v659, 1.442695
    %v661 = vpow.pop %v660
    %v662 = vadd.f32 %v661, 1.0
    %v663 = vrcp.pop %v662
    %v664 = vmul.f32 %v662, %v663
    %v665 = vsub.f32 1.0, %v664
    %v666 = vmul.f32 %v663, %v665
    %v667 = vadd.f32 %v663, %v666
    %vm668 = vweird.f32 %v662
    %vm669 = vweird.f32 %v663
    %vm670 = vmor %vm668, %vm669
    %v671 = vsel %vm670, %v663, %v667
    %v672 = vand.u32 2147483647, %v662
    %vm673 = vcmp.eq.f32.partialorder %v672, 8.507059e+37
    %v674 = vand.u32 %v662, 2147483648
    %v675 = vor.u32 1.1754944e-38, %v674
    %v676 = vsel %vm673, %v675, %v671
    %v677 = vmul.f32 1.0, %v676
    %v678 = vld [vmem:[#allocation12] sm:$0xff]
    %v679 = vld [vmem:[#allocation12 + $0x8] sm:$0xff]
    %v680 = vld [vmem:[#allocation12 + $0x10] sm:$0xff]
    %v681 = vld [vmem:[#allocation12 + $0x18] sm:$0xff]
    %682 = vmatpush.msra.mxu0 0.0
    %683 = vmatpush.msra.mxu0 0.0
    %684 = vmatpush.msra.mxu0 0.0
    %685 = vmatpush.msra.mxu0 0.0
    %686 = vmatpush.msra.mxu0 0.0
    %687 = vmatpush.msra.mxu0 0.0
    %688 = vmatpush.msra.mxu0 0.0
    %689 = vmatpush.msra.mxu0 0.0
    %690 = vmatpush.msra.mxu0 0.0
    %691 = vmatpush.msra.mxu0 0.0
    %692 = vmatpush.msra.mxu0 0.0
    %693 = vmatpush.msra.mxu0 0.0
    %694 = vmatpush.msra.mxu0 %v681
    %695 = vmatpush.msra.mxu0 %v680
    %696 = vmatpush.msra.mxu0 %v679
    %697 = vmatpush.msra.mxu0 %v678
    %698 = vmatmul.f32.gmra.mxu0 %v628
    %v699 = vpop.f32.mrf.mxu0
    %v700 = vadd.f32 0.0, %v699
    %701 = vdwg.mxu0
    %v703 = vrot.slane %v700, 6
    %v705 = vadd.f32 %v228, %v703
    %v706 = vld [vmem:[%s8] sm:$0x1]
    %v708 = vperm.slane %v706, 0
    %v710 = vadd.f32 %v705, %v708
    %v711 = vxor.u32 %v710, 2147483648
    %v712 = vmul.f32 %v711, 1.442695
    %v713 = vpow.pop %v712
    %v714 = vadd.f32 %v713, 1.0
    %v715 = vrcp.pop %v714
    %v716 = vmul.f32 %v714, %v715
    %v717 = vsub.f32 1.0, %v716
    %v718 = vmul.f32 %v715, %v717
    %v719 = vadd.f32 %v715, %v718
    %vm720 = vweird.f32 %v714
    %vm721 = vweird.f32 %v715
    %vm722 = vmor %vm720, %vm721
    %v723 = vsel %vm722, %v715, %v719
    %v724 = vand.u32 2147483647, %v714
    %vm725 = vcmp.eq.f32.partialorder %v724, 8.507059e+37
    %v726 = vand.u32 %v714, 2147483648
    %v727 = vor.u32 1.1754944e-38, %v726
    %v728 = vsel %vm725, %v727, %v723
    %v729 = vmul.f32 1.0, %v728
    %v730 = vld [vmem:[%s9] sm:$0x1]
    %v732 = vperm.slane %v730, 0
    %v734 = vadd.f32 %v255, %v732
    %v735 = vld [vmem:[#allocation14] sm:$0xff]
    %v736 = vld [vmem:[#allocation14 + $0x8] sm:$0xff]
    %v737 = vld [vmem:[#allocation14 + $0x10] sm:$0xff]
    %v738 = vld [vmem:[#allocation14 + $0x18] sm:$0xff]
    %v739 = vld [vmem:[%s10] sm:$0x1]
    %v741 = vperm.slane %v739, 0
    %743 = vmatpush.msra.mxu0 0.0
    %744 = vmatpush.msra.mxu0 0.0
    %745 = vmatpush.msra.mxu0 0.0
    %746 = vmatpush.msra.mxu0 0.0
    %747 = vmatpush.msra.mxu0 0.0
    %748 = vmatpush.msra.mxu0 0.0
    %749 = vmatpush.msra.mxu0 0.0
    %750 = vmatpush.msra.mxu0 0.0
    %751 = vmatpush.msra.mxu0 0.0
    %752 = vmatpush.msra.mxu0 0.0
    %753 = vmatpush.msra.mxu0 0.0
    %754 = vmatpush.msra.mxu0 0.0
    %755 = vmatpush.msra.mxu0 %v738
    %756 = vmatpush.msra.mxu0 %v737
    %757 = vmatpush.msra.mxu0 %v736
    %758 = vmatpush.msra.mxu0 %v735
    %759 = vmatmul.f32.gmra.mxu0 %v628
    %v760 = vpop.f32.mrf.mxu0
    %v761 = vadd.f32 %v741, %v760
    %762 = vdwg.mxu0
    %v764 = vrot.slane %v761, 6
    %v766 = vmul.f32 %v677, %v764
    %v767 = vadd.f32 %v734, %v766
    %v768 = vtanh.pop %v767
    %v769 = vsub.f32 1.0, %v729
    %v770 = vmul.f32 %v769, %v768
    %v771 = vrot.slane %v620, 6
    %v773 = vmul.f32 %v729, %v771
    %v774 = vadd.f32 %v770, %v773
    %v775 = vld [vmem:[%s401] sm:$0xff]
    %v776 = vld [vmem:[%s401 + $0x8] sm:$0xff]
    %v777 = vld [vmem:[%s401 + $0x10] sm:$0xff]
    %v778 = vld [vmem:[%s401 + $0x18] sm:$0xff]
    %v779 = vld [vmem:[%s406] sm:$0xff]
    %v780 = vld [vmem:[%s406 + $0x8] sm:$0xff]
    %v781 = vld [vmem:[%s406 + $0x10] sm:$0xff]
    %v782 = vld [vmem:[%s406 + $0x18] sm:$0xff]
    %v784 = vrot.slane %v774, 2
    %v785 = vsel %vm176, %v784, 0
    %787 = vmatpush.msra.mxu0 0.0
    %788 = vmatpush.msra.mxu0 0.0
    %789 = vmatpush.msra.mxu0 0.0
    %790 = vmatpush.msra.mxu0 0.0
    %791 = vmatpush.msra.mxu0 0.0
    %792 = vmatpush.msra.mxu0 0.0
    %793 = vmatpush.msra.mxu0 0.0
    %794 = vmatpush.msra.mxu0 0.0
    %795 = vmatpush.msra.mxu0 0.0
    %796 = vmatpush.msra.mxu0 0.0
    %797 = vmatpush.msra.mxu0 0.0
    %798 = vmatpush.msra.mxu0 0.0
    %799 = vmatpush.msra.mxu0 %v782
    %800 = vmatpush.msra.mxu0 %v781
    %801 = vmatpush.msra.mxu0 %v780
    %802 = vmatpush.msra.mxu0 %v779
    %803 = vmatmul.f32.gmra.mxu0 %v785
    %v804 = vpop.f32.mrf.mxu0
    %v805 = vadd.f32 0.0, %v804
    %806 = vdwg.mxu0
    %807 = vmatpush.msra.mxu0 0.0
    %808 = vmatpush.msra.mxu0 0.0
    %809 = vmatpush.msra.mxu0 0.0
    %810 = vmatpush.msra.mxu0 0.0
    %811 = vmatpush.msra.mxu0 0.0
    %812 = vmatpush.msra.mxu0 0.0
    %813 = vmatpush.msra.mxu0 0.0
    %814 = vmatpush.msra.mxu0 0.0
    %815 = vmatpush.msra.mxu0 0.0
    %816 = vmatpush.msra.mxu0 0.0
    %817 = vmatpush.msra.mxu0 0.0
    %818 = vmatpush.msra.mxu0 0.0
    %819 = vmatpush.msra.mxu0 %v778
    %820 = vmatpush.msra.mxu0 %v777
    %821 = vmatpush.msra.mxu0 %v776
    %822 = vmatpush.msra.mxu0 %v775
    %823 = vmatmul.f32.gmra.mxu0 %v785
    %v824 = vpop.f32.mrf.mxu0
    %v825 = vadd.f32 %v805, %v824
    %826 = vdwg.mxu0
    %v827 = vld [vmem:[%s454] sm:$0x1]
    %v829 = vperm.slane %v827, 0
    %v831 = vadd.f32 %v825, %v829
    %v832 = vxor.u32 %v831, 2147483648
    %v833 = vmul.f32 %v832, 1.442695
    %v834 = vpow.pop %v833
    %v835 = vadd.f32 %v834, 1.0
    %v836 = vrcp.pop %v835
    %v837 = vmul.f32 %v835, %v836
    %v838 = vsub.f32 1.0, %v837
    %v839 = vmul.f32 %v836, %v838
    %v840 = vadd.f32 %v836, %v839
    %vm841 = vweird.f32 %v835
    %vm842 = vweird.f32 %v836
    %vm843 = vmor %vm841, %vm842
    %v844 = vsel %vm843, %v836, %v840
    %v845 = vand.u32 2147483647, %v835
    %vm846 = vcmp.eq.f32.partialorder %v845, 8.507059e+37
    %v847 = vand.u32 %v835, 2147483648
    %v848 = vor.u32 1.1754944e-38, %v847
    %v849 = vsel %vm846, %v848, %v844
    %v850 = vmul.f32 1.0, %v849
    %v851 = vld [vmem:[%s479] sm:$0xff]
    %v852 = vld [vmem:[%s479 + $0x8] sm:$0xff]
    %v853 = vld [vmem:[%s479 + $0x10] sm:$0xff]
    %v854 = vld [vmem:[%s479 + $0x18] sm:$0xff]
    %v855 = vld [vmem:[%s484] sm:$0xff]
    %v856 = vld [vmem:[%s484 + $0x8] sm:$0xff]
    %v857 = vld [vmem:[%s484 + $0x10] sm:$0xff]
    %v858 = vld [vmem:[%s484 + $0x18] sm:$0xff]
    %859 = vmatpush.msra.mxu0 0.0
    %860 = vmatpush.msra.mxu0 0.0
    %861 = vmatpush.msra.mxu0 0.0
    %862 = vmatpush.msra.mxu0 0.0
    %863 = vmatpush.msra.mxu0 0.0
    %864 = vmatpush.msra.mxu0 0.0
    %865 = vmatpush.msra.mxu0 0.0
    %866 = vmatpush.msra.mxu0 0.0
    %867 = vmatpush.msra.mxu0 0.0
    %868 = vmatpush.msra.mxu0 0.0
    %869 = vmatpush.msra.mxu0 0.0
    %870 = vmatpush.msra.mxu0 0.0
    %871 = vmatpush.msra.mxu0 %v858
    %872 = vmatpush.msra.mxu0 %v857
    %873 = vmatpush.msra.mxu0 %v856
    %874 = vmatpush.msra.mxu0 %v855
    %875 = vmatmul.f32.gmra.mxu0 %v785
    %v876 = vpop.f32.mrf.mxu0
    %v877 = vadd.f32 0.0, %v876
    %878 = vdwg.mxu0
    %879 = vmatpush.msra.mxu0 0.0
    %880 = vmatpush.msra.mxu0 0.0
    %881 = vmatpush.msra.mxu0 0.0
    %882 = vmatpush.msra.mxu0 0.0
    %883 = vmatpush.msra.mxu0 0.0
    %884 = vmatpush.msra.mxu0 0.0
    %885 = vmatpush.msra.mxu0 0.0
    %886 = vmatpush.msra.mxu0 0.0
    %887 = vmatpush.msra.mxu0 0.0
    %888 = vmatpush.msra.mxu0 0.0
    %889 = vmatpush.msra.mxu0 0.0
    %890 = vmatpush.msra.mxu0 0.0
    %891 = vmatpush.msra.mxu0 %v854
    %892 = vmatpush.msra.mxu0 %v853
    %893 = vmatpush.msra.mxu0 %v852
    %894 = vmatpush.msra.mxu0 %v851
    %895 = vmatmul.f32.gmra.mxu0 %v785
    %v896 = vpop.f32.mrf.mxu0
    %v897 = vadd.f32 %v877, %v896
    %898 = vdwg.mxu0
    %v899 = vld [vmem:[%s529] sm:$0x1]
    %v901 = vperm.slane %v899, 0
    %v903 = vadd.f32 %v897, %v901
    %v904 = vxor.u32 %v903, 2147483648
    %v905 = vmul.f32 %v904, 1.442695
    %v906 = vpow.pop %v905
    %v907 = vadd.f32 %v906, 1.0
    %v908 = vrcp.pop %v907
    %v909 = vmul.f32 %v907, %v908
    %v910 = vsub.f32 1.0, %v909
    %v911 = vmul.f32 %v908, %v910
    %v912 = vadd.f32 %v908, %v911
    %vm913 = vweird.f32 %v907
    %vm914 = vweird.f32 %v908
    %vm915 = vmor %vm913, %vm914
    %v916 = vsel %vm915, %v908, %v912
    %v917 = vand.u32 2147483647, %v907
    %vm918 = vcmp.eq.f32.partialorder %v917, 8.507059e+37
    %v919 = vand.u32 %v907, 2147483648
    %v920 = vor.u32 1.1754944e-38, %v919
    %v921 = vsel %vm918, %v920, %v916
    %v922 = vmul.f32 1.0, %v921
    %v923 = vld [vmem:[%s554] sm:$0xff]
    %v924 = vld [vmem:[%s554 + $0x8] sm:$0xff]
    %v925 = vld [vmem:[%s554 + $0x10] sm:$0xff]
    %v926 = vld [vmem:[%s554 + $0x18] sm:$0xff]
    %v927 = vld [vmem:[%s559] sm:$0x1]
    %v929 = vperm.slane %v927, 0
    %931 = vmatpush.msra.mxu0 0.0
    %932 = vmatpush.msra.mxu0 0.0
    %933 = vmatpush.msra.mxu0 0.0
    %934 = vmatpush.msra.mxu0 0.0
    %935 = vmatpush.msra.mxu0 0.0
    %936 = vmatpush.msra.mxu0 0.0
    %937 = vmatpush.msra.mxu0 0.0
    %938 = vmatpush.msra.mxu0 0.0
    %939 = vmatpush.msra.mxu0 0.0
    %940 = vmatpush.msra.mxu0 0.0
    %941 = vmatpush.msra.mxu0 0.0
    %942 = vmatpush.msra.mxu0 0.0
    %943 = vmatpush.msra.mxu0 %v926
    %944 = vmatpush.msra.mxu0 %v925
    %945 = vmatpush.msra.mxu0 %v924
    %946 = vmatpush.msra.mxu0 %v923
    %947 = vmatmul.f32.gmra.mxu0 %v785
    %v948 = vpop.f32.mrf.mxu0
    %v949 = vadd.f32 %v929, %v948
    %950 = vdwg.mxu0
    %v951 = vld [vmem:[%s584] sm:$0xff]
    %v952 = vld [vmem:[%s584 + $0x8] sm:$0xff]
    %v953 = vld [vmem:[%s584 + $0x10] sm:$0xff]
    %v954 = vld [vmem:[%s584 + $0x18] sm:$0xff]
    %v955 = vld [vmem:[%s589] sm:$0x1]
    %v957 = vperm.slane %v955, 0
    %959 = vmatpush.msra.mxu0 0.0
    %960 = vmatpush.msra.mxu0 0.0
    %961 = vmatpush.msra.mxu0 0.0
    %962 = vmatpush.msra.mxu0 0.0
    %963 = vmatpush.msra.mxu0 0.0
    %964 = vmatpush.msra.mxu0 0.0
    %965 = vmatpush.msra.mxu0 0.0
    %966 = vmatpush.msra.mxu0 0.0
    %967 = vmatpush.msra.mxu0 0.0
    %968 = vmatpush.msra.mxu0 0.0
    %969 = vmatpush.msra.mxu0 0.0
    %970 = vmatpush.msra.mxu0 0.0
    %971 = vmatpush.msra.mxu0 %v954
    %972 = vmatpush.msra.mxu0 %v953
    %973 = vmatpush.msra.mxu0 %v952
    %974 = vmatpush.msra.mxu0 %v951
    %975 = vmatmul.f32.gmra.mxu0 %v785
    %v976 = vpop.f32.mrf.mxu0
    %v977 = vadd.f32 %v957, %v976
    %978 = vdwg.mxu0
    %v979 = vmul.f32 %v850, %v977
    %v980 = vadd.f32 %v949, %v979
    %v981 = vtanh.pop %v980
    %v982 = vsub.f32 1.0, %v922
    %v983 = vmul.f32 %v982, %v981
    %v985 = vmul.f32 %v922, %v784
    %v986 = vadd.f32 %v983, %v985
    %987 = vst.msk [vmem:[#allocation2 + $0x2] sm:$0x3] %vm621, %v986
    %v988 = vld [vmem:[#allocation11] sm:$0xff]
    %v989 = vld [vmem:[#allocation11 + $0x8] sm:$0xff]
    %v990 = vld [vmem:[#allocation11 + $0x10] sm:$0xff]
    %v991 = vld [vmem:[#allocation11 + $0x18] sm:$0xff]
    %v993 = vsel %vm176, %v986, 0
    %995 = vmatpush.msra.mxu0 0.0
    %996 = vmatpush.msra.mxu0 0.0
    %997 = vmatpush.msra.mxu0 0.0
    %998 = vmatpush.msra.mxu0 0.0
    %999 = vmatpush.msra.mxu0 0.0
    %1000 = vmatpush.msra.mxu0 0.0
    %1001 = vmatpush.msra.mxu0 0.0
    %1002 = vmatpush.msra.mxu0 0.0
    %1003 = vmatpush.msra.mxu0 0.0
    %1004 = vmatpush.msra.mxu0 0.0
    %1005 = vmatpush.msra.mxu0 0.0
    %1006 = vmatpush.msra.mxu0 0.0
    %1007 = vmatpush.msra.mxu0 %v991
    %1008 = vmatpush.msra.mxu0 %v990
    %1009 = vmatpush.msra.mxu0 %v989
    %1010 = vmatpush.msra.mxu0 %v988
    %1011 = vmatmul.f32.gmra.mxu0 %v993
    %v1012 = vpop.f32.mrf.mxu0
    %v1013 = vadd.f32 0.0, %v1012
    %1014 = vdwg.mxu0
    %v1016 = vrot.slane %v1013, 4
    %v1018 = vadd.f32 %v201, %v1016
    %v1019 = vld [vmem:[%s7] sm:$0x1]
    %v1021 = vperm.slane %v1019, 0
    %v1023 = vadd.f32 %v1018, %v1021
    %v1024 = vxor.u32 %v1023, 2147483648
    %v1025 = vmul.f32 %v1024, 1.442695
    %v1026 = vpow.pop %v1025
    %v1027 = vadd.f32 %v1026, 1.0
    %v1028 = vrcp.pop %v1027
    %v1029 = vmul.f32 %v1027, %v1028
    %v1030 = vsub.f32 1.0, %v1029
    %v1031 = vmul.f32 %v1028, %v1030
    %v1032 = vadd.f32 %v1028, %v1031
    %vm1033 = vweird.f32 %v1027
    %vm1034 = vweird.f32 %v1028
    %vm1035 = vmor %vm1033, %vm1034
    %v1036 = vsel %vm1035, %v1028, %v1032
    %v1037 = vand.u32 2147483647, %v1027
    %vm1038 = vcmp.eq.f32.partialorder %v1037, 8.507059e+37
    %v1039 = vand.u32 %v1027, 2147483648
    %v1040 = vor.u32 1.1754944e-38, %v1039
    %v1041 = vsel %vm1038, %v1040, %v1036
    %v1042 = vmul.f32 1.0, %v1041
    %v1043 = vld [vmem:[#allocation12] sm:$0xff]
    %v1044 = vld [vmem:[#allocation12 + $0x8] sm:$0xff]
    %v1045 = vld [vmem:[#allocation12 + $0x10] sm:$0xff]
    %v1046 = vld [vmem:[#allocation12 + $0x18] sm:$0xff]
    %1047 = vmatpush.msra.mxu0 0.0
    %1048 = vmatpush.msra.mxu0 0.0
    %1049 = vmatpush.msra.mxu0 0.0
    %1050 = vmatpush.msra.mxu0 0.0
    %1051 = vmatpush.msra.mxu0 0.0
    %1052 = vmatpush.msra.mxu0 0.0
    %1053 = vmatpush.msra.mxu0 0.0
    %1054 = vmatpush.msra.mxu0 0.0
    %1055 = vmatpush.msra.mxu0 0.0
    %1056 = vmatpush.msra.mxu0 0.0
    %1057 = vmatpush.msra.mxu0 0.0
    %1058 = vmatpush.msra.mxu0 0.0
    %1059 = vmatpush.msra.mxu0 %v1046
    %1060 = vmatpush.msra.mxu0 %v1045
    %1061 = vmatpush.msra.mxu0 %v1044
    %1062 = vmatpush.msra.mxu0 %v1043
    %1063 = vmatmul.f32.gmra.mxu0 %v993
    %v1064 = vpop.f32.mrf.mxu0
    %v1065 = vadd.f32 0.0, %v1064
    %1066 = vdwg.mxu0
    %v1068 = vrot.slane %v1065, 4
    %v1070 = vadd.f32 %v228, %v1068
    %v1071 = vld [vmem:[%s8] sm:$0x1]
    %v1073 = vperm.slane %v1071, 0
    %v1075 = vadd.f32 %v1070, %v1073
    %v1076 = vxor.u32 %v1075, 2147483648
    %v1077 = vmul.f32 %v1076, 1.442695
    %v1078 = vpow.pop %v1077
    %v1079 = vadd.f32 %v1078, 1.0
    %v1080 = vrcp.pop %v1079
    %v1081 = vmul.f32 %v1079, %v1080
    %v1082 = vsub.f32 1.0, %v1081
    %v1083 = vmul.f32 %v1080, %v1082
    %v1084 = vadd.f32 %v1080, %v1083
    %vm1085 = vweird.f32 %v1079
    %vm1086 = vweird.f32 %v1080
    %vm1087 = vmor %vm1085, %vm1086
    %v1088 = vsel %vm1087, %v1080, %v1084
    %v1089 = vand.u32 2147483647, %v1079
    %vm1090 = vcmp.eq.f32.partialorder %v1089, 8.507059e+37
    %v1091 = vand.u32 %v1079, 2147483648
    %v1092 = vor.u32 1.1754944e-38, %v1091
    %v1093 = vsel %vm1090, %v1092, %v1088
    %v1094 = vmul.f32 1.0, %v1093
    %v1095 = vld [vmem:[%s9] sm:$0x1]
    %v1097 = vperm.slane %v1095, 0
    %v1099 = vadd.f32 %v255, %v1097
    %v1100 = vld [vmem:[#allocation14] sm:$0xff]
    %v1101 = vld [vmem:[#allocation14 + $0x8] sm:$0xff]
    %v1102 = vld [vmem:[#allocation14 + $0x10] sm:$0xff]
    %v1103 = vld [vmem:[#allocation14 + $0x18] sm:$0xff]
    %v1104 = vld [vmem:[%s10] sm:$0x1]
    %v1106 = vperm.slane %v1104, 0
    %1108 = vmatpush.msra.mxu0 0.0
    %1109 = vmatpush.msra.mxu0 0.0
    %1110 = vmatpush.msra.mxu0 0.0
    %1111 = vmatpush.msra.mxu0 0.0
    %1112 = vmatpush.msra.mxu0 0.0
    %1113 = vmatpush.msra.mxu0 0.0
    %1114 = vmatpush.msra.mxu0 0.0
    %1115 = vmatpush.msra.mxu0 0.0
    %1116 = vmatpush.msra.mxu0 0.0
    %1117 = vmatpush.msra.mxu0 0.0
    %1118 = vmatpush.msra.mxu0 0.0
    %1119 = vmatpush.msra.mxu0 0.0
    %1120 = vmatpush.msra.mxu0 %v1103
    %1121 = vmatpush.msra.mxu0 %v1102
    %1122 = vmatpush.msra.mxu0 %v1101
    %1123 = vmatpush.msra.mxu0 %v1100
    %1124 = vmatmul.f32.gmra.mxu0 %v993
    %v1125 = vpop.f32.mrf.mxu0
    %v1126 = vadd.f32 %v1106, %v1125
    %1127 = vdwg.mxu0
    %v1129 = vrot.slane %v1126, 4
    %v1131 = vmul.f32 %v1042, %v1129
    %v1132 = vadd.f32 %v1099, %v1131
    %v1133 = vtanh.pop %v1132
    %v1134 = vsub.f32 1.0, %v1094
    %v1135 = vmul.f32 %v1134, %v1133
    %v1136 = vrot.slane %v986, 4
    %v1138 = vmul.f32 %v1094, %v1136
    %v1139 = vadd.f32 %v1135, %v1138
    %v1140 = vld [vmem:[%s401] sm:$0xff]
    %v1141 = vld [vmem:[%s401 + $0x8] sm:$0xff]
    %v1142 = vld [vmem:[%s401 + $0x10] sm:$0xff]
    %v1143 = vld [vmem:[%s401 + $0x18] sm:$0xff]
    %v1144 = vld [vmem:[%s406] sm:$0xff]
    %v1145 = vld [vmem:[%s406 + $0x8] sm:$0xff]
    %v1146 = vld [vmem:[%s406 + $0x10] sm:$0xff]
    %v1147 = vld [vmem:[%s406 + $0x18] sm:$0xff]
    %v1149 = vrot.slane %v1139, 4
    %v1150 = vsel %vm176, %v1149, 0
    %1152 = vmatpush.msra.mxu0 0.0
    %1153 = vmatpush.msra.mxu0 0.0
    %1154 = vmatpush.msra.mxu0 0.0
    %1155 = vmatpush.msra.mxu0 0.0
    %1156 = vmatpush.msra.mxu0 0.0
    %1157 = vmatpush.msra.mxu0 0.0
    %1158 = vmatpush.msra.mxu0 0.0
    %1159 = vmatpush.msra.mxu0 0.0
    %1160 = vmatpush.msra.mxu0 0.0
    %1161 = vmatpush.msra.mxu0 0.0
    %1162 = vmatpush.msra.mxu0 0.0
    %1163 = vmatpush.msra.mxu0 0.0
    %1164 = vmatpush.msra.mxu0 %v1147
    %1165 = vmatpush.msra.mxu0 %v1146
    %1166 = vmatpush.msra.mxu0 %v1145
    %1167 = vmatpush.msra.mxu0 %v1144
    %1168 = vmatmul.f32.gmra.mxu0 %v1150
    %v1169 = vpop.f32.mrf.mxu0
    %v1170 = vadd.f32 0.0, %v1169
    %1171 = vdwg.mxu0
    %1172 = vmatpush.msra.mxu0 0.0
    %1173 = vmatpush.msra.mxu0 0.0
    %1174 = vmatpush.msra.mxu0 0.0
    %1175 = vmatpush.msra.mxu0 0.0
    %1176 = vmatpush.msra.mxu0 0.0
    %1177 = vmatpush.msra.mxu0 0.0
    %1178 = vmatpush.msra.mxu0 0.0
    %1179 = vmatpush.msra.mxu0 0.0
    %1180 = vmatpush.msra.mxu0 0.0
    %1181 = vmatpush.msra.mxu0 0.0
    %1182 = vmatpush.msra.mxu0 0.0
    %1183 = vmatpush.msra.mxu0 0.0
    %1184 = vmatpush.msra.mxu0 %v1143
    %1185 = vmatpush.msra.mxu0 %v1142
    %1186 = vmatpush.msra.mxu0 %v1141
    %1187 = vmatpush.msra.mxu0 %v1140
    %1188 = vmatmul.f32.gmra.mxu0 %v1150
    %v1189 = vpop.f32.mrf.mxu0
    %v1190 = vadd.f32 %v1170, %v1189
    %1191 = vdwg.mxu0
    %v1192 = vld [vmem:[%s454] sm:$0x1]
    %v1194 = vperm.slane %v1192, 0
    %v1196 = vadd.f32 %v1190, %v1194
    %v1197 = vxor.u32 %v1196, 2147483648
    %v1198 = vmul.f32 %v1197, 1.442695
    %v1199 = vpow.pop %v1198
    %v1200 = vadd.f32 %v1199, 1.0
    %v1201 = vrcp.pop %v1200
    %v1202 = vmul.f32 %v1200, %v1201
    %v1203 = vsub.f32 1.0, %v1202
    %v1204 = vmul.f32 %v1201, %v1203
    %v1205 = vadd.f32 %v1201, %v1204
    %vm1206 = vweird.f32 %v1200
    %vm1207 = vweird.f32 %v1201
    %vm1208 = vmor %vm1206, %vm1207
    %v1209 = vsel %vm1208, %v1201, %v1205
    %v1210 = vand.u32 2147483647, %v1200
    %vm1211 = vcmp.eq.f32.partialorder %v1210, 8.507059e+37
    %v1212 = vand.u32 %v1200, 2147483648
    %v1213 = vor.u32 1.1754944e-38, %v1212
    %v1214 = vsel %vm1211, %v1213, %v1209
    %v1215 = vmul.f32 1.0, %v1214
    %v1216 = vld [vmem:[%s479] sm:$0xff]
    %v1217 = vld [vmem:[%s479 + $0x8] sm:$0xff]
    %v1218 = vld [vmem:[%s479 + $0x10] sm:$0xff]
    %v1219 = vld [vmem:[%s479 + $0x18] sm:$0xff]
    %v1220 = vld [vmem:[%s484] sm:$0xff]
    %v1221 = vld [vmem:[%s484 + $0x8] sm:$0xff]
    %v1222 = vld [vmem:[%s484 + $0x10] sm:$0xff]
    %v1223 = vld [vmem:[%s484 + $0x18] sm:$0xff]
    %1224 = vmatpush.msra.mxu0 0.0
    %1225 = vmatpush.msra.mxu0 0.0
    %1226 = vmatpush.msra.mxu0 0.0
    %1227 = vmatpush.msra.mxu0 0.0
    %1228 = vmatpush.msra.mxu0 0.0
    %1229 = vmatpush.msra.mxu0 0.0
    %1230 = vmatpush.msra.mxu0 0.0
    %1231 = vmatpush.msra.mxu0 0.0
    %1232 = vmatpush.msra.mxu0 0.0
    %1233 = vmatpush.msra.mxu0 0.0
    %1234 = vmatpush.msra.mxu0 0.0
    %1235 = vmatpush.msra.mxu0 0.0
    %1236 = vmatpush.msra.mxu0 %v1223
    %1237 = vmatpush.msra.mxu0 %v1222
    %1238 = vmatpush.msra.mxu0 %v1221
    %1239 = vmatpush.msra.mxu0 %v1220
    %1240 = vmatmul.f32.gmra.mxu0 %v1150
    %v1241 = vpop.f32.mrf.mxu0
    %v1242 = vadd.f32 0.0, %v1241
    %1243 = vdwg.mxu0
    %1244 = vmatpush.msra.mxu0 0.0
    %1245 = vmatpush.msra.mxu0 0.0
    %1246 = vmatpush.msra.mxu0 0.0
    %1247 = vmatpush.msra.mxu0 0.0
    %1248 = vmatpush.msra.mxu0 0.0
    %1249 = vmatpush.msra.mxu0 0.0
    %1250 = vmatpush.msra.mxu0 0.0
    %1251 = vmatpush.msra.mxu0 0.0
    %1252 = vmatpush.msra.mxu0 0.0
    %1253 = vmatpush.msra.mxu0 0.0
    %1254 = vmatpush.msra.mxu0 0.0
    %1255 = vmatpush.msra.mxu0 0.0
    %1256 = vmatpush.msra.mxu0 %v1219
    %1257 = vmatpush.msra.mxu0 %v1218
    %1258 = vmatpush.msra.mxu0 %v1217
    %1259 = vmatpush.msra.mxu0 %v1216
    %1260 = vmatmul.f32.gmra.mxu0 %v1150
    %v1261 = vpop.f32.mrf.mxu0
    %v1262 = vadd.f32 %v1242, %v1261
    %1263 = vdwg.mxu0
    %v1264 = vld [vmem:[%s529] sm:$0x1]
    %v1266 = vperm.slane %v1264, 0
    %v1268 = vadd.f32 %v1262, %v1266
    %v1269 = vxor.u32 %v1268, 2147483648
    %v1270 = vmul.f32 %v1269, 1.442695
    %v1271 = vpow.pop %v1270
    %v1272 = vadd.f32 %v1271, 1.0
    %v1273 = vrcp.pop %v1272
    %v1274 = vmul.f32 %v1272, %v1273
    %v1275 = vsub.f32 1.0, %v1274
    %v1276 = vmul.f32 %v1273, %v1275
    %v1277 = vadd.f32 %v1273, %v1276
    %vm1278 = vweird.f32 %v1272
    %vm1279 = vweird.f32 %v1273
    %vm1280 = vmor %vm1278, %vm1279
    %v1281 = vsel %vm1280, %v1273, %v1277
    %v1282 = vand.u32 2147483647, %v1272
    %vm1283 = vcmp.eq.f32.partialorder %v1282, 8.507059e+37
    %v1284 = vand.u32 %v1272, 2147483648
    %v1285 = vor.u32 1.1754944e-38, %v1284
    %v1286 = vsel %vm1283, %v1285, %v1281
    %v1287 = vmul.f32 1.0, %v1286
    %v1288 = vld [vmem:[%s554] sm:$0xff]
    %v1289 = vld [vmem:[%s554 + $0x8] sm:$0xff]
    %v1290 = vld [vmem:[%s554 + $0x10] sm:$0xff]
    %v1291 = vld [vmem:[%s554 + $0x18] sm:$0xff]
    %v1292 = vld [vmem:[%s559] sm:$0x1]
    %v1294 = vperm.slane %v1292, 0
    %1296 = vmatpush.msra.mxu0 0.0
    %1297 = vmatpush.msra.mxu0 0.0
    %1298 = vmatpush.msra.mxu0 0.0
    %1299 = vmatpush.msra.mxu0 0.0
    %1300 = vmatpush.msra.mxu0 0.0
    %1301 = vmatpush.msra.mxu0 0.0
    %1302 = vmatpush.msra.mxu0 0.0
    %1303 = vmatpush.msra.mxu0 0.0
    %1304 = vmatpush.msra.mxu0 0.0
    %1305 = vmatpush.msra.mxu0 0.0
    %1306 = vmatpush.msra.mxu0 0.0
    %1307 = vmatpush.msra.mxu0 0.0
    %1308 = vmatpush.msra.mxu0 %v1291
    %1309 = vmatpush.msra.mxu0 %v1290
    %1310 = vmatpush.msra.mxu0 %v1289
    %1311 = vmatpush.msra.mxu0 %v1288
    %1312 = vmatmul.f32.gmra.mxu0 %v1150
    %v1313 = vpop.f32.mrf.mxu0
    %v1314 = vadd.f32 %v1294, %v1313
    %1315 = vdwg.mxu0
    %v1316 = vld [vmem:[%s584] sm:$0xff]
    %v1317 = vld [vmem:[%s584 + $0x8] sm:$0xff]
    %v1318 = vld [vmem:[%s584 + $0x10] sm:$0xff]
    %v1319 = vld [vmem:[%s584 + $0x18] sm:$0xff]
    %v1320 = vld [vmem:[%s589] sm:$0x1]
    %v1322 = vperm.slane %v1320, 0
    %1324 = vmatpush.msra.mxu0 0.0
    %1325 = vmatpush.msra.mxu0 0.0
    %1326 = vmatpush.msra.mxu0 0.0
    %1327 = vmatpush.msra.mxu0 0.0
    %1328 = vmatpush.msra.mxu0 0.0
    %1329 = vmatpush.msra.mxu0 0.0
    %1330 = vmatpush.msra.mxu0 0.0
    %1331 = vmatpush.msra.mxu0 0.0
    %1332 = vmatpush.msra.mxu0 0.0
    %1333 = vmatpush.msra.mxu0 0.0
    %1334 = vmatpush.msra.mxu0 0.0
    %1335 = vmatpush.msra.mxu0 0.0
    %1336 = vmatpush.msra.mxu0 %v1319
    %1337 = vmatpush.msra.mxu0 %v1318
    %1338 = vmatpush.msra.mxu0 %v1317
    %1339 = vmatpush.msra.mxu0 %v1316
    %1340 = vmatmul.f32.gmra.mxu0 %v1150
    %v1341 = vpop.f32.mrf.mxu0
    %v1342 = vadd.f32 %v1322, %v1341
    %1343 = vdwg.mxu0
    %v1344 = vmul.f32 %v1215, %v1342
    %v1345 = vadd.f32 %v1314, %v1344
    %v1346 = vtanh.pop %v1345
    %v1347 = vsub.f32 1.0, %v1287
    %v1348 = vmul.f32 %v1347, %v1346
    %v1350 = vmul.f32 %v1287, %v1149
    %v1351 = vadd.f32 %v1348, %v1350
    %1352 = vst.msk [vmem:[#allocation2 + $0x4] sm:$0x3] %vm621, %v1351
    %v1353 = vld [vmem:[#allocation11] sm:$0xff]
    %v1354 = vld [vmem:[#allocation11 + $0x8] sm:$0xff]
    %v1355 = vld [vmem:[#allocation11 + $0x10] sm:$0xff]
    %v1356 = vld [vmem:[#allocation11 + $0x18] sm:$0xff]
    %v1358 = vsel %vm176, %v1351, 0
    %1360 = vmatpush.msra.mxu0 0.0
    %1361 = vmatpush.msra.mxu0 0.0
    %1362 = vmatpush.msra.mxu0 0.0
    %1363 = vmatpush.msra.mxu0 0.0
    %1364 = vmatpush.msra.mxu0 0.0
    %1365 = vmatpush.msra.mxu0 0.0
    %1366 = vmatpush.msra.mxu0 0.0
    %1367 = vmatpush.msra.mxu0 0.0
    %1368 = vmatpush.msra.mxu0 0.0
    %1369 = vmatpush.msra.mxu0 0.0
    %1370 = vmatpush.msra.mxu0 0.0
    %1371 = vmatpush.msra.mxu0 0.0
    %1372 = vmatpush.msra.mxu0 %v1356
    %1373 = vmatpush.msra.mxu0 %v1355
    %1374 = vmatpush.msra.mxu0 %v1354
    %1375 = vmatpush.msra.mxu0 %v1353
    %1376 = vmatmul.f32.gmra.mxu0 %v1358
    %v1377 = vpop.f32.mrf.mxu0
    %v1378 = vadd.f32 0.0, %v1377
    %1379 = vdwg.mxu0
    %v1381 = vrot.slane %v1378, 2
    %v1383 = vadd.f32 %v201, %v1381
    %v1384 = vld [vmem:[%s7] sm:$0x1]
    %v1386 = vperm.slane %v1384, 0
    %v1388 = vadd.f32 %v1383, %v1386
    %v1389 = vxor.u32 %v1388, 2147483648
    %v1390 = vmul.f32 %v1389, 1.442695
    %v1391 = vpow.pop %v1390
    %v1392 = vadd.f32 %v1391, 1.0
    %v1393 = vrcp.pop %v1392
    %v1394 = vmul.f32 %v1392, %v1393
    %v1395 = vsub.f32 1.0, %v1394
    %v1396 = vmul.f32 %v1393, %v1395
    %v1397 = vadd.f32 %v1393, %v1396
    %vm1398 = vweird.f32 %v1392
    %vm1399 = vweird.f32 %v1393
    %vm1400 = vmor %vm1398, %vm1399
    %v1401 = vsel %vm1400, %v1393, %v1397
    %v1402 = vand.u32 2147483647, %v1392
    %vm1403 = vcmp.eq.f32.partialorder %v1402, 8.507059e+37
    %v1404 = vand.u32 %v1392, 2147483648
    %v1405 = vor.u32 1.1754944e-38, %v1404
    %v1406 = vsel %vm1403, %v1405, %v1401
    %v1407 = vmul.f32 1.0, %v1406
    %v1408 = vld [vmem:[#allocation12] sm:$0xff]
    %v1409 = vld [vmem:[#allocation12 + $0x8] sm:$0xff]
    %v1410 = vld [vmem:[#allocation12 + $0x10] sm:$0xff]
    %v1411 = vld [vmem:[#allocation12 + $0x18] sm:$0xff]
    %1412 = vmatpush.msra.mxu0 0.0
    %1413 = vmatpush.msra.mxu0 0.0
    %1414 = vmatpush.msra.mxu0 0.0
    %1415 = vmatpush.msra.mxu0 0.0
    %1416 = vmatpush.msra.mxu0 0.0
    %1417 = vmatpush.msra.mxu0 0.0
    %1418 = vmatpush.msra.mxu0 0.0
    %1419 = vmatpush.msra.mxu0 0.0
    %1420 = vmatpush.msra.mxu0 0.0
    %1421 = vmatpush.msra.mxu0 0.0
    %1422 = vmatpush.msra.mxu0 0.0
    %1423 = vmatpush.msra.mxu0 0.0
    %1424 = vmatpush.msra.mxu0 %v1411
    %1425 = vmatpush.msra.mxu0 %v1410
    %1426 = vmatpush.msra.mxu0 %v1409
    %1427 = vmatpush.msra.mxu0 %v1408
    %1428 = vmatmul.f32.gmra.mxu0 %v1358
    %v1429 = vpop.f32.mrf.mxu0
    %v1430 = vadd.f32 0.0, %v1429
    %1431 = vdwg.mxu0
    %v1433 = vrot.slane %v1430, 2
    %v1435 = vadd.f32 %v228, %v1433
    %v1436 = vld [vmem:[%s8] sm:$0x1]
    %v1438 = vperm.slane %v1436, 0
    %v1440 = vadd.f32 %v1435, %v1438
    %v1441 = vxor.u32 %v1440, 2147483648
    %v1442 = vmul.f32 %v1441, 1.442695
    %v1443 = vpow.pop %v1442
    %v1444 = vadd.f32 %v1443, 1.0
    %v1445 = vrcp.pop %v1444
    %v1446 = vmul.f32 %v1444, %v1445
    %v1447 = vsub.f32 1.0, %v1446
    %v1448 = vmul.f32 %v1445, %v1447
    %v1449 = vadd.f32 %v1445, %v1448
    %vm1450 = vweird.f32 %v1444
    %vm1451 = vweird.f32 %v1445
    %vm1452 = vmor %vm1450, %vm1451
    %v1453 = vsel %vm1452, %v1445, %v1449
    %v1454 = vand.u32 2147483647, %v1444
    %vm1455 = vcmp.eq.f32.partialorder %v1454, 8.507059e+37
    %v1456 = vand.u32 %v1444, 2147483648
    %v1457 = vor.u32 1.1754944e-38, %v1456
    %v1458 = vsel %vm1455, %v1457, %v1453
    %v1459 = vmul.f32 1.0, %v1458
    %v1460 = vld [vmem:[%s9] sm:$0x1]
    %v1462 = vperm.slane %v1460, 0
    %v1464 = vadd.f32 %v255, %v1462
    %v1465 = vld [vmem:[#allocation14] sm:$0xff]
    %v1466 = vld [vmem:[#allocation14 + $0x8] sm:$0xff]
    %v1467 = vld [vmem:[#allocation14 + $0x10] sm:$0xff]
    %v1468 = vld [vmem:[#allocation14 + $0x18] sm:$0xff]
    %v1469 = vld [vmem:[%s10] sm:$0x1]
    %v1471 = vperm.slane %v1469, 0
    %1473 = vmatpush.msra.mxu0 0.0
    %1474 = vmatpush.msra.mxu0 0.0
    %1475 = vmatpush.msra.mxu0 0.0
    %1476 = vmatpush.msra.mxu0 0.0
    %1477 = vmatpush.msra.mxu0 0.0
    %1478 = vmatpush.msra.mxu0 0.0
    %1479 = vmatpush.msra.mxu0 0.0
    %1480 = vmatpush.msra.mxu0 0.0
    %1481 = vmatpush.msra.mxu0 0.0
    %1482 = vmatpush.msra.mxu0 0.0
    %1483 = vmatpush.msra.mxu0 0.0
    %1484 = vmatpush.msra.mxu0 0.0
    %1485 = vmatpush.msra.mxu0 %v1468
    %1486 = vmatpush.msra.mxu0 %v1467
    %1487 = vmatpush.msra.mxu0 %v1466
    %1488 = vmatpush.msra.mxu0 %v1465
    %1489 = vmatmul.f32.gmra.mxu0 %v1358
    %v1490 = vpop.f32.mrf.mxu0
    %v1491 = vadd.f32 %v1471, %v1490
    %1492 = vdwg.mxu0
    %v1494 = vrot.slane %v1491, 2
    %v1496 = vmul.f32 %v1407, %v1494
    %v1497 = vadd.f32 %v1464, %v1496
    %v1498 = vtanh.pop %v1497
    %v1499 = vsub.f32 1.0, %v1459
    %v1500 = vmul.f32 %v1499, %v1498
    %v1501 = vrot.slane %v1351, 2
    %v1503 = vmul.f32 %v1459, %v1501
    %v1504 = vadd.f32 %v1500, %v1503
    %v1505 = vld [vmem:[%s401] sm:$0xff]
    %v1506 = vld [vmem:[%s401 + $0x8] sm:$0xff]
    %v1507 = vld [vmem:[%s401 + $0x10] sm:$0xff]
    %v1508 = vld [vmem:[%s401 + $0x18] sm:$0xff]
    %v1509 = vld [vmem:[%s406] sm:$0xff]
    %v1510 = vld [vmem:[%s406 + $0x8] sm:$0xff]
    %v1511 = vld [vmem:[%s406 + $0x10] sm:$0xff]
    %v1512 = vld [vmem:[%s406 + $0x18] sm:$0xff]
    %v1514 = vrot.slane %v1504, 6
    %v1515 = vsel %vm176, %v1514, 0
    %1517 = vmatpush.msra.mxu0 0.0
    %1518 = vmatpush.msra.mxu0 0.0
    %1519 = vmatpush.msra.mxu0 0.0
    %1520 = vmatpush.msra.mxu0 0.0
    %1521 = vmatpush.msra.mxu0 0.0
    %1522 = vmatpush.msra.mxu0 0.0
    %1523 = vmatpush.msra.mxu0 0.0
    %1524 = vmatpush.msra.mxu0 0.0
    %1525 = vmatpush.msra.mxu0 0.0
    %1526 = vmatpush.msra.mxu0 0.0
    %1527 = vmatpush.msra.mxu0 0.0
    %1528 = vmatpush.msra.mxu0 0.0
    %1529 = vmatpush.msra.mxu0 %v1512
    %1530 = vmatpush.msra.mxu0 %v1511
    %1531 = vmatpush.msra.mxu0 %v1510
    %1532 = vmatpush.msra.mxu0 %v1509
    %1533 = vmatmul.f32.gmra.mxu0 %v1515
    %v1534 = vpop.f32.mrf.mxu0
    %v1535 = vadd.f32 0.0, %v1534
    %1536 = vdwg.mxu0
    %1537 = vmatpush.msra.mxu0 0.0
    %1538 = vmatpush.msra.mxu0 0.0
    %1539 = vmatpush.msra.mxu0 0.0
    %1540 = vmatpush.msra.mxu0 0.0
    %1541 = vmatpush.msra.mxu0 0.0
    %1542 = vmatpush.msra.mxu0 0.0
    %1543 = vmatpush.msra.mxu0 0.0
    %1544 = vmatpush.msra.mxu0 0.0
    %1545 = vmatpush.msra.mxu0 0.0
    %1546 = vmatpush.msra.mxu0 0.0
    %1547 = vmatpush.msra.mxu0 0.0
    %1548 = vmatpush.msra.mxu0 0.0
    %1549 = vmatpush.msra.mxu0 %v1508
    %1550 = vmatpush.msra.mxu0 %v1507
    %1551 = vmatpush.msra.mxu0 %v1506
    %1552 = vmatpush.msra.mxu0 %v1505
    %1553 = vmatmul.f32.gmra.mxu0 %v1515
    %v1554 = vpop.f32.mrf.mxu0
    %v1555 = vadd.f32 %v1535, %v1554
    %1556 = vdwg.mxu0
    %v1557 = vld [vmem:[%s454] sm:$0x1]
    %v1559 = vperm.slane %v1557, 0
    %v1561 = vadd.f32 %v1555, %v1559
    %v1562 = vxor.u32 %v1561, 2147483648
    %v1563 = vmul.f32 %v1562, 1.442695
    %v1564 = vpow.pop %v1563
    %v1565 = vadd.f32 %v1564, 1.0
    %v1566 = vrcp.pop %v1565
    %v1567 = vmul.f32 %v1565, %v1566
    %v1568 = vsub.f32 1.0, %v1567
    %v1569 = vmul.f32 %v1566, %v1568
    %v1570 = vadd.f32 %v1566, %v1569
    %vm1571 = vweird.f32 %v1565
    %vm1572 = vweird.f32 %v1566
    %vm1573 = vmor %vm1571, %vm1572
    %v1574 = vsel %vm1573, %v1566, %v1570
    %v1575 = vand.u32 2147483647, %v1565
    %vm1576 = vcmp.eq.f32.partialorder %v1575, 8.507059e+37
    %v1577 = vand.u32 %v1565, 2147483648
    %v1578 = vor.u32 1.1754944e-38, %v1577
    %v1579 = vsel %vm1576, %v1578, %v1574
    %v1580 = vmul.f32 1.0, %v1579
    %v1581 = vld [vmem:[%s479] sm:$0xff]
    %v1582 = vld [vmem:[%s479 + $0x8] sm:$0xff]
    %v1583 = vld [vmem:[%s479 + $0x10] sm:$0xff]
    %v1584 = vld [vmem:[%s479 + $0x18] sm:$0xff]
    %v1585 = vld [vmem:[%s484] sm:$0xff]
    %v1586 = vld [vmem:[%s484 + $0x8] sm:$0xff]
    %v1587 = vld [vmem:[%s484 + $0x10] sm:$0xff]
    %v1588 = vld [vmem:[%s484 + $0x18] sm:$0xff]
    %1589 = vmatpush.msra.mxu0 0.0
    %1590 = vmatpush.msra.mxu0 0.0
    %1591 = vmatpush.msra.mxu0 0.0
    %1592 = vmatpush.msra.mxu0 0.0
    %1593 = vmatpush.msra.mxu0 0.0
    %1594 = vmatpush.msra.mxu0 0.0
    %1595 = vmatpush.msra.mxu0 0.0
    %1596 = vmatpush.msra.mxu0 0.0
    %1597 = vmatpush.msra.mxu0 0.0
    %1598 = vmatpush.msra.mxu0 0.0
    %1599 = vmatpush.msra.mxu0 0.0
    %1600 = vmatpush.msra.mxu0 0.0
    %1601 = vmatpush.msra.mxu0 %v1588
    %1602 = vmatpush.msra.mxu0 %v1587
    %1603 = vmatpush.msra.mxu0 %v1586
    %1604 = vmatpush.msra.mxu0 %v1585
    %1605 = vmatmul.f32.gmra.mxu0 %v1515
    %v1606 = vpop.f32.mrf.mxu0
    %v1607 = vadd.f32 0.0, %v1606
    %1608 = vdwg.mxu0
    %1609 = vmatpush.msra.mxu0 0.0
    %1610 = vmatpush.msra.mxu0 0.0
    %1611 = vmatpush.msra.mxu0 0.0
    %1612 = vmatpush.msra.mxu0 0.0
    %1613 = vmatpush.msra.mxu0 0.0
    %1614 = vmatpush.msra.mxu0 0.0
    %1615 = vmatpush.msra.mxu0 0.0
    %1616 = vmatpush.msra.mxu0 0.0
    %1617 = vmatpush.msra.mxu0 0.0
    %1618 = vmatpush.msra.mxu0 0.0
    %1619 = vmatpush.msra.mxu0 0.0
    %1620 = vmatpush.msra.mxu0 0.0
    %1621 = vmatpush.msra.mxu0 %v1584
    %1622 = vmatpush.msra.mxu0 %v1583
    %1623 = vmatpush.msra.mxu0 %v1582
    %1624 = vmatpush.msra.mxu0 %v1581
    %1625 = vmatmul.f32.gmra.mxu0 %v1515
    %v1626 = vpop.f32.mrf.mxu0
    %v1627 = vadd.f32 %v1607, %v1626
    %1628 = vdwg.mxu0
    %v1629 = vld [vmem:[%s529] sm:$0x1]
    %v1631 = vperm.slane %v1629, 0
    %v1633 = vadd.f32 %v1627, %v1631
    %v1634 = vxor.u32 %v1633, 2147483648
    %v1635 = vmul.f32 %v1634, 1.442695
    %v1636 = vpow.pop %v1635
    %v1637 = vadd.f32 %v1636, 1.0
    %v1638 = vrcp.pop %v1637
    %v1639 = vmul.f32 %v1637, %v1638
    %v1640 = vsub.f32 1.0, %v1639
    %v1641 = vmul.f32 %v1638, %v1640
    %v1642 = vadd.f32 %v1638, %v1641
    %vm1643 = vweird.f32 %v1637
    %vm1644 = vweird.f32 %v1638
    %vm1645 = vmor %vm1643, %vm1644
    %v1646 = vsel %vm1645, %v1638, %v1642
    %v1647 = vand.u32 2147483647, %v1637
    %vm1648 = vcmp.eq.f32.partialorder %v1647, 8.507059e+37
    %v1649 = vand.u32 %v1637, 2147483648
    %v1650 = vor.u32 1.1754944e-38, %v1649
    %v1651 = vsel %vm1648, %v1650, %v1646
    %v1652 = vmul.f32 1.0, %v1651
    %v1653 = vld [vmem:[%s554] sm:$0xff]
    %v1654 = vld [vmem:[%s554 + $0x8] sm:$0xff]
    %v1655 = vld [vmem:[%s554 + $0x10] sm:$0xff]
    %v1656 = vld [vmem:[%s554 + $0x18] sm:$0xff]
    %v1657 = vld [vmem:[%s559] sm:$0x1]
    %v1659 = vperm.slane %v1657, 0
    %1661 = vmatpush.msra.mxu0 0.0
    %1662 = vmatpush.msra.mxu0 0.0
    %1663 = vmatpush.msra.mxu0 0.0
    %1664 = vmatpush.msra.mxu0 0.0
    %1665 = vmatpush.msra.mxu0 0.0
    %1666 = vmatpush.msra.mxu0 0.0
    %1667 = vmatpush.msra.mxu0 0.0
    %1668 = vmatpush.msra.mxu0 0.0
    %1669 = vmatpush.msra.mxu0 0.0
    %1670 = vmatpush.msra.mxu0 0.0
    %1671 = vmatpush.msra.mxu0 0.0
    %1672 = vmatpush.msra.mxu0 0.0
    %1673 = vmatpush.msra.mxu0 %v1656
    %1674 = vmatpush.msra.mxu0 %v1655
    %1675 = vmatpush.msra.mxu0 %v1654
    %1676 = vmatpush.msra.mxu0 %v1653
    %1677 = vmatmul.f32.gmra.mxu0 %v1515
    %v1678 = vpop.f32.mrf.mxu0
    %v1679 = vadd.f32 %v1659, %v1678
    %1680 = vdwg.mxu0
    %v1681 = vld [vmem:[%s584] sm:$0xff]
    %v1682 = vld [vmem:[%s584 + $0x8] sm:$0xff]
    %v1683 = vld [vmem:[%s584 + $0x10] sm:$0xff]
    %v1684 = vld [vmem:[%s584 + $0x18] sm:$0xff]
    %v1685 = vld [vmem:[%s589] sm:$0x1]
    %v1687 = vperm.slane %v1685, 0
    %1689 = vmatpush.msra.mxu0 0.0
    %1690 = vmatpush.msra.mxu0 0.0
    %1691 = vmatpush.msra.mxu0 0.0
    %1692 = vmatpush.msra.mxu0 0.0
    %1693 = vmatpush.msra.mxu0 0.0
    %1694 = vmatpush.msra.mxu0 0.0
    %1695 = vmatpush.msra.mxu0 0.0
    %1696 = vmatpush.msra.mxu0 0.0
    %1697 = vmatpush.msra.mxu0 0.0
    %1698 = vmatpush.msra.mxu0 0.0
    %1699 = vmatpush.msra.mxu0 0.0
    %1700 = vmatpush.msra.mxu0 0.0
    %1701 = vmatpush.msra.mxu0 %v1684
    %1702 = vmatpush.msra.mxu0 %v1683
    %1703 = vmatpush.msra.mxu0 %v1682
    %1704 = vmatpush.msra.mxu0 %v1681
    %1705 = vmatmul.f32.gmra.mxu0 %v1515
    %v1706 = vpop.f32.mrf.mxu0
    %v1707 = vadd.f32 %v1687, %v1706
    %1708 = vdwg.mxu0
    %v1709 = vmul.f32 %v1580, %v1707
    %v1710 = vadd.f32 %v1679, %v1709
    %v1711 = vtanh.pop %v1710
    %v1712 = vsub.f32 1.0, %v1652
    %v1713 = vmul.f32 %v1712, %v1711
    %v1715 = vmul.f32 %v1652, %v1514
    %v1716 = vadd.f32 %v1713, %v1715
    %1717 = vst.msk [vmem:[#allocation2 + $0x6] sm:$0x3] %vm621, %v1716
    %v1718 = vld [vmem:[#allocation11] sm:$0xff]
    %v1719 = vld [vmem:[#allocation11 + $0x8] sm:$0xff]
    %v1720 = vld [vmem:[#allocation11 + $0x10] sm:$0xff]
    %v1721 = vld [vmem:[#allocation11 + $0x18] sm:$0xff]
    %v1723 = vsel %vm176, %v1716, 0
    %1725 = vmatpush.msra.mxu0 0.0
    %1726 = vmatpush.msra.mxu0 0.0
    %1727 = vmatpush.msra.mxu0 0.0
    %1728 = vmatpush.msra.mxu0 0.0
    %1729 = vmatpush.msra.mxu0 0.0
    %1730 = vmatpush.msra.mxu0 0.0
    %1731 = vmatpush.msra.mxu0 0.0
    %1732 = vmatpush.msra.mxu0 0.0
    %1733 = vmatpush.msra.mxu0 0.0
    %1734 = vmatpush.msra.mxu0 0.0
    %1735 = vmatpush.msra.mxu0 0.0
    %1736 = vmatpush.msra.mxu0 0.0
    %1737 = vmatpush.msra.mxu0 %v1721
    %1738 = vmatpush.msra.mxu0 %v1720
    %1739 = vmatpush.msra.mxu0 %v1719
    %1740 = vmatpush.msra.mxu0 %v1718
    %1741 = vmatmul.f32.gmra.mxu0 %v1723
    %v1742 = vpop.f32.mrf.mxu0
    %v1743 = vadd.f32 0.0, %v1742
    %1744 = vdwg.mxu0
    %v1745 = vadd.f32 %v204, %v1743
    %v1746 = vld [vmem:[%s7] sm:$0x1]
    %v1748 = vperm.slane %v1746, 0
    %v1750 = vadd.f32 %v1745, %v1748
    %v1751 = vxor.u32 %v1750, 2147483648
    %v1752 = vmul.f32 %v1751, 1.442695
    %v1753 = vpow.pop %v1752
    %v1754 = vadd.f32 %v1753, 1.0
    %v1755 = vrcp.pop %v1754
    %v1756 = vmul.f32 %v1754, %v1755
    %v1757 = vsub.f32 1.0, %v1756
    %v1758 = vmul.f32 %v1755, %v1757
    %v1759 = vadd.f32 %v1755, %v1758
    %vm1760 = vweird.f32 %v1754
    %vm1761 = vweird.f32 %v1755
    %vm1762 = vmor %vm1760, %vm1761
    %v1763 = vsel %vm1762, %v1755, %v1759
    %v1764 = vand.u32 2147483647, %v1754
    %vm1765 = vcmp.eq.f32.partialorder %v1764, 8.507059e+37
    %v1766 = vand.u32 %v1754, 2147483648
    %v1767 = vor.u32 1.1754944e-38, %v1766
    %v1768 = vsel %vm1765, %v1767, %v1763
    %v1769 = vmul.f32 1.0, %v1768
    %v1770 = vld [vmem:[#allocation12] sm:$0xff]
    %v1771 = vld [vmem:[#allocation12 + $0x8] sm:$0xff]
    %v1772 = vld [vmem:[#allocation12 + $0x10] sm:$0xff]
    %v1773 = vld [vmem:[#allocation12 + $0x18] sm:$0xff]
    %1774 = vmatpush.msra.mxu0 0.0
    %1775 = vmatpush.msra.mxu0 0.0
    %1776 = vmatpush.msra.mxu0 0.0
    %1777 = vmatpush.msra.mxu0 0.0
    %1778 = vmatpush.msra.mxu0 0.0
    %1779 = vmatpush.msra.mxu0 0.0
    %1780 = vmatpush.msra.mxu0 0.0
    %1781 = vmatpush.msra.mxu0 0.0
    %1782 = vmatpush.msra.mxu0 0.0
    %1783 = vmatpush.msra.mxu0 0.0
    %1784 = vmatpush.msra.mxu0 0.0
    %1785 = vmatpush.msra.mxu0 0.0
    %1786 = vmatpush.msra.mxu0 %v1773
    %1787 = vmatpush.msra.mxu0 %v1772
    %1788 = vmatpush.msra.mxu0 %v1771
    %1789 = vmatpush.msra.mxu0 %v1770
    %1790 = vmatmul.f32.gmra.mxu0 %v1723
    %v1791 = vpop.f32.mrf.mxu0
    %v1792 = vadd.f32 0.0, %v1791
    %1793 = vdwg.mxu0
    %v1794 = vadd.f32 %v231, %v1792
    %v1795 = vld [vmem:[%s8] sm:$0x1]
    %v1797 = vperm.slane %v1795, 0
    %v1799 = vadd.f32 %v1794, %v1797
    %v1800 = vxor.u32 %v1799, 2147483648
    %v1801 = vmul.f32 %v1800, 1.442695
    %v1802 = vpow.pop %v1801
    %v1803 = vadd.f32 %v1802, 1.0
    %v1804 = vrcp.pop %v1803
    %v1805 = vmul.f32 %v1803, %v1804
    %v1806 = vsub.f32 1.0, %v1805
    %v1807 = vmul.f32 %v1804, %v1806
    %v1808 = vadd.f32 %v1804, %v1807
    %vm1809 = vweird.f32 %v1803
    %vm1810 = vweird.f32 %v1804
    %vm1811 = vmor %vm1809, %vm1810
    %v1812 = vsel %vm1811, %v1804, %v1808
    %v1813 = vand.u32 2147483647, %v1803
    %vm1814 = vcmp.eq.f32.partialorder %v1813, 8.507059e+37
    %v1815 = vand.u32 %v1803, 2147483648
    %v1816 = vor.u32 1.1754944e-38, %v1815
    %v1817 = vsel %vm1814, %v1816, %v1812
    %v1818 = vmul.f32 1.0, %v1817
    %v1819 = vld [vmem:[%s9] sm:$0x1]
    %v1821 = vperm.slane %v1819, 0
    %v1823 = vadd.f32 %v258, %v1821
    %v1824 = vld [vmem:[#allocation14] sm:$0xff]
    %v1825 = vld [vmem:[#allocation14 + $0x8] sm:$0xff]
    %v1826 = vld [vmem:[#allocation14 + $0x10] sm:$0xff]
    %v1827 = vld [vmem:[#allocation14 + $0x18] sm:$0xff]
    %v1828 = vld [vmem:[%s10] sm:$0x1]
    %v1830 = vperm.slane %v1828, 0
    %1832 = vmatpush.msra.mxu0 0.0
    %1833 = vmatpush.msra.mxu0 0.0
    %1834 = vmatpush.msra.mxu0 0.0
    %1835 = vmatpush.msra.mxu0 0.0
    %1836 = vmatpush.msra.mxu0 0.0
    %1837 = vmatpush.msra.mxu0 0.0
    %1838 = vmatpush.msra.mxu0 0.0
    %1839 = vmatpush.msra.mxu0 0.0
    %1840 = vmatpush.msra.mxu0 0.0
    %1841 = vmatpush.msra.mxu0 0.0
    %1842 = vmatpush.msra.mxu0 0.0
    %1843 = vmatpush.msra.mxu0 0.0
    %1844 = vmatpush.msra.mxu0 %v1827
    %1845 = vmatpush.msra.mxu0 %v1826
    %1846 = vmatpush.msra.mxu0 %v1825
    %1847 = vmatpush.msra.mxu0 %v1824
    %1848 = vmatmul.f32.gmra.mxu0 %v1723
    %v1849 = vpop.f32.mrf.mxu0
    %v1850 = vadd.f32 %v1830, %v1849
    %1851 = vdwg.mxu0
    %v1852 = vmul.f32 %v1769, %v1850
    %v1853 = vadd.f32 %v1823, %v1852
    %v1854 = vtanh.pop %v1853
    %v1855 = vsub.f32 1.0, %v1818
    %v1856 = vmul.f32 %v1855, %v1854
    %v1857 = vmul.f32 %v1818, %v1716
    %v1858 = vadd.f32 %v1856, %v1857
    %v1859 = vld [vmem:[%s401] sm:$0xff]
    %v1860 = vld [vmem:[%s401 + $0x8] sm:$0xff]
    %v1861 = vld [vmem:[%s401 + $0x10] sm:$0xff]
    %v1862 = vld [vmem:[%s401 + $0x18] sm:$0xff]
    %v1863 = vld [vmem:[%s406] sm:$0xff]
    %v1864 = vld [vmem:[%s406 + $0x8] sm:$0xff]
    %v1865 = vld [vmem:[%s406 + $0x10] sm:$0xff]
    %v1866 = vld [vmem:[%s406 + $0x18] sm:$0xff]
    %v1868 = vsel %vm176, %v1858, 0
    %1870 = vmatpush.msra.mxu0 0.0
    %1871 = vmatpush.msra.mxu0 0.0
    %1872 = vmatpush.msra.mxu0 0.0
    %1873 = vmatpush.msra.mxu0 0.0
    %1874 = vmatpush.msra.mxu0 0.0
    %1875 = vmatpush.msra.mxu0 0.0
    %1876 = vmatpush.msra.mxu0 0.0
    %1877 = vmatpush.msra.mxu0 0.0
    %1878 = vmatpush.msra.mxu0 0.0
    %1879 = vmatpush.msra.mxu0 0.0
    %1880 = vmatpush.msra.mxu0 0.0
    %1881 = vmatpush.msra.mxu0 0.0
    %1882 = vmatpush.msra.mxu0 %v1866
    %1883 = vmatpush.msra.mxu0 %v1865
    %1884 = vmatpush.msra.mxu0 %v1864
    %1885 = vmatpush.msra.mxu0 %v1863
    %1886 = vmatmul.f32.gmra.mxu0 %v1868
    %v1887 = vpop.f32.mrf.mxu0
    %v1888 = vadd.f32 0.0, %v1887
    %1889 = vdwg.mxu0
    %1890 = vmatpush.msra.mxu0 0.0
    %1891 = vmatpush.msra.mxu0 0.0
    %1892 = vmatpush.msra.mxu0 0.0
    %1893 = vmatpush.msra.mxu0 0.0
    %1894 = vmatpush.msra.mxu0 0.0
    %1895 = vmatpush.msra.mxu0 0.0
    %1896 = vmatpush.msra.mxu0 0.0
    %1897 = vmatpush.msra.mxu0 0.0
    %1898 = vmatpush.msra.mxu0 0.0
    %1899 = vmatpush.msra.mxu0 0.0
    %1900 = vmatpush.msra.mxu0 0.0
    %1901 = vmatpush.msra.mxu0 0.0
    %1902 = vmatpush.msra.mxu0 %v1862
    %1903 = vmatpush.msra.mxu0 %v1861
    %1904 = vmatpush.msra.mxu0 %v1860
    %1905 = vmatpush.msra.mxu0 %v1859
    %1906 = vmatmul.f32.gmra.mxu0 %v1868
    %v1907 = vpop.f32.mrf.mxu0
    %v1908 = vadd.f32 %v1888, %v1907
    %1909 = vdwg.mxu0
    %v1910 = vld [vmem:[%s454] sm:$0x1]
    %v1912 = vperm.slane %v1910, 0
    %v1914 = vadd.f32 %v1908, %v1912
    %v1915 = vxor.u32 %v1914, 2147483648
    %v1916 = vmul.f32 %v1915, 1.442695
    %v1917 = vpow.pop %v1916
    %v1918 = vadd.f32 %v1917, 1.0
    %v1919 = vrcp.pop %v1918
    %v1920 = vmul.f32 %v1918, %v1919
    %v1921 = vsub.f32 1.0, %v1920
    %v1922 = vmul.f32 %v1919, %v1921
    %v1923 = vadd.f32 %v1919, %v1922
    %vm1924 = vweird.f32 %v1918
    %vm1925 = vweird.f32 %v1919
    %vm1926 = vmor %vm1924, %vm1925
    %v1927 = vsel %vm1926, %v1919, %v1923
    %v1928 = vand.u32 2147483647, %v1918
    %vm1929 = vcmp.eq.f32.partialorder %v1928, 8.507059e+37
    %v1930 = vand.u32 %v1918, 2147483648
    %v1931 = vor.u32 1.1754944e-38, %v1930
    %v1932 = vsel %vm1929, %v1931, %v1927
    %v1933 = vmul.f32 1.0, %v1932
    %v1934 = vld [vmem:[%s479] sm:$0xff]
    %v1935 = vld [vmem:[%s479 + $0x8] sm:$0xff]
    %v1936 = vld [vmem:[%s479 + $0x10] sm:$0xff]
    %v1937 = vld [vmem:[%s479 + $0x18] sm:$0xff]
    %v1938 = vld [vmem:[%s484] sm:$0xff]
    %v1939 = vld [vmem:[%s484 + $0x8] sm:$0xff]
    %v1940 = vld [vmem:[%s484 + $0x10] sm:$0xff]
    %v1941 = vld [vmem:[%s484 + $0x18] sm:$0xff]
    %1942 = vmatpush.msra.mxu0 0.0
    %1943 = vmatpush.msra.mxu0 0.0
    %1944 = vmatpush.msra.mxu0 0.0
    %1945 = vmatpush.msra.mxu0 0.0
    %1946 = vmatpush.msra.mxu0 0.0
    %1947 = vmatpush.msra.mxu0 0.0
    %1948 = vmatpush.msra.mxu0 0.0
    %1949 = vmatpush.msra.mxu0 0.0
    %1950 = vmatpush.msra.mxu0 0.0
    %1951 = vmatpush.msra.mxu0 0.0
    %1952 = vmatpush.msra.mxu0 0.0
    %1953 = vmatpush.msra.mxu0 0.0
    %1954 = vmatpush.msra.mxu0 %v1941
    %1955 = vmatpush.msra.mxu0 %v1940
    %1956 = vmatpush.msra.mxu0 %v1939
    %1957 = vmatpush.msra.mxu0 %v1938
    %1958 = vmatmul.f32.gmra.mxu0 %v1868
    %v1959 = vpop.f32.mrf.mxu0
    %v1960 = vadd.f32 0.0, %v1959
    %1961 = vdwg.mxu0
    %1962 = vmatpush.msra.mxu0 0.0
    %1963 = vmatpush.msra.mxu0 0.0
    %1964 = vmatpush.msra.mxu0 0.0
    %1965 = vmatpush.msra.mxu0 0.0
    %1966 = vmatpush.msra.mxu0 0.0
    %1967 = vmatpush.msra.mxu0 0.0
    %1968 = vmatpush.msra.mxu0 0.0
    %1969 = vmatpush.msra.mxu0 0.0
    %1970 = vmatpush.msra.mxu0 0.0
    %1971 = vmatpush.msra.mxu0 0.0
    %1972 = vmatpush.msra.mxu0 0.0
    %1973 = vmatpush.msra.mxu0 0.0
    %1974 = vmatpush.msra.mxu0 %v1937
    %1975 = vmatpush.msra.mxu0 %v1936
    %1976 = vmatpush.msra.mxu0 %v1935
    %1977 = vmatpush.msra.mxu0 %v1934
    %1978 = vmatmul.f32.gmra.mxu0 %v1868
    %v1979 = vpop.f32.mrf.mxu0
    %v1980 = vadd.f32 %v1960, %v1979
    %1981 = vdwg.mxu0
    %v1982 = vld [vmem:[%s529] sm:$0x1]
    %v1984 = vperm.slane %v1982, 0
    %v1986 = vadd.f32 %v1980, %v1984
    %v1987 = vxor.u32 %v1986, 2147483648
    %v1988 = vmul.f32 %v1987, 1.442695
    %v1989 = vpow.pop %v1988
    %v1990 = vadd.f32 %v1989, 1.0
    %v1991 = vrcp.pop %v1990
    %v1992 = vmul.f32 %v1990, %v1991
    %v1993 = vsub.f32 1.0, %v1992
    %v1994 = vmul.f32 %v1991, %v1993
    %v1995 = vadd.f32 %v1991, %v1994
    %vm1996 = vweird.f32 %v1990
    %vm1997 = vweird.f32 %v1991
    %vm1998 = vmor %vm1996, %vm1997
    %v1999 = vsel %vm1998, %v1991, %v1995
    %v2000 = vand.u32 2147483647, %v1990
    %vm2001 = vcmp.eq.f32.partialorder %v2000, 8.507059e+37
    %v2002 = vand.u32 %v1990, 2147483648
    %v2003 = vor.u32 1.1754944e-38, %v2002
    %v2004 = vsel %vm2001, %v2003, %v1999
    %v2005 = vmul.f32 1.0, %v2004
    %v2006 = vld [vmem:[%s554] sm:$0xff]
    %v2007 = vld [vmem:[%s554 + $0x8] sm:$0xff]
    %v2008 = vld [vmem:[%s554 + $0x10] sm:$0xff]
    %v2009 = vld [vmem:[%s554 + $0x18] sm:$0xff]
    %v2010 = vld [vmem:[%s559] sm:$0x1]
    %v2012 = vperm.slane %v2010, 0
    %2014 = vmatpush.msra.mxu0 0.0
    %2015 = vmatpush.msra.mxu0 0.0
    %2016 = vmatpush.msra.mxu0 0.0
    %2017 = vmatpush.msra.mxu0 0.0
    %2018 = vmatpush.msra.mxu0 0.0
    %2019 = vmatpush.msra.mxu0 0.0
    %2020 = vmatpush.msra.mxu0 0.0
    %2021 = vmatpush.msra.mxu0 0.0
    %2022 = vmatpush.msra.mxu0 0.0
    %2023 = vmatpush.msra.mxu0 0.0
    %2024 = vmatpush.msra.mxu0 0.0
    %2025 = vmatpush.msra.mxu0 0.0
    %2026 = vmatpush.msra.mxu0 %v2009
    %2027 = vmatpush.msra.mxu0 %v2008
    %2028 = vmatpush.msra.mxu0 %v2007
    %2029 = vmatpush.msra.mxu0 %v2006
    %2030 = vmatmul.f32.gmra.mxu0 %v1868
    %v2031 = vpop.f32.mrf.mxu0
    %v2032 = vadd.f32 %v2012, %v2031
    %2033 = vdwg.mxu0
    %v2034 = vld [vmem:[%s584] sm:$0xff]
    %v2035 = vld [vmem:[%s584 + $0x8] sm:$0xff]
    %v2036 = vld [vmem:[%s584 + $0x10] sm:$0xff]
    %v2037 = vld [vmem:[%s584 + $0x18] sm:$0xff]
    %v2038 = vld [vmem:[%s589] sm:$0x1]
    %v2040 = vperm.slane %v2038, 0
    %2042 = vmatpush.msra.mxu0 0.0
    %2043 = vmatpush.msra.mxu0 0.0
    %2044 = vmatpush.msra.mxu0 0.0
    %2045 = vmatpush.msra.mxu0 0.0
    %2046 = vmatpush.msra.mxu0 0.0
    %2047 = vmatpush.msra.mxu0 0.0
    %2048 = vmatpush.msra.mxu0 0.0
    %2049 = vmatpush.msra.mxu0 0.0
    %2050 = vmatpush.msra.mxu0 0.0
    %2051 = vmatpush.msra.mxu0 0.0
    %2052 = vmatpush.msra.mxu0 0.0
    %2053 = vmatpush.msra.mxu0 0.0
    %2054 = vmatpush.msra.mxu0 %v2037
    %2055 = vmatpush.msra.mxu0 %v2036
    %2056 = vmatpush.msra.mxu0 %v2035
    %2057 = vmatpush.msra.mxu0 %v2034
    %2058 = vmatmul.f32.gmra.mxu0 %v1868
    %v2059 = vpop.f32.mrf.mxu0
    %v2060 = vadd.f32 %v2040, %v2059
    %2061 = vdwg.mxu0
    %v2062 = vmul.f32 %v1933, %v2060
    %v2063 = vadd.f32 %v2032, %v2062
    %v2064 = vtanh.pop %v2063
    %v2065 = vsub.f32 1.0, %v2005
    %v2066 = vmul.f32 %v2065, %v2064
    %v2067 = vmul.f32 %v2005, %v1858
    %v2068 = vadd.f32 %v2066, %v2067
    %2069 = vst.msk [vmem:[#allocation2 + $0x8] sm:$0x3] %vm621, %v2068
    %v2070 = vld [vmem:[#allocation11] sm:$0xff]
    %v2071 = vld [vmem:[#allocation11 + $0x8] sm:$0xff]
    %v2072 = vld [vmem:[#allocation11 + $0x10] sm:$0xff]
    %v2073 = vld [vmem:[#allocation11 + $0x18] sm:$0xff]
    %v2075 = vsel %vm176, %v2068, 0
    %2077 = vmatpush.msra.mxu0 0.0
    %2078 = vmatpush.msra.mxu0 0.0
    %2079 = vmatpush.msra.mxu0 0.0
    %2080 = vmatpush.msra.mxu0 0.0
    %2081 = vmatpush.msra.mxu0 0.0
    %2082 = vmatpush.msra.mxu0 0.0
    %2083 = vmatpush.msra.mxu0 0.0
    %2084 = vmatpush.msra.mxu0 0.0
    %2085 = vmatpush.msra.mxu0 0.0
    %2086 = vmatpush.msra.mxu0 0.0
    %2087 = vmatpush.msra.mxu0 0.0
    %2088 = vmatpush.msra.mxu0 0.0
    %2089 = vmatpush.msra.mxu0 %v2073
    %2090 = vmatpush.msra.mxu0 %v2072
    %2091 = vmatpush.msra.mxu0 %v2071
    %2092 = vmatpush.msra.mxu0 %v2070
    %2093 = vmatmul.f32.gmra.mxu0 %v2075
    %v2094 = vpop.f32.mrf.mxu0
    %v2095 = vadd.f32 0.0, %v2094
    %2096 = vdwg.mxu0
    %v2098 = vrot.slane %v2095, 6
    %v2100 = vadd.f32 %v204, %v2098
    %v2101 = vld [vmem:[%s7] sm:$0x1]
    %v2103 = vperm.slane %v2101, 0
    %v2105 = vadd.f32 %v2100, %v2103
    %v2106 = vxor.u32 %v2105, 2147483648
    %v2107 = vmul.f32 %v2106, 1.442695
    %v2108 = vpow.pop %v2107
    %v2109 = vadd.f32 %v2108, 1.0
    %v2110 = vrcp.pop %v2109
    %v2111 = vmul.f32 %v2109, %v2110
    %v2112 = vsub.f32 1.0, %v2111
    %v2113 = vmul.f32 %v2110, %v2112
    %v2114 = vadd.f32 %v2110, %v2113
    %vm2115 = vweird.f32 %v2109
    %vm2116 = vweird.f32 %v2110
    %vm2117 = vmor %vm2115, %vm2116
    %v2118 = vsel %vm2117, %v2110, %v2114
    %v2119 = vand.u32 2147483647, %v2109
    %vm2120 = vcmp.eq.f32.partialorder %v2119, 8.507059e+37
    %v2121 = vand.u32 %v2109, 2147483648
    %v2122 = vor.u32 1.1754944e-38, %v2121
    %v2123 = vsel %vm2120, %v2122, %v2118
    %v2124 = vmul.f32 1.0, %v2123
    %v2125 = vld [vmem:[#allocation12] sm:$0xff]
    %v2126 = vld [vmem:[#allocation12 + $0x8] sm:$0xff]
    %v2127 = vld [vmem:[#allocation12 + $0x10] sm:$0xff]
    %v2128 = vld [vmem:[#allocation12 + $0x18] sm:$0xff]
    %2129 = vmatpush.msra.mxu0 0.0
    %2130 = vmatpush.msra.mxu0 0.0
    %2131 = vmatpush.msra.mxu0 0.0
    %2132 = vmatpush.msra.mxu0 0.0
    %2133 = vmatpush.msra.mxu0 0.0
    %2134 = vmatpush.msra.mxu0 0.0
    %2135 = vmatpush.msra.mxu0 0.0
    %2136 = vmatpush.msra.mxu0 0.0
    %2137 = vmatpush.msra.mxu0 0.0
    %2138 = vmatpush.msra.mxu0 0.0
    %2139 = vmatpush.msra.mxu0 0.0
    %2140 = vmatpush.msra.mxu0 0.0
    %2141 = vmatpush.msra.mxu0 %v2128
    %2142 = vmatpush.msra.mxu0 %v2127
    %2143 = vmatpush.msra.mxu0 %v2126
    %2144 = vmatpush.msra.mxu0 %v2125
    %2145 = vmatmul.f32.gmra.mxu0 %v2075
    %v2146 = vpop.f32.mrf.mxu0
    %v2147 = vadd.f32 0.0, %v2146
    %2148 = vdwg.mxu0
    %v2150 = vrot.slane %v2147, 6
    %v2152 = vadd.f32 %v231, %v2150
    %v2153 = vld [vmem:[%s8] sm:$0x1]
    %v2155 = vperm.slane %v2153, 0
    %v2157 = vadd.f32 %v2152, %v2155
    %v2158 = vxor.u32 %v2157, 2147483648
    %v2159 = vmul.f32 %v2158, 1.442695
    %v2160 = vpow.pop %v2159
    %v2161 = vadd.f32 %v2160, 1.0
    %v2162 = vrcp.pop %v2161
    %v2163 = vmul.f32 %v2161, %v2162
    %v2164 = vsub.f32 1.0, %v2163
    %v2165 = vmul.f32 %v2162, %v2164
    %v2166 = vadd.f32 %v2162, %v2165
    %vm2167 = vweird.f32 %v2161
    %vm2168 = vweird.f32 %v2162
    %vm2169 = vmor %vm2167, %vm2168
    %v2170 = vsel %vm2169, %v2162, %v2166
    %v2171 = vand.u32 2147483647, %v2161
    %vm2172 = vcmp.eq.f32.partialorder %v2171, 8.507059e+37
    %v2173 = vand.u32 %v2161, 2147483648
    %v2174 = vor.u32 1.1754944e-38, %v2173
    %v2175 = vsel %vm2172, %v2174, %v2170
    %v2176 = vmul.f32 1.0, %v2175
    %v2177 = vld [vmem:[%s9] sm:$0x1]
    %v2179 = vperm.slane %v2177, 0
    %v2181 = vadd.f32 %v258, %v2179
    %v2182 = vld [vmem:[#allocation14] sm:$0xff]
    %v2183 = vld [vmem:[#allocation14 + $0x8] sm:$0xff]
    %v2184 = vld [vmem:[#allocation14 + $0x10] sm:$0xff]
    %v2185 = vld [vmem:[#allocation14 + $0x18] sm:$0xff]
    %v2186 = vld [vmem:[%s10] sm:$0x1]
    %v2188 = vperm.slane %v2186, 0
    %2190 = vmatpush.msra.mxu0 0.0
    %2191 = vmatpush.msra.mxu0 0.0
    %2192 = vmatpush.msra.mxu0 0.0
    %2193 = vmatpush.msra.mxu0 0.0
    %2194 = vmatpush.msra.mxu0 0.0
    %2195 = vmatpush.msra.mxu0 0.0
    %2196 = vmatpush.msra.mxu0 0.0
    %2197 = vmatpush.msra.mxu0 0.0
    %2198 = vmatpush.msra.mxu0 0.0
    %2199 = vmatpush.msra.mxu0 0.0
    %2200 = vmatpush.msra.mxu0 0.0
    %2201 = vmatpush.msra.mxu0 0.0
    %2202 = vmatpush.msra.mxu0 %v2185
    %2203 = vmatpush.msra.mxu0 %v2184
    %2204 = vmatpush.msra.mxu0 %v2183
    %2205 = vmatpush.msra.mxu0 %v2182
    %2206 = vmatmul.f32.gmra.mxu0 %v2075
    %v2207 = vpop.f32.mrf.mxu0
    %v2208 = vadd.f32 %v2188, %v2207
    %2209 = vdwg.mxu0
    %v2211 = vrot.slane %v2208, 6
    %v2213 = vmul.f32 %v2124, %v2211
    %v2214 = vadd.f32 %v2181, %v2213
    %v2215 = vtanh.pop %v2214
    %v2216 = vsub.f32 1.0, %v2176
    %v2217 = vmul.f32 %v2216, %v2215
    %v2218 = vrot.slane %v2068, 6
    %v2220 = vmul.f32 %v2176, %v2218
    %v2221 = vadd.f32 %v2217, %v2220
    %v2222 = vld [vmem:[%s401] sm:$0xff]
    %v2223 = vld [vmem:[%s401 + $0x8] sm:$0xff]
    %v2224 = vld [vmem:[%s401 + $0x10] sm:$0xff]
    %v2225 = vld [vmem:[%s401 + $0x18] sm:$0xff]
    %v2226 = vld [vmem:[%s406] sm:$0xff]
    %v2227 = vld [vmem:[%s406 + $0x8] sm:$0xff]
    %v2228 = vld [vmem:[%s406 + $0x10] sm:$0xff]
    %v2229 = vld [vmem:[%s406 + $0x18] sm:$0xff]
    %v2231 = vrot.slane %v2221, 2
    %v2232 = vsel %vm176, %v2231, 0
    %2234 = vmatpush.msra.mxu0 0.0
    %2235 = vmatpush.msra.mxu0 0.0
    %2236 = vmatpush.msra.mxu0 0.0
    %2237 = vmatpush.msra.mxu0 0.0
    %2238 = vmatpush.msra.mxu0 0.0
    %2239 = vmatpush.msra.mxu0 0.0
    %2240 = vmatpush.msra.mxu0 0.0
    %2241 = vmatpush.msra.mxu0 0.0
    %2242 = vmatpush.msra.mxu0 0.0
    %2243 = vmatpush.msra.mxu0 0.0
    %2244 = vmatpush.msra.mxu0 0.0
    %2245 = vmatpush.msra.mxu0 0.0
    %2246 = vmatpush.msra.mxu0 %v2229
    %2247 = vmatpush.msra.mxu0 %v2228
    %2248 = vmatpush.msra.mxu0 %v2227
    %2249 = vmatpush.msra.mxu0 %v2226
    %2250 = vmatmul.f32.gmra.mxu0 %v2232
    %v2251 = vpop.f32.mrf.mxu0
    %v2252 = vadd.f32 0.0, %v2251
    %2253 = vdwg.mxu0
    %2254 = vmatpush.msra.mxu0 0.0
    %2255 = vmatpush.msra.mxu0 0.0
    %2256 = vmatpush.msra.mxu0 0.0
    %2257 = vmatpush.msra.mxu0 0.0
    %2258 = vmatpush.msra.mxu0 0.0
    %2259 = vmatpush.msra.mxu0 0.0
    %2260 = vmatpush.msra.mxu0 0.0
    %2261 = vmatpush.msra.mxu0 0.0
    %2262 = vmatpush.msra.mxu0 0.0
    %2263 = vmatpush.msra.mxu0 0.0
    %2264 = vmatpush.msra.mxu0 0.0
    %2265 = vmatpush.msra.mxu0 0.0
    %2266 = vmatpush.msra.mxu0 %v2225
    %2267 = vmatpush.msra.mxu0 %v2224
    %2268 = vmatpush.msra.mxu0 %v2223
    %2269 = vmatpush.msra.mxu0 %v2222
    %2270 = vmatmul.f32.gmra.mxu0 %v2232
    %v2271 = vpop.f32.mrf.mxu0
    %v2272 = vadd.f32 %v2252, %v2271
    %2273 = vdwg.mxu0
    %v2274 = vld [vmem:[%s454] sm:$0x1]
    %v2276 = vperm.slane %v2274, 0
    %v2278 = vadd.f32 %v2272, %v2276
    %v2279 = vxor.u32 %v2278, 2147483648
    %v2280 = vmul.f32 %v2279, 1.442695
    %v2281 = vpow.pop %v2280
    %v2282 = vadd.f32 %v2281, 1.0
    %v2283 = vrcp.pop %v2282
    %v2284 = vmul.f32 %v2282, %v2283
    %v2285 = vsub.f32 1.0, %v2284
    %v2286 = vmul.f32 %v2283, %v2285
    %v2287 = vadd.f32 %v2283, %v2286
    %vm2288 = vweird.f32 %v2282
    %vm2289 = vweird.f32 %v2283
    %vm2290 = vmor %vm2288, %vm2289
    %v2291 = vsel %vm2290, %v2283, %v2287
    %v2292 = vand.u32 2147483647, %v2282
    %vm2293 = vcmp.eq.f32.partialorder %v2292, 8.507059e+37
    %v2294 = vand.u32 %v2282, 2147483648
    %v2295 = vor.u32 1.1754944e-38, %v2294
    %v2296 = vsel %vm2293, %v2295, %v2291
    %v2297 = vmul.f32 1.0, %v2296
    %v2298 = vld [vmem:[%s479] sm:$0xff]
    %v2299 = vld [vmem:[%s479 + $0x8] sm:$0xff]
    %v2300 = vld [vmem:[%s479 + $0x10] sm:$0xff]
    %v2301 = vld [vmem:[%s479 + $0x18] sm:$0xff]
    %v2302 = vld [vmem:[%s484] sm:$0xff]
    %v2303 = vld [vmem:[%s484 + $0x8] sm:$0xff]
    %v2304 = vld [vmem:[%s484 + $0x10] sm:$0xff]
    %v2305 = vld [vmem:[%s484 + $0x18] sm:$0xff]
    %2306 = vmatpush.msra.mxu0 0.0
    %2307 = vmatpush.msra.mxu0 0.0
    %2308 = vmatpush.msra.mxu0 0.0
    %2309 = vmatpush.msra.mxu0 0.0
    %2310 = vmatpush.msra.mxu0 0.0
    %2311 = vmatpush.msra.mxu0 0.0
    %2312 = vmatpush.msra.mxu0 0.0
    %2313 = vmatpush.msra.mxu0 0.0
    %2314 = vmatpush.msra.mxu0 0.0
    %2315 = vmatpush.msra.mxu0 0.0
    %2316 = vmatpush.msra.mxu0 0.0
    %2317 = vmatpush.msra.mxu0 0.0
    %2318 = vmatpush.msra.mxu0 %v2305
    %2319 = vmatpush.msra.mxu0 %v2304
    %2320 = vmatpush.msra.mxu0 %v2303
    %2321 = vmatpush.msra.mxu0 %v2302
    %2322 = vmatmul.f32.gmra.mxu0 %v2232
    %v2323 = vpop.f32.mrf.mxu0
    %v2324 = vadd.f32 0.0, %v2323
    %2325 = vdwg.mxu0
    %2326 = vmatpush.msra.mxu0 0.0
    %2327 = vmatpush.msra.mxu0 0.0
    %2328 = vmatpush.msra.mxu0 0.0
    %2329 = vmatpush.msra.mxu0 0.0
    %2330 = vmatpush.msra.mxu0 0.0
    %2331 = vmatpush.msra.mxu0 0.0
    %2332 = vmatpush.msra.mxu0 0.0
    %2333 = vmatpush.msra.mxu0 0.0
    %2334 = vmatpush.msra.mxu0 0.0
    %2335 = vmatpush.msra.mxu0 0.0
    %2336 = vmatpush.msra.mxu0 0.0
    %2337 = vmatpush.msra.mxu0 0.0
    %2338 = vmatpush.msra.mxu0 %v2301
    %2339 = vmatpush.msra.mxu0 %v2300
    %2340 = vmatpush.msra.mxu0 %v2299
    %2341 = vmatpush.msra.mxu0 %v2298
    %2342 = vmatmul.f32.gmra.mxu0 %v2232
    %v2343 = vpop.f32.mrf.mxu0
    %v2344 = vadd.f32 %v2324, %v2343
    %2345 = vdwg.mxu0
    %v2346 = vld [vmem:[%s529] sm:$0x1]
    %v2348 = vperm.slane %v2346, 0
    %v2350 = vadd.f32 %v2344, %v2348
    %v2351 = vxor.u32 %v2350, 2147483648
    %v2352 = vmul.f32 %v2351, 1.442695
    %v2353 = vpow.pop %v2352
    %v2354 = vadd.f32 %v2353, 1.0
    %v2355 = vrcp.pop %v2354
    %v2356 = vmul.f32 %v2354, %v2355
    %v2357 = vsub.f32 1.0, %v2356
    %v2358 = vmul.f32 %v2355, %v2357
    %v2359 = vadd.f32 %v2355, %v2358
    %vm2360 = vweird.f32 %v2354
    %vm2361 = vweird.f32 %v2355
    %vm2362 = vmor %vm2360, %vm2361
    %v2363 = vsel %vm2362, %v2355, %v2359
    %v2364 = vand.u32 2147483647, %v2354
    %vm2365 = vcmp.eq.f32.partialorder %v2364, 8.507059e+37
    %v2366 = vand.u32 %v2354, 2147483648
    %v2367 = vor.u32 1.1754944e-38, %v2366
    %v2368 = vsel %vm2365, %v2367, %v2363
    %v2369 = vmul.f32 1.0, %v2368
    %v2370 = vld [vmem:[%s554] sm:$0xff]
    %v2371 = vld [vmem:[%s554 + $0x8] sm:$0xff]
    %v2372 = vld [vmem:[%s554 + $0x10] sm:$0xff]
    %v2373 = vld [vmem:[%s554 + $0x18] sm:$0xff]
    %v2374 = vld [vmem:[%s559] sm:$0x1]
    %v2376 = vperm.slane %v2374, 0
    %2378 = vmatpush.msra.mxu0 0.0
    %2379 = vmatpush.msra.mxu0 0.0
    %2380 = vmatpush.msra.mxu0 0.0
    %2381 = vmatpush.msra.mxu0 0.0
    %2382 = vmatpush.msra.mxu0 0.0
    %2383 = vmatpush.msra.mxu0 0.0
    %2384 = vmatpush.msra.mxu0 0.0
    %2385 = vmatpush.msra.mxu0 0.0
    %2386 = vmatpush.msra.mxu0 0.0
    %2387 = vmatpush.msra.mxu0 0.0
    %2388 = vmatpush.msra.mxu0 0.0
    %2389 = vmatpush.msra.mxu0 0.0
    %2390 = vmatpush.msra.mxu0 %v2373
    %2391 = vmatpush.msra.mxu0 %v2372
    %2392 = vmatpush.msra.mxu0 %v2371
    %2393 = vmatpush.msra.mxu0 %v2370
    %2394 = vmatmul.f32.gmra.mxu0 %v2232
    %v2395 = vpop.f32.mrf.mxu0
    %v2396 = vadd.f32 %v2376, %v2395
    %2397 = vdwg.mxu0
    %v2398 = vld [vmem:[%s584] sm:$0xff]
    %v2399 = vld [vmem:[%s584 + $0x8] sm:$0xff]
    %v2400 = vld [vmem:[%s584 + $0x10] sm:$0xff]
    %v2401 = vld [vmem:[%s584 + $0x18] sm:$0xff]
    %v2402 = vld [vmem:[%s589] sm:$0x1]
    %v2404 = vperm.slane %v2402, 0
    %2406 = vmatpush.msra.mxu0 0.0
    %2407 = vmatpush.msra.mxu0 0.0
    %2408 = vmatpush.msra.mxu0 0.0
    %2409 = vmatpush.msra.mxu0 0.0
    %2410 = vmatpush.msra.mxu0 0.0
    %2411 = vmatpush.msra.mxu0 0.0
    %2412 = vmatpush.msra.mxu0 0.0
    %2413 = vmatpush.msra.mxu0 0.0
    %2414 = vmatpush.msra.mxu0 0.0
    %2415 = vmatpush.msra.mxu0 0.0
    %2416 = vmatpush.msra.mxu0 0.0
    %2417 = vmatpush.msra.mxu0 0.0
    %2418 = vmatpush.msra.mxu0 %v2401
    %2419 = vmatpush.msra.mxu0 %v2400
    %2420 = vmatpush.msra.mxu0 %v2399
    %2421 = vmatpush.msra.mxu0 %v2398
    %2422 = vmatmul.f32.gmra.mxu0 %v2232
    %v2423 = vpop.f32.mrf.mxu0
    %v2424 = vadd.f32 %v2404, %v2423
    %2425 = vdwg.mxu0
    %v2426 = vmul.f32 %v2297, %v2424
    %v2427 = vadd.f32 %v2396, %v2426
    %v2428 = vtanh.pop %v2427
    %v2429 = vsub.f32 1.0, %v2369
    %v2430 = vmul.f32 %v2429, %v2428
    %v2432 = vmul.f32 %v2369, %v2231
    %v2433 = vadd.f32 %v2430, %v2432
    %2434 = vst.msk [vmem:[#allocation2 + $0xa] sm:$0x3] %vm621, %v2433
    %v2435 = vld [vmem:[#allocation11] sm:$0xff]
    %v2436 = vld [vmem:[#allocation11 + $0x8] sm:$0xff]
    %v2437 = vld [vmem:[#allocation11 + $0x10] sm:$0xff]
    %v2438 = vld [vmem:[#allocation11 + $0x18] sm:$0xff]
    %v2440 = vsel %vm176, %v2433, 0
    %2442 = vmatpush.msra.mxu0 0.0
    %2443 = vmatpush.msra.mxu0 0.0
    %2444 = vmatpush.msra.mxu0 0.0
    %2445 = vmatpush.msra.mxu0 0.0
    %2446 = vmatpush.msra.mxu0 0.0
    %2447 = vmatpush.msra.mxu0 0.0
    %2448 = vmatpush.msra.mxu0 0.0
    %2449 = vmatpush.msra.mxu0 0.0
    %2450 = vmatpush.msra.mxu0 0.0
    %2451 = vmatpush.msra.mxu0 0.0
    %2452 = vmatpush.msra.mxu0 0.0
    %2453 = vmatpush.msra.mxu0 0.0
    %2454 = vmatpush.msra.mxu0 %v2438
    %2455 = vmatpush.msra.mxu0 %v2437
    %2456 = vmatpush.msra.mxu0 %v2436
    %2457 = vmatpush.msra.mxu0 %v2435
    %2458 = vmatmul.f32.gmra.mxu0 %v2440
    %v2459 = vpop.f32.mrf.mxu0
    %v2460 = vadd.f32 0.0, %v2459
    %2461 = vdwg.mxu0
    %v2463 = vrot.slane %v2460, 4
    %v2465 = vadd.f32 %v204, %v2463
    %v2466 = vld [vmem:[%s7] sm:$0x1]
    %v2468 = vperm.slane %v2466, 0
    %v2470 = vadd.f32 %v2465, %v2468
    %v2471 = vxor.u32 %v2470, 2147483648
    %v2472 = vmul.f32 %v2471, 1.442695
    %v2473 = vpow.pop %v2472
    %v2474 = vadd.f32 %v2473, 1.0
    %v2475 = vrcp.pop %v2474
    %v2476 = vmul.f32 %v2474, %v2475
    %v2477 = vsub.f32 1.0, %v2476
    %v2478 = vmul.f32 %v2475, %v2477
    %v2479 = vadd.f32 %v2475, %v2478
    %vm2480 = vweird.f32 %v2474
    %vm2481 = vweird.f32 %v2475
    %vm2482 = vmor %vm2480, %vm2481
    %v2483 = vsel %vm2482, %v2475, %v2479
    %v2484 = vand.u32 2147483647, %v2474
    %vm2485 = vcmp.eq.f32.partialorder %v2484, 8.507059e+37
    %v2486 = vand.u32 %v2474, 2147483648
    %v2487 = vor.u32 1.1754944e-38, %v2486
    %v2488 = vsel %vm2485, %v2487, %v2483
    %v2489 = vmul.f32 1.0, %v2488
    %v2490 = vld [vmem:[#allocation12] sm:$0xff]
    %v2491 = vld [vmem:[#allocation12 + $0x8] sm:$0xff]
    %v2492 = vld [vmem:[#allocation12 + $0x10] sm:$0xff]
    %v2493 = vld [vmem:[#allocation12 + $0x18] sm:$0xff]
    %2494 = vmatpush.msra.mxu0 0.0
    %2495 = vmatpush.msra.mxu0 0.0
    %2496 = vmatpush.msra.mxu0 0.0
    %2497 = vmatpush.msra.mxu0 0.0
    %2498 = vmatpush.msra.mxu0 0.0
    %2499 = vmatpush.msra.mxu0 0.0
    %2500 = vmatpush.msra.mxu0 0.0
    %2501 = vmatpush.msra.mxu0 0.0
    %2502 = vmatpush.msra.mxu0 0.0
    %2503 = vmatpush.msra.mxu0 0.0
    %2504 = vmatpush.msra.mxu0 0.0
    %2505 = vmatpush.msra.mxu0 0.0
    %2506 = vmatpush.msra.mxu0 %v2493
    %2507 = vmatpush.msra.mxu0 %v2492
    %2508 = vmatpush.msra.mxu0 %v2491
    %2509 = vmatpush.msra.mxu0 %v2490
    %2510 = vmatmul.f32.gmra.mxu0 %v2440
    %v2511 = vpop.f32.mrf.mxu0
    %v2512 = vadd.f32 0.0, %v2511
    %2513 = vdwg.mxu0
    %v2515 = vrot.slane %v2512, 4
    %v2517 = vadd.f32 %v231, %v2515
    %v2518 = vld [vmem:[%s8] sm:$0x1]
    %v2520 = vperm.slane %v2518, 0
    %v2522 = vadd.f32 %v2517, %v2520
    %v2523 = vxor.u32 %v2522, 2147483648
    %v2524 = vmul.f32 %v2523, 1.442695
    %v2525 = vpow.pop %v2524
    %v2526 = vadd.f32 %v2525, 1.0
    %v2527 = vrcp.pop %v2526
    %v2528 = vmul.f32 %v2526, %v2527
    %v2529 = vsub.f32 1.0, %v2528
    %v2530 = vmul.f32 %v2527, %v2529
    %v2531 = vadd.f32 %v2527, %v2530
    %vm2532 = vweird.f32 %v2526
    %vm2533 = vweird.f32 %v2527
    %vm2534 = vmor %vm2532, %vm2533
    %v2535 = vsel %vm2534, %v2527, %v2531
    %v2536 = vand.u32 2147483647, %v2526
    %vm2537 = vcmp.eq.f32.partialorder %v2536, 8.507059e+37
    %v2538 = vand.u32 %v2526, 2147483648
    %v2539 = vor.u32 1.1754944e-38, %v2538
    %v2540 = vsel %vm2537, %v2539, %v2535
    %v2541 = vmul.f32 1.0, %v2540
    %v2542 = vld [vmem:[%s9] sm:$0x1]
    %v2544 = vperm.slane %v2542, 0
    %v2546 = vadd.f32 %v258, %v2544
    %v2547 = vld [vmem:[#allocation14] sm:$0xff]
    %v2548 = vld [vmem:[#allocation14 + $0x8] sm:$0xff]
    %v2549 = vld [vmem:[#allocation14 + $0x10] sm:$0xff]
    %v2550 = vld [vmem:[#allocation14 + $0x18] sm:$0xff]
    %v2551 = vld [vmem:[%s10] sm:$0x1]
    %v2553 = vperm.slane %v2551, 0
    %2555 = vmatpush.msra.mxu0 0.0
    %2556 = vmatpush.msra.mxu0 0.0
    %2557 = vmatpush.msra.mxu0 0.0
    %2558 = vmatpush.msra.mxu0 0.0
    %2559 = vmatpush.msra.mxu0 0.0
    %2560 = vmatpush.msra.mxu0 0.0
    %2561 = vmatpush.msra.mxu0 0.0
    %2562 = vmatpush.msra.mxu0 0.0
    %2563 = vmatpush.msra.mxu0 0.0
    %2564 = vmatpush.msra.mxu0 0.0
    %2565 = vmatpush.msra.mxu0 0.0
    %2566 = vmatpush.msra.mxu0 0.0
    %2567 = vmatpush.msra.mxu0 %v2550
    %2568 = vmatpush.msra.mxu0 %v2549
    %2569 = vmatpush.msra.mxu0 %v2548
    %2570 = vmatpush.msra.mxu0 %v2547
    %2571 = vmatmul.f32.gmra.mxu0 %v2440
    %v2572 = vpop.f32.mrf.mxu0
    %v2573 = vadd.f32 %v2553, %v2572
    %2574 = vdwg.mxu0
    %v2576 = vrot.slane %v2573, 4
    %v2578 = vmul.f32 %v2489, %v2576
    %v2579 = vadd.f32 %v2546, %v2578
    %v2580 = vtanh.pop %v2579
    %v2581 = vsub.f32 1.0, %v2541
    %v2582 = vmul.f32 %v2581, %v2580
    %v2583 = vrot.slane %v2433, 4
    %v2585 = vmul.f32 %v2541, %v2583
    %v2586 = vadd.f32 %v2582, %v2585
    %v2587 = vld [vmem:[%s401] sm:$0xff]
    %v2588 = vld [vmem:[%s401 + $0x8] sm:$0xff]
    %v2589 = vld [vmem:[%s401 + $0x10] sm:$0xff]
    %v2590 = vld [vmem:[%s401 + $0x18] sm:$0xff]
    %v2591 = vld [vmem:[%s406] sm:$0xff]
    %v2592 = vld [vmem:[%s406 + $0x8] sm:$0xff]
    %v2593 = vld [vmem:[%s406 + $0x10] sm:$0xff]
    %v2594 = vld [vmem:[%s406 + $0x18] sm:$0xff]
    %v2596 = vrot.slane %v2586, 4
    %v2597 = vsel %vm176, %v2596, 0
    %2599 = vmatpush.msra.mxu0 0.0
    %2600 = vmatpush.msra.mxu0 0.0
    %2601 = vmatpush.msra.mxu0 0.0
    %2602 = vmatpush.msra.mxu0 0.0
    %2603 = vmatpush.msra.mxu0 0.0
    %2604 = vmatpush.msra.mxu0 0.0
    %2605 = vmatpush.msra.mxu0 0.0
    %2606 = vmatpush.msra.mxu0 0.0
    %2607 = vmatpush.msra.mxu0 0.0
    %2608 = vmatpush.msra.mxu0 0.0
    %2609 = vmatpush.msra.mxu0 0.0
    %2610 = vmatpush.msra.mxu0 0.0
    %2611 = vmatpush.msra.mxu0 %v2594
    %2612 = vmatpush.msra.mxu0 %v2593
    %2613 = vmatpush.msra.mxu0 %v2592
    %2614 = vmatpush.msra.mxu0 %v2591
    %2615 = vmatmul.f32.gmra.mxu0 %v2597
    %v2616 = vpop.f32.mrf.mxu0
    %v2617 = vadd.f32 0.0, %v2616
    %2618 = vdwg.mxu0
    %2619 = vmatpush.msra.mxu0 0.0
    %2620 = vmatpush.msra.mxu0 0.0
    %2621 = vmatpush.msra.mxu0 0.0
    %2622 = vmatpush.msra.mxu0 0.0
    %2623 = vmatpush.msra.mxu0 0.0
    %2624 = vmatpush.msra.mxu0 0.0
    %2625 = vmatpush.msra.mxu0 0.0
    %2626 = vmatpush.msra.mxu0 0.0
    %2627 = vmatpush.msra.mxu0 0.0
    %2628 = vmatpush.msra.mxu0 0.0
    %2629 = vmatpush.msra.mxu0 0.0
    %2630 = vmatpush.msra.mxu0 0.0
    %2631 = vmatpush.msra.mxu0 %v2590
    %2632 = vmatpush.msra.mxu0 %v2589
    %2633 = vmatpush.msra.mxu0 %v2588
    %2634 = vmatpush.msra.mxu0 %v2587
    %2635 = vmatmul.f32.gmra.mxu0 %v2597
    %v2636 = vpop.f32.mrf.mxu0
    %v2637 = vadd.f32 %v2617, %v2636
    %2638 = vdwg.mxu0
    %v2639 = vld [vmem:[%s454] sm:$0x1]
    %v2641 = vperm.slane %v2639, 0
    %v2643 = vadd.f32 %v2637, %v2641
    %v2644 = vxor.u32 %v2643, 2147483648
    %v2645 = vmul.f32 %v2644, 1.442695
    %v2646 = vpow.pop %v2645
    %v2647 = vadd.f32 %v2646, 1.0
    %v2648 = vrcp.pop %v2647
    %v2649 = vmul.f32 %v2647, %v2648
    %v2650 = vsub.f32 1.0, %v2649
    %v2651 = vmul.f32 %v2648, %v2650
    %v2652 = vadd.f32 %v2648, %v2651
    %vm2653 = vweird.f32 %v2647
    %vm2654 = vweird.f32 %v2648
    %vm2655 = vmor %vm2653, %vm2654
    %v2656 = vsel %vm2655, %v2648, %v2652
    %v2657 = vand.u32 2147483647, %v2647
    %vm2658 = vcmp.eq.f32.partialorder %v2657, 8.507059e+37
    %v2659 = vand.u32 %v2647, 2147483648
    %v2660 = vor.u32 1.1754944e-38, %v2659
    %v2661 = vsel %vm2658, %v2660, %v2656
    %v2662 = vmul.f32 1.0, %v2661
    %v2663 = vld [vmem:[%s479] sm:$0xff]
    %v2664 = vld [vmem:[%s479 + $0x8] sm:$0xff]
    %v2665 = vld [vmem:[%s479 + $0x10] sm:$0xff]
    %v2666 = vld [vmem:[%s479 + $0x18] sm:$0xff]
    %v2667 = vld [vmem:[%s484] sm:$0xff]
    %v2668 = vld [vmem:[%s484 + $0x8] sm:$0xff]
    %v2669 = vld [vmem:[%s484 + $0x10] sm:$0xff]
    %v2670 = vld [vmem:[%s484 + $0x18] sm:$0xff]
    %2671 = vmatpush.msra.mxu0 0.0
    %2672 = vmatpush.msra.mxu0 0.0
    %2673 = vmatpush.msra.mxu0 0.0
    %2674 = vmatpush.msra.mxu0 0.0
    %2675 = vmatpush.msra.mxu0 0.0
    %2676 = vmatpush.msra.mxu0 0.0
    %2677 = vmatpush.msra.mxu0 0.0
    %2678 = vmatpush.msra.mxu0 0.0
    %2679 = vmatpush.msra.mxu0 0.0
    %2680 = vmatpush.msra.mxu0 0.0
    %2681 = vmatpush.msra.mxu0 0.0
    %2682 = vmatpush.msra.mxu0 0.0
    %2683 = vmatpush.msra.mxu0 %v2670
    %2684 = vmatpush.msra.mxu0 %v2669
    %2685 = vmatpush.msra.mxu0 %v2668
    %2686 = vmatpush.msra.mxu0 %v2667
    %2687 = vmatmul.f32.gmra.mxu0 %v2597
    %v2688 = vpop.f32.mrf.mxu0
    %v2689 = vadd.f32 0.0, %v2688
    %2690 = vdwg.mxu0
    %2691 = vmatpush.msra.mxu0 0.0
    %2692 = vmatpush.msra.mxu0 0.0
    %2693 = vmatpush.msra.mxu0 0.0
    %2694 = vmatpush.msra.mxu0 0.0
    %2695 = vmatpush.msra.mxu0 0.0
    %2696 = vmatpush.msra.mxu0 0.0
    %2697 = vmatpush.msra.mxu0 0.0
    %2698 = vmatpush.msra.mxu0 0.0
    %2699 = vmatpush.msra.mxu0 0.0
    %2700 = vmatpush.msra.mxu0 0.0
    %2701 = vmatpush.msra.mxu0 0.0
    %2702 = vmatpush.msra.mxu0 0.0
    %2703 = vmatpush.msra.mxu0 %v2666
    %2704 = vmatpush.msra.mxu0 %v2665
    %2705 = vmatpush.msra.mxu0 %v2664
    %2706 = vmatpush.msra.mxu0 %v2663
    %2707 = vmatmul.f32.gmra.mxu0 %v2597
    %v2708 = vpop.f32.mrf.mxu0
    %v2709 = vadd.f32 %v2689, %v2708
    %2710 = vdwg.mxu0
    %v2711 = vld [vmem:[%s529] sm:$0x1]
    %v2713 = vperm.slane %v2711, 0
    %v2715 = vadd.f32 %v2709, %v2713
    %v2716 = vxor.u32 %v2715, 2147483648
    %v2717 = vmul.f32 %v2716, 1.442695
    %v2718 = vpow.pop %v2717
    %v2719 = vadd.f32 %v2718, 1.0
    %v2720 = vrcp.pop %v2719
    %v2721 = vmul.f32 %v2719, %v2720
    %v2722 = vsub.f32 1.0, %v2721
    %v2723 = vmul.f32 %v2720, %v2722
    %v2724 = vadd.f32 %v2720, %v2723
    %vm2725 = vweird.f32 %v2719
    %vm2726 = vweird.f32 %v2720
    %vm2727 = vmor %vm2725, %vm2726
    %v2728 = vsel %vm2727, %v2720, %v2724
    %v2729 = vand.u32 2147483647, %v2719
    %vm2730 = vcmp.eq.f32.partialorder %v2729, 8.507059e+37
    %v2731 = vand.u32 %v2719, 2147483648
    %v2732 = vor.u32 1.1754944e-38, %v2731
    %v2733 = vsel %vm2730, %v2732, %v2728
    %v2734 = vmul.f32 1.0, %v2733
    %v2735 = vld [vmem:[%s554] sm:$0xff]
    %v2736 = vld [vmem:[%s554 + $0x8] sm:$0xff]
    %v2737 = vld [vmem:[%s554 + $0x10] sm:$0xff]
    %v2738 = vld [vmem:[%s554 + $0x18] sm:$0xff]
    %v2739 = vld [vmem:[%s559] sm:$0x1]
    %v2741 = vperm.slane %v2739, 0
    %2743 = vmatpush.msra.mxu0 0.0
    %2744 = vmatpush.msra.mxu0 0.0
    %2745 = vmatpush.msra.mxu0 0.0
    %2746 = vmatpush.msra.mxu0 0.0
    %2747 = vmatpush.msra.mxu0 0.0
    %2748 = vmatpush.msra.mxu0 0.0
    %2749 = vmatpush.msra.mxu0 0.0
    %2750 = vmatpush.msra.mxu0 0.0
    %2751 = vmatpush.msra.mxu0 0.0
    %2752 = vmatpush.msra.mxu0 0.0
    %2753 = vmatpush.msra.mxu0 0.0
    %2754 = vmatpush.msra.mxu0 0.0
    %2755 = vmatpush.msra.mxu0 %v2738
    %2756 = vmatpush.msra.mxu0 %v2737
    %2757 = vmatpush.msra.mxu0 %v2736
    %2758 = vmatpush.msra.mxu0 %v2735
    %2759 = vmatmul.f32.gmra.mxu0 %v2597
    %v2760 = vpop.f32.mrf.mxu0
    %v2761 = vadd.f32 %v2741, %v2760
    %2762 = vdwg.mxu0
    %v2763 = vld [vmem:[%s584] sm:$0xff]
    %v2764 = vld [vmem:[%s584 + $0x8] sm:$0xff]
    %v2765 = vld [vmem:[%s584 + $0x10] sm:$0xff]
    %v2766 = vld [vmem:[%s584 + $0x18] sm:$0xff]
    %v2767 = vld [vmem:[%s589] sm:$0x1]
    %v2769 = vperm.slane %v2767, 0
    %2771 = vmatpush.msra.mxu0 0.0
    %2772 = vmatpush.msra.mxu0 0.0
    %2773 = vmatpush.msra.mxu0 0.0
    %2774 = vmatpush.msra.mxu0 0.0
    %2775 = vmatpush.msra.mxu0 0.0
    %2776 = vmatpush.msra.mxu0 0.0
    %2777 = vmatpush.msra.mxu0 0.0
    %2778 = vmatpush.msra.mxu0 0.0
    %2779 = vmatpush.msra.mxu0 0.0
    %2780 = vmatpush.msra.mxu0 0.0
    %2781 = vmatpush.msra.mxu0 0.0
    %2782 = vmatpush.msra.mxu0 0.0
    %2783 = vmatpush.msra.mxu0 %v2766
    %2784 = vmatpush.msra.mxu0 %v2765
    %2785 = vmatpush.msra.mxu0 %v2764
    %2786 = vmatpush.msra.mxu0 %v2763
    %2787 = vmatmul.f32.gmra.mxu0 %v2597
    %v2788 = vpop.f32.mrf.mxu0
    %v2789 = vadd.f32 %v2769, %v2788
    %2790 = vdwg.mxu0
    %v2791 = vmul.f32 %v2662, %v2789
    %v2792 = vadd.f32 %v2761, %v2791
    %v2793 = vtanh.pop %v2792
    %v2794 = vsub.f32 1.0, %v2734
    %v2795 = vmul.f32 %v2794, %v2793
    %v2797 = vmul.f32 %v2734, %v2596
    %v2798 = vadd.f32 %v2795, %v2797
    %2799 = vst.msk [vmem:[#allocation2 + $0xc] sm:$0x3] %vm621, %v2798
    %v2800 = vld [vmem:[#allocation11] sm:$0xff]
    %v2801 = vld [vmem:[#allocation11 + $0x8] sm:$0xff]
    %v2802 = vld [vmem:[#allocation11 + $0x10] sm:$0xff]
    %v2803 = vld [vmem:[#allocation11 + $0x18] sm:$0xff]
    %v2805 = vsel %vm176, %v2798, 0
    %2807 = vmatpush.msra.mxu0 0.0
    %2808 = vmatpush.msra.mxu0 0.0
    %2809 = vmatpush.msra.mxu0 0.0
    %2810 = vmatpush.msra.mxu0 0.0
    %2811 = vmatpush.msra.mxu0 0.0
    %2812 = vmatpush.msra.mxu0 0.0
    %2813 = vmatpush.msra.mxu0 0.0
    %2814 = vmatpush.msra.mxu0 0.0
    %2815 = vmatpush.msra.mxu0 0.0
    %2816 = vmatpush.msra.mxu0 0.0
    %2817 = vmatpush.msra.mxu0 0.0
    %2818 = vmatpush.msra.mxu0 0.0
    %2819 = vmatpush.msra.mxu0 %v2803
    %2820 = vmatpush.msra.mxu0 %v2802
    %2821 = vmatpush.msra.mxu0 %v2801
    %2822 = vmatpush.msra.mxu0 %v2800
    %2823 = vmatmul.f32.gmra.mxu0 %v2805
    %v2824 = vpop.f32.mrf.mxu0
    %v2825 = vadd.f32 0.0, %v2824
    %2826 = vdwg.mxu0
    %v2828 = vrot.slane %v2825, 2
    %v2830 = vadd.f32 %v204, %v2828
    %v2831 = vld [vmem:[%s7] sm:$0x1]
    %v2833 = vperm.slane %v2831, 0
    %v2835 = vadd.f32 %v2830, %v2833
    %v2836 = vxor.u32 %v2835, 2147483648
    %v2837 = vmul.f32 %v2836, 1.442695
    %v2838 = vpow.pop %v2837
    %v2839 = vadd.f32 %v2838, 1.0
    %v2840 = vrcp.pop %v2839
    %v2841 = vmul.f32 %v2839, %v2840
    %v2842 = vsub.f32 1.0, %v2841
    %v2843 = vmul.f32 %v2840, %v2842
    %v2844 = vadd.f32 %v2840, %v2843
    %vm2845 = vweird.f32 %v2839
    %vm2846 = vweird.f32 %v2840
    %vm2847 = vmor %vm2845, %vm2846
    %v2848 = vsel %vm2847, %v2840, %v2844
    %v2849 = vand.u32 2147483647, %v2839
    %vm2850 = vcmp.eq.f32.partialorder %v2849, 8.507059e+37
    %v2851 = vand.u32 %v2839, 2147483648
    %v2852 = vor.u32 1.1754944e-38, %v2851
    %v2853 = vsel %vm2850, %v2852, %v2848
    %v2854 = vmul.f32 1.0, %v2853
    %v2855 = vld [vmem:[#allocation12] sm:$0xff]
    %v2856 = vld [vmem:[#allocation12 + $0x8] sm:$0xff]
    %v2857 = vld [vmem:[#allocation12 + $0x10] sm:$0xff]
    %v2858 = vld [vmem:[#allocation12 + $0x18] sm:$0xff]
    %2859 = vmatpush.msra.mxu0 0.0
    %2860 = vmatpush.msra.mxu0 0.0
    %2861 = vmatpush.msra.mxu0 0.0
    %2862 = vmatpush.msra.mxu0 0.0
    %2863 = vmatpush.msra.mxu0 0.0
    %2864 = vmatpush.msra.mxu0 0.0
    %2865 = vmatpush.msra.mxu0 0.0
    %2866 = vmatpush.msra.mxu0 0.0
    %2867 = vmatpush.msra.mxu0 0.0
    %2868 = vmatpush.msra.mxu0 0.0
    %2869 = vmatpush.msra.mxu0 0.0
    %2870 = vmatpush.msra.mxu0 0.0
    %2871 = vmatpush.msra.mxu0 %v2858
    %2872 = vmatpush.msra.mxu0 %v2857
    %2873 = vmatpush.msra.mxu0 %v2856
    %2874 = vmatpush.msra.mxu0 %v2855
    %2875 = vmatmul.f32.gmra.mxu0 %v2805
    %v2876 = vpop.f32.mrf.mxu0
    %v2877 = vadd.f32 0.0, %v2876
    %2878 = vdwg.mxu0
    %v2880 = vrot.slane %v2877, 2
    %v2882 = vadd.f32 %v231, %v2880
    %v2883 = vld [vmem:[%s8] sm:$0x1]
    %v2885 = vperm.slane %v2883, 0
    %v2887 = vadd.f32 %v2882, %v2885
    %v2888 = vxor.u32 %v2887, 2147483648
    %v2889 = vmul.f32 %v2888, 1.442695
    %v2890 = vpow.pop %v2889
    %v2891 = vadd.f32 %v2890, 1.0
    %v2892 = vrcp.pop %v2891
    %v2893 = vmul.f32 %v2891, %v2892
    %v2894 = vsub.f32 1.0, %v2893
    %v2895 = vmul.f32 %v2892, %v2894
    %v2896 = vadd.f32 %v2892, %v2895
    %vm2897 = vweird.f32 %v2891
    %vm2898 = vweird.f32 %v2892
    %vm2899 = vmor %vm2897, %vm2898
    %v2900 = vsel %vm2899, %v2892, %v2896
    %v2901 = vand.u32 2147483647, %v2891
    %vm2902 = vcmp.eq.f32.partialorder %v2901, 8.507059e+37
    %v2903 = vand.u32 %v2891, 2147483648
    %v2904 = vor.u32 1.1754944e-38, %v2903
    %v2905 = vsel %vm2902, %v2904, %v2900
    %v2906 = vmul.f32 1.0, %v2905
    %v2907 = vld [vmem:[%s9] sm:$0x1]
    %v2909 = vperm.slane %v2907, 0
    %v2911 = vadd.f32 %v258, %v2909
    %v2912 = vld [vmem:[#allocation14] sm:$0xff]
    %v2913 = vld [vmem:[#allocation14 + $0x8] sm:$0xff]
    %v2914 = vld [vmem:[#allocation14 + $0x10] sm:$0xff]
    %v2915 = vld [vmem:[#allocation14 + $0x18] sm:$0xff]
    %v2916 = vld [vmem:[%s10] sm:$0x1]
    %v2918 = vperm.slane %v2916, 0
    %2920 = vmatpush.msra.mxu0 0.0
    %2921 = vmatpush.msra.mxu0 0.0
    %2922 = vmatpush.msra.mxu0 0.0
    %2923 = vmatpush.msra.mxu0 0.0
    %2924 = vmatpush.msra.mxu0 0.0
    %2925 = vmatpush.msra.mxu0 0.0
    %2926 = vmatpush.msra.mxu0 0.0
    %2927 = vmatpush.msra.mxu0 0.0
    %2928 = vmatpush.msra.mxu0 0.0
    %2929 = vmatpush.msra.mxu0 0.0
    %2930 = vmatpush.msra.mxu0 0.0
    %2931 = vmatpush.msra.mxu0 0.0
    %2932 = vmatpush.msra.mxu0 %v2915
    %2933 = vmatpush.msra.mxu0 %v2914
    %2934 = vmatpush.msra.mxu0 %v2913
    %2935 = vmatpush.msra.mxu0 %v2912
    %2936 = vmatmul.f32.gmra.mxu0 %v2805
    %v2937 = vpop.f32.mrf.mxu0
    %v2938 = vadd.f32 %v2918, %v2937
    %2939 = vdwg.mxu0
    %v2941 = vrot.slane %v2938, 2
    %v2943 = vmul.f32 %v2854, %v2941
    %v2944 = vadd.f32 %v2911, %v2943
    %v2945 = vtanh.pop %v2944
    %v2946 = vsub.f32 1.0, %v2906
    %v2947 = vmul.f32 %v2946, %v2945
    %v2948 = vrot.slane %v2798, 2
    %v2950 = vmul.f32 %v2906, %v2948
    %v2951 = vadd.f32 %v2947, %v2950
    %v2952 = vld [vmem:[%s401] sm:$0xff]
    %v2953 = vld [vmem:[%s401 + $0x8] sm:$0xff]
    %v2954 = vld [vmem:[%s401 + $0x10] sm:$0xff]
    %v2955 = vld [vmem:[%s401 + $0x18] sm:$0xff]
    %v2956 = vld [vmem:[%s406] sm:$0xff]
    %v2957 = vld [vmem:[%s406 + $0x8] sm:$0xff]
    %v2958 = vld [vmem:[%s406 + $0x10] sm:$0xff]
    %v2959 = vld [vmem:[%s406 + $0x18] sm:$0xff]
    %v2961 = vrot.slane %v2951, 6
    %v2962 = vsel %vm176, %v2961, 0
    %2964 = vmatpush.msra.mxu0 0.0
    %2965 = vmatpush.msra.mxu0 0.0
    %2966 = vmatpush.msra.mxu0 0.0
    %2967 = vmatpush.msra.mxu0 0.0
    %2968 = vmatpush.msra.mxu0 0.0
    %2969 = vmatpush.msra.mxu0 0.0
    %2970 = vmatpush.msra.mxu0 0.0
    %2971 = vmatpush.msra.mxu0 0.0
    %2972 = vmatpush.msra.mxu0 0.0
    %2973 = vmatpush.msra.mxu0 0.0
    %2974 = vmatpush.msra.mxu0 0.0
    %2975 = vmatpush.msra.mxu0 0.0
    %2976 = vmatpush.msra.mxu0 %v2959
    %2977 = vmatpush.msra.mxu0 %v2958
    %2978 = vmatpush.msra.mxu0 %v2957
    %2979 = vmatpush.msra.mxu0 %v2956
    %2980 = vmatmul.f32.gmra.mxu0 %v2962
    %v2981 = vpop.f32.mrf.mxu0
    %v2982 = vadd.f32 0.0, %v2981
    %2983 = vdwg.mxu0
    %2984 = vmatpush.msra.mxu0 0.0
    %2985 = vmatpush.msra.mxu0 0.0
    %2986 = vmatpush.msra.mxu0 0.0
    %2987 = vmatpush.msra.mxu0 0.0
    %2988 = vmatpush.msra.mxu0 0.0
    %2989 = vmatpush.msra.mxu0 0.0
    %2990 = vmatpush.msra.mxu0 0.0
    %2991 = vmatpush.msra.mxu0 0.0
    %2992 = vmatpush.msra.mxu0 0.0
    %2993 = vmatpush.msra.mxu0 0.0
    %2994 = vmatpush.msra.mxu0 0.0
    %2995 = vmatpush.msra.mxu0 0.0
    %2996 = vmatpush.msra.mxu0 %v2955
    %2997 = vmatpush.msra.mxu0 %v2954
    %2998 = vmatpush.msra.mxu0 %v2953
    %2999 = vmatpush.msra.mxu0 %v2952
    %3000 = vmatmul.f32.gmra.mxu0 %v2962
    %v3001 = vpop.f32.mrf.mxu0
    %v3002 = vadd.f32 %v2982, %v3001
    %3003 = vdwg.mxu0
    %v3004 = vld [vmem:[%s454] sm:$0x1]
    %v3006 = vperm.slane %v3004, 0
    %v3008 = vadd.f32 %v3002, %v3006
    %v3009 = vxor.u32 %v3008, 2147483648
    %v3010 = vmul.f32 %v3009, 1.442695
    %v3011 = vpow.pop %v3010
    %v3012 = vadd.f32 %v3011, 1.0
    %v3013 = vrcp.pop %v3012
    %v3014 = vmul.f32 %v3012, %v3013
    %v3015 = vsub.f32 1.0, %v3014
    %v3016 = vmul.f32 %v3013, %v3015
    %v3017 = vadd.f32 %v3013, %v3016
    %vm3018 = vweird.f32 %v3012
    %vm3019 = vweird.f32 %v3013
    %vm3020 = vmor %vm3018, %vm3019
    %v3021 = vsel %vm3020, %v3013, %v3017
    %v3022 = vand.u32 2147483647, %v3012
    %vm3023 = vcmp.eq.f32.partialorder %v3022, 8.507059e+37
    %v3024 = vand.u32 %v3012, 2147483648
    %v3025 = vor.u32 1.1754944e-38, %v3024
    %v3026 = vsel %vm3023, %v3025, %v3021
    %v3027 = vmul.f32 1.0, %v3026
    %v3028 = vld [vmem:[%s479] sm:$0xff]
    %v3029 = vld [vmem:[%s479 + $0x8] sm:$0xff]
    %v3030 = vld [vmem:[%s479 + $0x10] sm:$0xff]
    %v3031 = vld [vmem:[%s479 + $0x18] sm:$0xff]
    %v3032 = vld [vmem:[%s484] sm:$0xff]
    %v3033 = vld [vmem:[%s484 + $0x8] sm:$0xff]
    %v3034 = vld [vmem:[%s484 + $0x10] sm:$0xff]
    %v3035 = vld [vmem:[%s484 + $0x18] sm:$0xff]
    %3036 = vmatpush.msra.mxu0 0.0
    %3037 = vmatpush.msra.mxu0 0.0
    %3038 = vmatpush.msra.mxu0 0.0
    %3039 = vmatpush.msra.mxu0 0.0
    %3040 = vmatpush.msra.mxu0 0.0
    %3041 = vmatpush.msra.mxu0 0.0
    %3042 = vmatpush.msra.mxu0 0.0
    %3043 = vmatpush.msra.mxu0 0.0
    %3044 = vmatpush.msra.mxu0 0.0
    %3045 = vmatpush.msra.mxu0 0.0
    %3046 = vmatpush.msra.mxu0 0.0
    %3047 = vmatpush.msra.mxu0 0.0
    %3048 = vmatpush.msra.mxu0 %v3035
    %3049 = vmatpush.msra.mxu0 %v3034
    %3050 = vmatpush.msra.mxu0 %v3033
    %3051 = vmatpush.msra.mxu0 %v3032
    %3052 = vmatmul.f32.gmra.mxu0 %v2962
    %v3053 = vpop.f32.mrf.mxu0
    %v3054 = vadd.f32 0.0, %v3053
    %3055 = vdwg.mxu0
    %3056 = vmatpush.msra.mxu0 0.0
    %3057 = vmatpush.msra.mxu0 0.0
    %3058 = vmatpush.msra.mxu0 0.0
    %3059 = vmatpush.msra.mxu0 0.0
    %3060 = vmatpush.msra.mxu0 0.0
    %3061 = vmatpush.msra.mxu0 0.0
    %3062 = vmatpush.msra.mxu0 0.0
    %3063 = vmatpush.msra.mxu0 0.0
    %3064 = vmatpush.msra.mxu0 0.0
    %3065 = vmatpush.msra.mxu0 0.0
    %3066 = vmatpush.msra.mxu0 0.0
    %3067 = vmatpush.msra.mxu0 0.0
    %3068 = vmatpush.msra.mxu0 %v3031
    %3069 = vmatpush.msra.mxu0 %v3030
    %3070 = vmatpush.msra.mxu0 %v3029
    %3071 = vmatpush.msra.mxu0 %v3028
    %3072 = vmatmul.f32.gmra.mxu0 %v2962
    %v3073 = vpop.f32.mrf.mxu0
    %v3074 = vadd.f32 %v3054, %v3073
    %3075 = vdwg.mxu0
    %v3076 = vld [vmem:[%s529] sm:$0x1]
    %v3078 = vperm.slane %v3076, 0
    %v3080 = vadd.f32 %v3074, %v3078
    %v3081 = vxor.u32 %v3080, 2147483648
    %v3082 = vmul.f32 %v3081, 1.442695
    %v3083 = vpow.pop %v3082
    %v3084 = vadd.f32 %v3083, 1.0
    %v3085 = vrcp.pop %v3084
    %v3086 = vmul.f32 %v3084, %v3085
    %v3087 = vsub.f32 1.0, %v3086
    %v3088 = vmul.f32 %v3085, %v3087
    %v3089 = vadd.f32 %v3085, %v3088
    %vm3090 = vweird.f32 %v3084
    %vm3091 = vweird.f32 %v3085
    %vm3092 = vmor %vm3090, %vm3091
    %v3093 = vsel %vm3092, %v3085, %v3089
    %v3094 = vand.u32 2147483647, %v3084
    %vm3095 = vcmp.eq.f32.partialorder %v3094, 8.507059e+37
    %v3096 = vand.u32 %v3084, 2147483648
    %v3097 = vor.u32 1.1754944e-38, %v3096
    %v3098 = vsel %vm3095, %v3097, %v3093
    %v3099 = vmul.f32 1.0, %v3098
    %v3100 = vld [vmem:[%s554] sm:$0xff]
    %v3101 = vld [vmem:[%s554 + $0x8] sm:$0xff]
    %v3102 = vld [vmem:[%s554 + $0x10] sm:$0xff]
    %v3103 = vld [vmem:[%s554 + $0x18] sm:$0xff]
    %v3104 = vld [vmem:[%s559] sm:$0x1]
    %v3106 = vperm.slane %v3104, 0
    %3108 = vmatpush.msra.mxu0 0.0
    %3109 = vmatpush.msra.mxu0 0.0
    %3110 = vmatpush.msra.mxu0 0.0
    %3111 = vmatpush.msra.mxu0 0.0
    %3112 = vmatpush.msra.mxu0 0.0
    %3113 = vmatpush.msra.mxu0 0.0
    %3114 = vmatpush.msra.mxu0 0.0
    %3115 = vmatpush.msra.mxu0 0.0
    %3116 = vmatpush.msra.mxu0 0.0
    %3117 = vmatpush.msra.mxu0 0.0
    %3118 = vmatpush.msra.mxu0 0.0
    %3119 = vmatpush.msra.mxu0 0.0
    %3120 = vmatpush.msra.mxu0 %v3103
    %3121 = vmatpush.msra.mxu0 %v3102
    %3122 = vmatpush.msra.mxu0 %v3101
    %3123 = vmatpush.msra.mxu0 %v3100
    %3124 = vmatmul.f32.gmra.mxu0 %v2962
    %v3125 = vpop.f32.mrf.mxu0
    %v3126 = vadd.f32 %v3106, %v3125
    %3127 = vdwg.mxu0
    %v3128 = vld [vmem:[%s584] sm:$0xff]
    %v3129 = vld [vmem:[%s584 + $0x8] sm:$0xff]
    %v3130 = vld [vmem:[%s584 + $0x10] sm:$0xff]
    %v3131 = vld [vmem:[%s584 + $0x18] sm:$0xff]
    %v3132 = vld [vmem:[%s589] sm:$0x1]
    %v3134 = vperm.slane %v3132, 0
    %3136 = vmatpush.msra.mxu0 0.0
    %3137 = vmatpush.msra.mxu0 0.0
    %3138 = vmatpush.msra.mxu0 0.0
    %3139 = vmatpush.msra.mxu0 0.0
    %3140 = vmatpush.msra.mxu0 0.0
    %3141 = vmatpush.msra.mxu0 0.0
    %3142 = vmatpush.msra.mxu0 0.0
    %3143 = vmatpush.msra.mxu0 0.0
    %3144 = vmatpush.msra.mxu0 0.0
    %3145 = vmatpush.msra.mxu0 0.0
    %3146 = vmatpush.msra.mxu0 0.0
    %3147 = vmatpush.msra.mxu0 0.0
    %3148 = vmatpush.msra.mxu0 %v3131
    %3149 = vmatpush.msra.mxu0 %v3130
    %3150 = vmatpush.msra.mxu0 %v3129
    %3151 = vmatpush.msra.mxu0 %v3128
    %3152 = vmatmul.f32.gmra.mxu0 %v2962
    %v3153 = vpop.f32.mrf.mxu0
    %v3154 = vadd.f32 %v3134, %v3153
    %3155 = vdwg.mxu0
    %v3156 = vmul.f32 %v3027, %v3154
    %v3157 = vadd.f32 %v3126, %v3156
    %v3158 = vtanh.pop %v3157
    %v3159 = vsub.f32 1.0, %v3099
    %v3160 = vmul.f32 %v3159, %v3158
    %v3162 = vmul.f32 %v3099, %v2961
    %v3163 = vadd.f32 %v3160, %v3162
    %3164 = vst.msk [vmem:[#allocation2 + $0xe] sm:$0x3] %vm621, %v3163
    %v3165 = vld [vmem:[#allocation2] sm:$0xff]
    %v3166 = vld [vmem:[#allocation2 + $0x8] sm:$0xff]
    %v3167 = vld [vmem:[#allocation15] sm:$0xff]
    %v3168 = vld [vmem:[#allocation15 + $0x8] sm:$0xff]
    %v3169 = vld [vmem:[#allocation15 + $0x10] sm:$0xff]
    %v3170 = vld [vmem:[#allocation15 + $0x18] sm:$0xff]
    %v3171 = vld [vmem:[%s12] sm:$0x1]
    %v3173 = vperm.slane %v3171, 0
    %v3176 = vsel %vm176, %v3165, 0
    %v3179 = vsel %vm176, %v3166, 0
    %3181 = vmatpush.msra.mxu0 0.0
    %3182 = vmatpush.msra.mxu0 0.0
    %3183 = vmatpush.msra.mxu0 0.0
    %3184 = vmatpush.msra.mxu0 0.0
    %3185 = vmatpush.msra.mxu0 0.0
    %3186 = vmatpush.msra.mxu0 0.0
    %3187 = vmatpush.msra.mxu0 0.0
    %3188 = vmatpush.msra.mxu0 0.0
    %3189 = vmatpush.msra.mxu0 0.0
    %3190 = vmatpush.msra.mxu0 0.0
    %3191 = vmatpush.msra.mxu0 0.0
    %3192 = vmatpush.msra.mxu0 0.0
    %3193 = vmatpush.msra.mxu0 %v3170
    %3194 = vmatpush.msra.mxu0 %v3169
    %3195 = vmatpush.msra.mxu0 %v3168
    %3196 = vmatpush.msra.mxu0 %v3167
    %3197 = vmatmul.f32.gmra.mxu0 %v3176
    %v3198 = vpop.f32.mrf.mxu0
    %v3199 = vadd.f32 %v3173, %v3198
    %3200 = vmatmul.f32.gmra.mxu0 %v3179
    %v3201 = vpop.f32.mrf.mxu0
    %v3202 = vadd.f32 %v3173, %v3201
    %3203 = vdwg.mxu0
    %v3204 = vmul.f32 %v3199, 1.5
    %v3205 = vmul.f32 %v3202, 1.5
    %3206 = vst [vmem:[#allocation17] sm:$0xff] %v3204
    %3207 = vst [vmem:[#allocation17 + $0x8] sm:$0xff] %v3205
    // Predicated region
    $region86: #{tpu_custom_call.1} parent=1 // pred_check
      _
    $region87: #{tpu_custom_call.1} parent=1 // pred_check_branch
      %3209 = sbr.rel (0) target = $region89
    $region88: #{tpu_custom_call.1} parent=1 // pred_region
      %3211 = vsyncadd [#allocation5], 0
      %s3212 = sshll.u32 [#allocation17], 4
      %s3213 = int_to_ptr.vmem [resolvable:$true] %s3212
      %s3214 = sshll.u32 %s13, 4
      %s3215 = int_to_ptr.hbm [resolvable:$true] %s3214
      %3220 = dma.vmem_to_hbm [thread:$0]  %s3213, 256, %s3215, [#allocation5], 128, 128, 8
    $region89: #{tpu_custom_call.1} parent=1 // pred_fallthru
      _
    // Predicated region
    $region90: #{tpu_custom_call.1} parent=1 // pred_check
      _
    $region91: #{tpu_custom_call.1} parent=1 // pred_check_branch
      %3222 = sbr.rel (0) target = $region93
    $region92: #{tpu_custom_call.1} parent=1 // pred_region
      %3224 = dma.done [#allocation5], 256
    $region93: #{tpu_custom_call.1} parent=1 // pred_fallthru
      _
    %3225 = vsyncpa [#allocation4], 1
    %3226 = vsyncpa [#allocation7], 1
    %3227 = vsyncpa [#allocation10], 1
    %3228 = vsyncpa [#allocation13], 1
    %3229 = vsyncpa [#allocation16], 1
    %3230 = vsyncpa [#allocation5], 1

</llo_original>
